<compile_context>
chip_gen: v7x
topology: tpu7x:2x2x1
jax: 0.10.0
libtpu: 0.0.40
codegen_flags: <defaults>
</compile_context>

<pallas_src>
import numpy as np

import jax
import jax.numpy as jnp
from jax import lax
from jax.experimental import pallas as pl
from jax.experimental.pallas import tpu as pltpu


# ----------------------------------------------------------------------------
# Host-side constant operator matrices (channel-major orientation).
# ----------------------------------------------------------------------------
def _pool_matrix_t(h, w):
    """AvgPool2d(2) as (HW, HW/4): pooled = x(C, HW) @ P."""
    p = np.zeros((h * w, (h // 2) * (w // 2)), np.float32)
    for i in range(h):
        for j in range(w):
            p[i * w + j, (i // 2) * (w // 2) + (j // 2)] = 0.25
    return p


def _upsample_scatter(h, w):
    """ConvTranspose2d(k=2,s=2) pixel scatter: S[k, p_in, p_out], k = di*2+dj."""
    s = np.zeros((4, h * w, 4 * h * w), np.float32)
    for i in range(h):
        for j in range(w):
            p_in = i * w + j
            for di in range(2):
                for dj in range(2):
                    p_out = (2 * i + di) * (2 * w) + (2 * j + dj)
                    s[di * 2 + dj, p_in, p_out] = 1.0
    return s


# ----------------------------------------------------------------------------
# In-kernel building blocks (values are channel-major: (C, HW), HW on lanes).
# ----------------------------------------------------------------------------
def _celu(x):
    # nn.CELU(alpha=1): x if x > 0 else exp(x) - 1.
    # TODO(synk): expm1 lowering is not guaranteed in Mosaic; exp(x)-1 is used.
    return jnp.where(x > 0, x, jnp.exp(x) - 1.0)


def _shift_lanes(x, d):
    """Circular lane shift: result[..., p] = x[..., (p + d) % n].

    Wrapped lanes are always overwritten by the boundary clamps in the caller.
    Uses pltpu.roll (XLU, cheap) when the lane width is a multiple of 128,
    a 2-piece concat otherwise (sub-128 widths only occur at 8x8 / 4x4 levels).
    """
    n = x.shape[-1]
    d = d % n
    if d == 0:
        return x
    if n % 128 == 0:
        return pltpu.roll(x, n - d, 1)
    return jnp.concatenate([x[:, d:], x[:, :d]], axis=-1)


def _conv3x3_cm(x, w_ref, b_ref, w_px, *, celu):
    """ReplicationPad2d(1) + Conv2d(k=3, bias=True) in channel-major layout.

    x: (Cin, HW) f32; w_ref: (Cout, 9*Cin) bf16 (kh-major, kw, ci);
    b_ref: (Cout, 1) f32.  im2col is built by stacking 9 lane-shifted,
    boundary-clamped taps along the sublane (channel) axis -> one matmul.
    """
    cin, hw = x.shape
    h_px = hw // w_px

    p = lax.broadcasted_iota(jnp.int32, (1, hw), 1)
    if (w_px & (w_px - 1)) == 0:                       # power-of-two width
        col = jnp.bitwise_and(p, w_px - 1)
        row = p >> int(np.log2(w_px))
    else:
        col = p % w_px
        row = p // w_px
    first_col = col == 0
    last_col = col == w_px - 1
    first_row = row == 0
    last_row = row == h_px - 1

    # Horizontal taps (dw = -1, 0, +1), replication-clamped at row ends.
    t0 = x
    tm = jnp.where(first_col, x, _shift_lanes(x, -1))
    tp = jnp.where(last_col, x, _shift_lanes(x, +1))
    h_taps = (tm, t0, tp)

    # Vertical taps (dh = -1, 0, +1), replication-clamped at top/bottom rows.
    taps = []
    for dh in (-1, 0, 1):
        for t in h_taps:
            if dh == -1:
                taps.append(jnp.where(first_row, t, _shift_lanes(t, -w_px)))
            elif dh == 0:
                taps.append(t)
            else:
                taps.append(jnp.where(last_row, t, _shift_lanes(t, +w_px)))

    xcol = jnp.concatenate(taps, axis=0).astype(jnp.bfloat16)   # (9*Cin, HW)
    acc = jnp.dot(w_ref[...], xcol, preferred_element_type=jnp.float32)
    acc = acc + b_ref[...]                                      # (Cout, HW) f32
    return _celu(acc) if celu else acc


def _upconv2x2_cm(x, wcat_ref, s_ref):
    """ConvTranspose2d(C, C, kernel=2, stride=2, bias=False), channel-major.

    x: (C, HW_in) f32; wcat_ref: (4*Cout, Cin) bf16 (tap k = di*2+dj major);
    s_ref: (4, HW_in, HW_out) bf16 scatter matrices.  Returns (Cout, HW_out).
    """
    wcat = wcat_ref[...]
    cout = wcat.shape[0] // 4
    z = jnp.dot(wcat, x.astype(jnp.bfloat16),
                preferred_element_type=jnp.float32)             # (4*Cout, HW_in)
    zb = z.astype(jnp.bfloat16)
    out = jnp.dot(zb[0:cout], s_ref[0], preferred_element_type=jnp.float32)
    for k in range(1, 4):
        out = out + jnp.dot(zb[k * cout:(k + 1) * cout], s_ref[k],
                            preferred_element_type=jnp.float32)
    return out


# ----------------------------------------------------------------------------
# Parameter construction / preparation
# ----------------------------------------------------------------------------
def init_unet_params(key, in_channels=1, out_channels=2, depth=3, wf=4):
    """Deterministic init mirroring the PyTorch module's shapes (torch layouts)."""
    def conv_init(k, cout, cin, ks):
        k1, k2 = jax.random.split(k)
        bound = 1.0 / np.sqrt(cin * ks * ks)
        w = jax.random.uniform(k1, (cout, cin, ks, ks), jnp.float32, -bound, bound)
        b = jax.random.uniform(k2, (cout,), jnp.float32, -bound, bound)
        return w, b

    def wn_conv_init(k, cout, cin, ks):
        w, b = conv_init(k, cout, cin, ks)
        g = jnp.sqrt(jnp.sum(w * w, axis=(1, 2, 3), keepdims=True))  # weight_norm: g = ||v||
        return w, g, b

    keys = iter(jax.random.split(key, 4 * depth + 8))
    params = {"down": [], "up": []}
    prev = int(in_channels)

    for i in range(depth):
        if i != depth - 1:
            outs = [wf * 2 ** i, wf * 2 ** i]
        else:
            outs = [wf * 2 ** i, wf * 2 ** (i - 1)]
        v1, g1, b1 = wn_conv_init(next(keys), int(outs[0]), prev, 3)
        v2, g2, b2 = wn_conv_init(next(keys), int(outs[1]), int(outs[0]), 3)
        params["down"].append({"v1": v1, "g1": g1, "b1": b1,
                               "v2": v2, "g2": g2, "b2": b2})
        prev = int(outs[1])

    for i in reversed(range(depth - 1)):
        in_size = prev
        outs = [wf * 2 ** i, int(wf * 2 ** (i - 1))]
        bound = 1.0 / np.sqrt(in_size * 2 * 2)
        wt = jax.random.uniform(next(keys), (in_size, in_size, 2, 2),
                                jnp.float32, -bound, bound)
        v1, g1, b1 = wn_conv_init(next(keys), int(outs[0]), in_size * 2, 3)
        v2, g2, b2 = wn_conv_init(next(keys), int(outs[1]), int(outs[0]), 3)
        params["up"].append({"wt": wt,
                             "cb": {"v1": v1, "g1": g1, "b1": b1,
                                    "v2": v2, "g2": g2, "b2": b2}})
        prev = int(outs[1])

    bound = 1.0 / np.sqrt(prev)
    params["last_w"] = jax.random.uniform(next(keys), (out_channels, prev, 1, 1),
                                          jnp.float32, -bound, bound)  # bias=False in ref
    return params


def _wn_weight(v, g):
    """nn.utils.weight_norm (dim=0): w = g * v / ||v|| (norm per out-channel)."""
    nrm = jnp.sqrt(jnp.sum(v * v, axis=(1, 2, 3), keepdims=True))
    return v * (g / nrm)


def _conv_w_cm(w_oihw):
    """(Cout, Cin, 3, 3) -> (Cout, 9*Cin) bf16, matching the in-kernel tap order."""
    cout, cin, kh, kw = w_oihw.shape
    return jnp.transpose(w_oihw, (0, 2, 3, 1)).reshape(cout, kh * kw * cin) \
              .astype(jnp.bfloat16)


def prepare_unet_params(params):
    """One-time (outside jit): apply weight_norm, build bf16 channel-major layouts."""
    prep = {"down": [], "up": []}
    for p in params["down"]:
        prep["down"].append({
            "w1": _conv_w_cm(_wn_weight(p["v1"], p["g1"])),
            "b1": p["b1"].reshape(-1, 1).astype(jnp.float32),
            "w2": _conv_w_cm(_wn_weight(p["v2"], p["g2"])),
            "b2": p["b2"].reshape(-1, 1).astype(jnp.float32),
        })
    for u in params["up"]:
        wt = u["wt"]                                   # (Cin, Cout, 2, 2)
        cin, cout = wt.shape[0], wt.shape[1]
        wcat = jnp.transpose(wt, (2, 3, 1, 0)).reshape(4 * cout, cin)  # k-major
        prep["up"].append({
            "wt": wcat.astype(jnp.bfloat16),
            "w1": _conv_w_cm(_wn_weight(u["cb"]["v1"], u["cb"]["g1"])),
            "b1": u["cb"]["b1"].reshape(-1, 1).astype(jnp.float32),
            "w2": _conv_w_cm(_wn_weight(u["cb"]["v2"], u["cb"]["g2"])),
            "b2": u["cb"]["b2"].reshape(-1, 1).astype(jnp.float32),
        })
    lw = params["last_w"]
    prep["last_w"] = lw.reshape(lw.shape[0], lw.shape[1]).astype(jnp.bfloat16)
    return prep


# ----------------------------------------------------------------------------
# Fused UNet forward (single pallas_call, one grid step per batch element)
# ----------------------------------------------------------------------------
def unet_forward(prep, scat_pot_nchw):
    B, c_in, H, W = scat_pot_nchw.shape
    depth = len(prep["down"])
    n_up = len(prep["up"])
    HW = H * W
    c_out = prep["last_w"].shape[0]

    # NCHW -> (B, C, HW): free reshape (channel-major kernel layout).
    x_cm = scat_pot_nchw.reshape(B, c_in, HW).astype(jnp.float32)

    # Constant pooling / upsample-scatter operators (bf16, static shapes).
    pools, scatters = [], []
    ph, pw = H, W
    for _ in range(depth - 1):
        pools.append(jnp.asarray(_pool_matrix_t(ph, pw), dtype=jnp.bfloat16))
        ph //= 2
        pw //= 2
    for u in range(n_up):
        sh = H // (2 ** (depth - 1 - u))
        sw = W // (2 ** (depth - 1 - u))
        scatters.append(jnp.asarray(_upsample_scatter(sh, sw), dtype=jnp.bfloat16))

    # Flat operand list + BlockSpecs (weights/operators are grid-invariant).
    inputs = [x_cm]
    in_specs = [pl.BlockSpec((1, c_in, HW), lambda b: (b, 0, 0))]

    def add_const(a):
        inputs.append(a)
        nd = a.ndim
        in_specs.append(pl.BlockSpec(a.shape, lambda b, _nd=nd: (0,) * _nd))

    for d in prep["down"]:
        for name in ("w1", "b1", "w2", "b2"):
            add_const(d[name])
    for P in pools:
        add_const(P)
    for u_idx, u in enumerate(prep["up"]):
        add_const(u["wt"])
        add_const(scatters[u_idx])
        for name in ("w1", "b1", "w2", "b2"):
            add_const(u[name])
    add_const(prep["last_w"])

    # Advisory cost estimate for XLA's scheduler.
    flops = 0
    trans = 0
    hw_l = HW
    for d_i, d in enumerate(prep["down"]):
        co1, k1 = d["w1"].shape
        co2, k2 = d["w2"].shape
        flops += 2 * (co1 * k1 + co2 * k2) * hw_l
        trans += co1 * hw_l
        if d_i != depth - 1:
            flops += 2 * co2 * hw_l * (hw_l // 4)           # pool matmul
            hw_l //= 4
    for u in prep["up"]:
        hw_out = hw_l * 4
        c4, ci = u["wt"].shape
        flops += 2 * c4 * ci * hw_l + 2 * c4 * hw_l * hw_out
        co1, k1 = u["w1"].shape
        co2, k2 = u["w2"].shape
        flops += 2 * (co1 * k1 + co2 * k2) * hw_out
        trans += co1 * hw_out
        hw_l = hw_out
    co, ci = prep["last_w"].shape
    flops += 2 * co * ci * hw_l
    flops *= B
    trans *= B
    bytes_accessed = B * c_in * HW * 4 + B * c_out * HW * 4
    for a in inputs[1:]:
        bytes_accessed += int(a.size) * int(a.dtype.itemsize)
    cost = pl.CostEstimate(flops=int(flops), transcendentals=int(trans),
                           bytes_accessed=int(bytes_accessed))

    def kernel(*refs):
        out_ref = refs[-1]
        it = iter(refs[:-1])

        x = next(it)[0]                                            # (Cin, HW)
        down_refs = [tuple(next(it) for _ in range(4)) for _ in range(depth)]
        pool_refs = [next(it) for _ in range(depth - 1)]
        up_refs = [tuple(next(it) for _ in range(6)) for _ in range(n_up)]
        last_ref = next(it)

        def conv_block(h, refs4, w_px):
            w1, b1, w2, b2 = refs4
            h = _conv3x3_cm(h, w1, b1, w_px, celu=True)
            return _conv3x3_cm(h, w2, b2, w_px, celu=False)

        # Down path: conv block -> (store skip, avg-pool) except last block.
        skips = []
        w_px = W
        for d in range(depth):
            x = conv_block(x, down_refs[d], w_px)
            if d != depth - 1:
                skips.append(x)
                x = jnp.dot(x.astype(jnp.bfloat16), pool_refs[d][...],
                            preferred_element_type=jnp.float32)
                w_px //= 2

        # Up path: upconv -> concat with skip (sublane/channel axis) -> conv block.
        for u in range(n_up):
            wcat_ref, s_ref, w1, b1, w2, b2 = up_refs[u]
            up = _upconv2x2_cm(x, wcat_ref, s_ref)
            w_px *= 2
            bridge = skips[-(u + 1)]
            x = jnp.concatenate([up, bridge], axis=0)              # [up, bridge]
            x = conv_block(x, (w1, b1, w2, b2), w_px)

        # Final 1x1 conv (bias=False in the reference).
        out = jnp.dot(last_ref[...], x.astype(jnp.bfloat16),
                      preferred_element_type=jnp.float32)
        out_ref[0] = out.astype(out_ref.dtype)

    out_cm = pl.pallas_call(
        kernel,
        out_shape=jax.ShapeDtypeStruct((B, c_out, HW), jnp.float32),
        grid=(B,),
        in_specs=in_specs,
        out_specs=pl.BlockSpec((1, c_out, HW), lambda b: (b, 0, 0)),
        cost_estimate=cost,
        compiler_params=pltpu.CompilerParams(
            dimension_semantics=("parallel",)),
    )(*inputs)

    # (B, C, HW) -> NCHW: free reshape.
    return out_cm.reshape(B, c_out, H, W)


if __name__ == "__main__":
    key = jax.random.PRNGKey(0)
    kp, kx = jax.random.split(key)

    in_channels, out_channels, depth, wf = 1, 2, 3, 4
    params = init_unet_params(kp, in_channels=in_channels,
                              out_channels=out_channels, depth=depth, wf=wf)
    prep = prepare_unet_params(params)          # hoisted out of the jitted forward

    scat_pot = jax.random.normal(kx, (2, in_channels, 16, 16), jnp.float32)

    fwd = jax.jit(unet_forward)
    y = fwd(prep, scat_pot)
    jax.block_until_ready(y)
    assert y.shape == (2, out_channels, 16, 16), y.shape
    assert bool(jnp.all(jnp.isfinite(y)))
    print("KERNEL_OK")
</pallas_src>

<mosaic_0001>
module attributes {stable_mosaic.version = 11 : i64} {
  func.func @kernel(%arg0: i32, %arg1: memref<1x1x256xf32, #tpu.memory_space<vmem>>, %arg2: memref<4x9xbf16, #tpu.memory_space<vmem>>, %arg3: memref<4x1xf32, #tpu.memory_space<vmem>>, %arg4: memref<4x36xbf16, #tpu.memory_space<vmem>>, %arg5: memref<4x1xf32, #tpu.memory_space<vmem>>, %arg6: memref<8x36xbf16, #tpu.memory_space<vmem>>, %arg7: memref<8x1xf32, #tpu.memory_space<vmem>>, %arg8: memref<8x72xbf16, #tpu.memory_space<vmem>>, %arg9: memref<8x1xf32, #tpu.memory_space<vmem>>, %arg10: memref<16x72xbf16, #tpu.memory_space<vmem>>, %arg11: memref<16x1xf32, #tpu.memory_space<vmem>>, %arg12: memref<8x144xbf16, #tpu.memory_space<vmem>>, %arg13: memref<8x1xf32, #tpu.memory_space<vmem>>, %arg14: memref<256x64xbf16, #tpu.memory_space<vmem>>, %arg15: memref<64x16xbf16, #tpu.memory_space<vmem>>, %arg16: memref<32x8xbf16, #tpu.memory_space<vmem>>, %arg17: memref<4x16x64xbf16, #tpu.memory_space<vmem>>, %arg18: memref<8x144xbf16, #tpu.memory_space<vmem>>, %arg19: memref<8x1xf32, #tpu.memory_space<vmem>>, %arg20: memref<4x72xbf16, #tpu.memory_space<vmem>>, %arg21: memref<4x1xf32, #tpu.memory_space<vmem>>, %arg22: memref<16x4xbf16, #tpu.memory_space<vmem>>, %arg23: memref<4x64x256xbf16, #tpu.memory_space<vmem>>, %arg24: memref<4x72xbf16, #tpu.memory_space<vmem>>, %arg25: memref<4x1xf32, #tpu.memory_space<vmem>>, %arg26: memref<2x36xbf16, #tpu.memory_space<vmem>>, %arg27: memref<2x1xf32, #tpu.memory_space<vmem>>, %arg28: memref<2x2xbf16, #tpu.memory_space<vmem>>, %arg29: memref<1x2x256xf32, #tpu.memory_space<vmem>>) attributes {dimension_semantics = [#tpu.dimension_semantics<parallel>], iteration_bounds = array<i64: 2>, scalar_prefetch = 0 : i64, scratch_operands = 0 : i64, tpu.core_type = #tpu.core_type<tc>, window_params = [{transform_indices = @transform_0, window_bounds = array<i64: 1, 1, 256>}, {pipeline_mode = #tpu.pipeline_mode<synchronous>, transform_indices = @transform_1, window_bounds = array<i64: 4, 9>}, {pipeline_mode = #tpu.pipeline_mode<synchronous>, transform_indices = @transform_2, window_bounds = array<i64: 4, 1>}, {pipeline_mode = #tpu.pipeline_mode<synchronous>, transform_indices = @transform_3, window_bounds = array<i64: 4, 36>}, {pipeline_mode = #tpu.pipeline_mode<synchronous>, transform_indices = @transform_4, window_bounds = array<i64: 4, 1>}, {pipeline_mode = #tpu.pipeline_mode<synchronous>, transform_indices = @transform_5, window_bounds = array<i64: 8, 36>}, {pipeline_mode = #tpu.pipeline_mode<synchronous>, transform_indices = @transform_6, window_bounds = array<i64: 8, 1>}, {pipeline_mode = #tpu.pipeline_mode<synchronous>, transform_indices = @transform_7, window_bounds = array<i64: 8, 72>}, {pipeline_mode = #tpu.pipeline_mode<synchronous>, transform_indices = @transform_8, window_bounds = array<i64: 8, 1>}, {pipeline_mode = #tpu.pipeline_mode<synchronous>, transform_indices = @transform_9, window_bounds = array<i64: 16, 72>}, {pipeline_mode = #tpu.pipeline_mode<synchronous>, transform_indices = @transform_10, window_bounds = array<i64: 16, 1>}, {pipeline_mode = #tpu.pipeline_mode<synchronous>, transform_indices = @transform_11, window_bounds = array<i64: 8, 144>}, {pipeline_mode = #tpu.pipeline_mode<synchronous>, transform_indices = @transform_12, window_bounds = array<i64: 8, 1>}, {pipeline_mode = #tpu.pipeline_mode<synchronous>, transform_indices = @transform_13, window_bounds = array<i64: 256, 64>}, {pipeline_mode = #tpu.pipeline_mode<synchronous>, transform_indices = @transform_14, window_bounds = array<i64: 64, 16>}, {pipeline_mode = #tpu.pipeline_mode<synchronous>, transform_indices = @transform_15, window_bounds = array<i64: 32, 8>}, {pipeline_mode = #tpu.pipeline_mode<synchronous>, transform_indices = @transform_16, window_bounds = array<i64: 4, 16, 64>}, {pipeline_mode = #tpu.pipeline_mode<synchronous>, transform_indices = @transform_17, window_bounds = array<i64: 8, 144>}, {pipeline_mode = #tpu.pipeline_mode<synchronous>, transform_indices = @transform_18, window_bounds = array<i64: 8, 1>}, {pipeline_mode = #tpu.pipeline_mode<synchronous>, transform_indices = @transform_19, window_bounds = array<i64: 4, 72>}, {pipeline_mode = #tpu.pipeline_mode<synchronous>, transform_indices = @transform_20, window_bounds = array<i64: 4, 1>}, {pipeline_mode = #tpu.pipeline_mode<synchronous>, transform_indices = @transform_21, window_bounds = array<i64: 16, 4>}, {pipeline_mode = #tpu.pipeline_mode<synchronous>, transform_indices = @transform_22, window_bounds = array<i64: 4, 64, 256>}, {pipeline_mode = #tpu.pipeline_mode<synchronous>, transform_indices = @transform_23, window_bounds = array<i64: 4, 72>}, {pipeline_mode = #tpu.pipeline_mode<synchronous>, transform_indices = @transform_24, window_bounds = array<i64: 4, 1>}, {pipeline_mode = #tpu.pipeline_mode<synchronous>, transform_indices = @transform_25, window_bounds = array<i64: 2, 36>}, {pipeline_mode = #tpu.pipeline_mode<synchronous>, transform_indices = @transform_26, window_bounds = array<i64: 2, 1>}, {pipeline_mode = #tpu.pipeline_mode<synchronous>, transform_indices = @transform_27, window_bounds = array<i64: 2, 2>}, {transform_indices = @transform_28, window_bounds = array<i64: 1, 2, 256>}]} {
    %c0 = arith.constant 0 : index
    %c0_0 = arith.constant 0 : index
    %c0_1 = arith.constant 0 : index
    %0 = vector.load %arg1[%c0, %c0_0, %c0_1] : memref<1x1x256xf32, #tpu.memory_space<vmem>>, vector<1x1x256xf32>
    %1 = vector.shape_cast %0 : vector<1x1x256xf32> to vector<1x256xf32>
    %2 = tpu.iota {dimensions = array<i32: 1>} : vector<1x256xi32>
    %c15_i32 = arith.constant 15 : i32
    %3 = vector.broadcast %c15_i32 : i32 to vector<1x256xi32>
    %4 = arith.andi %2, %3 : vector<1x256xi32>
    %c4_i32 = arith.constant 4 : i32
    %5 = vector.broadcast %c4_i32 : i32 to vector<1x256xi32>
    %6 = arith.shrsi %2, %5 : vector<1x256xi32>
    %c0_i32 = arith.constant 0 : i32
    %7 = vector.broadcast %c0_i32 : i32 to vector<1x256xi32>
    %8 = arith.cmpi eq, %4, %7 : vector<1x256xi32>
    %c15_i32_2 = arith.constant 15 : i32
    %9 = vector.broadcast %c15_i32_2 : i32 to vector<1x256xi32>
    %10 = arith.cmpi eq, %4, %9 : vector<1x256xi32>
    %c0_i32_3 = arith.constant 0 : i32
    %11 = vector.broadcast %c0_i32_3 : i32 to vector<1x256xi32>
    %12 = arith.cmpi eq, %6, %11 : vector<1x256xi32>
    %c15_i32_4 = arith.constant 15 : i32
    %13 = vector.broadcast %c15_i32_4 : i32 to vector<1x256xi32>
    %14 = arith.cmpi eq, %6, %13 : vector<1x256xi32>
    %c1_i32 = arith.constant 1 : i32
    %15 = tpu.dynamic_rotate %1 by %c1_i32 dim 1 : vector<1x256xf32>, i32 -> vector<1x256xf32>
    %16 = arith.select %8, %1, %15 : vector<1x256xi1>, vector<1x256xf32>
    %c255_i32 = arith.constant 255 : i32
    %17 = tpu.dynamic_rotate %1 by %c255_i32 dim 1 : vector<1x256xf32>, i32 -> vector<1x256xf32>
    %18 = arith.select %10, %1, %17 : vector<1x256xi1>, vector<1x256xf32>
    %c16_i32 = arith.constant 16 : i32
    %19 = tpu.dynamic_rotate %16 by %c16_i32 dim 1 : vector<1x256xf32>, i32 -> vector<1x256xf32>
    %20 = arith.select %12, %16, %19 : vector<1x256xi1>, vector<1x256xf32>
    %c16_i32_5 = arith.constant 16 : i32
    %21 = tpu.dynamic_rotate %1 by %c16_i32_5 dim 1 : vector<1x256xf32>, i32 -> vector<1x256xf32>
    %22 = arith.select %12, %1, %21 : vector<1x256xi1>, vector<1x256xf32>
    %c16_i32_6 = arith.constant 16 : i32
    %23 = tpu.dynamic_rotate %18 by %c16_i32_6 dim 1 : vector<1x256xf32>, i32 -> vector<1x256xf32>
    %24 = arith.select %12, %18, %23 : vector<1x256xi1>, vector<1x256xf32>
    %c240_i32 = arith.constant 240 : i32
    %25 = tpu.dynamic_rotate %16 by %c240_i32 dim 1 : vector<1x256xf32>, i32 -> vector<1x256xf32>
    %26 = arith.select %14, %16, %25 : vector<1x256xi1>, vector<1x256xf32>
    %c240_i32_7 = arith.constant 240 : i32
    %27 = tpu.dynamic_rotate %1 by %c240_i32_7 dim 1 : vector<1x256xf32>, i32 -> vector<1x256xf32>
    %28 = arith.select %14, %1, %27 : vector<1x256xi1>, vector<1x256xf32>
    %c240_i32_8 = arith.constant 240 : i32
    %29 = tpu.dynamic_rotate %18 by %c240_i32_8 dim 1 : vector<1x256xf32>, i32 -> vector<1x256xf32>
    %30 = arith.select %14, %18, %29 : vector<1x256xi1>, vector<1x256xf32>
    %31 = tpu.concatenate %20, %22, %24, %16, %1, %18, %26, %28, %30 in 0 : vector<1x256xf32>, vector<1x256xf32>, vector<1x256xf32>, vector<1x256xf32>, vector<1x256xf32>, vector<1x256xf32>, vector<1x256xf32>, vector<1x256xf32>, vector<1x256xf32> -> vector<9x256xf32>
    %32 = arith.truncf %31 : vector<9x256xf32> to vector<9x256xbf16>
    %c0_9 = arith.constant 0 : index
    %c0_10 = arith.constant 0 : index
    %33 = vector.load %arg2[%c0_9, %c0_10] : memref<4x9xbf16, #tpu.memory_space<vmem>>, vector<4x9xbf16>
    %cst = arith.constant dense<0.000000e+00> : vector<4x256xf32>
    %34 = tpu.matmul %33, %32, %cst {dimension_numbers = #tpu.dot_dimension_numbers<[1], [0], [0], [1], [0, 0, 1, 1], [], []>} : vector<4x9xbf16>, vector<9x256xbf16>, vector<4x256xf32> -> vector<4x256xf32>
    %c0_11 = arith.constant 0 : index
    %c0_12 = arith.constant 0 : index
    %35 = vector.load %arg3[%c0_11, %c0_12] : memref<4x1xf32, #tpu.memory_space<vmem>>, vector<4x1xf32>
    %36 = vector.broadcast %35 : vector<4x1xf32> to vector<4x256xf32>
    %37 = arith.addf %34, %36 : vector<4x256xf32>
    %cst_13 = arith.constant 0.000000e+00 : f32
    %38 = vector.broadcast %cst_13 : f32 to vector<4x256xf32>
    %39 = arith.cmpf ogt, %37, %38 : vector<4x256xf32>
    %40 = math.exp %37 : vector<4x256xf32>
    %cst_14 = arith.constant 1.000000e+00 : f32
    %41 = vector.broadcast %cst_14 : f32 to vector<4x256xf32>
    %42 = arith.subf %40, %41 : vector<4x256xf32>
    %43 = arith.select %39, %37, %42 : vector<4x256xi1>, vector<4x256xf32>
    %44 = tpu.iota {dimensions = array<i32: 1>} : vector<1x256xi32>
    %c15_i32_15 = arith.constant 15 : i32
    %45 = vector.broadcast %c15_i32_15 : i32 to vector<1x256xi32>
    %46 = arith.andi %44, %45 : vector<1x256xi32>
    %c4_i32_16 = arith.constant 4 : i32
    %47 = vector.broadcast %c4_i32_16 : i32 to vector<1x256xi32>
    %48 = arith.shrsi %44, %47 : vector<1x256xi32>
    %c0_i32_17 = arith.constant 0 : i32
    %49 = vector.broadcast %c0_i32_17 : i32 to vector<1x256xi32>
    %50 = arith.cmpi eq, %46, %49 : vector<1x256xi32>
    %c15_i32_18 = arith.constant 15 : i32
    %51 = vector.broadcast %c15_i32_18 : i32 to vector<1x256xi32>
    %52 = arith.cmpi eq, %46, %51 : vector<1x256xi32>
    %c0_i32_19 = arith.constant 0 : i32
    %53 = vector.broadcast %c0_i32_19 : i32 to vector<1x256xi32>
    %54 = arith.cmpi eq, %48, %53 : vector<1x256xi32>
    %c15_i32_20 = arith.constant 15 : i32
    %55 = vector.broadcast %c15_i32_20 : i32 to vector<1x256xi32>
    %56 = arith.cmpi eq, %48, %55 : vector<1x256xi32>
    %c1_i32_21 = arith.constant 1 : i32
    %57 = tpu.dynamic_rotate %43 by %c1_i32_21 dim 1 : vector<4x256xf32>, i32 -> vector<4x256xf32>
    %58 = vector.shape_cast %50 : vector<1x256xi1> to vector<1x256xi1>
    %59 = vector.broadcast %58 : vector<1x256xi1> to vector<4x256xi1>
    %60 = arith.select %59, %43, %57 : vector<4x256xi1>, vector<4x256xf32>
    %c255_i32_22 = arith.constant 255 : i32
    %61 = tpu.dynamic_rotate %43 by %c255_i32_22 dim 1 : vector<4x256xf32>, i32 -> vector<4x256xf32>
    %62 = vector.shape_cast %52 : vector<1x256xi1> to vector<1x256xi1>
    %63 = vector.broadcast %62 : vector<1x256xi1> to vector<4x256xi1>
    %64 = arith.select %63, %43, %61 : vector<4x256xi1>, vector<4x256xf32>
    %c16_i32_23 = arith.constant 16 : i32
    %65 = tpu.dynamic_rotate %60 by %c16_i32_23 dim 1 : vector<4x256xf32>, i32 -> vector<4x256xf32>
    %66 = vector.shape_cast %54 : vector<1x256xi1> to vector<1x256xi1>
    %67 = vector.broadcast %66 : vector<1x256xi1> to vector<4x256xi1>
    %68 = arith.select %67, %60, %65 : vector<4x256xi1>, vector<4x256xf32>
    %c16_i32_24 = arith.constant 16 : i32
    %69 = tpu.dynamic_rotate %43 by %c16_i32_24 dim 1 : vector<4x256xf32>, i32 -> vector<4x256xf32>
    %70 = vector.shape_cast %54 : vector<1x256xi1> to vector<1x256xi1>
    %71 = vector.broadcast %70 : vector<1x256xi1> to vector<4x256xi1>
    %72 = arith.select %71, %43, %69 : vector<4x256xi1>, vector<4x256xf32>
    %c16_i32_25 = arith.constant 16 : i32
    %73 = tpu.dynamic_rotate %64 by %c16_i32_25 dim 1 : vector<4x256xf32>, i32 -> vector<4x256xf32>
    %74 = vector.shape_cast %54 : vector<1x256xi1> to vector<1x256xi1>
    %75 = vector.broadcast %74 : vector<1x256xi1> to vector<4x256xi1>
    %76 = arith.select %75, %64, %73 : vector<4x256xi1>, vector<4x256xf32>
    %c240_i32_26 = arith.constant 240 : i32
    %77 = tpu.dynamic_rotate %60 by %c240_i32_26 dim 1 : vector<4x256xf32>, i32 -> vector<4x256xf32>
    %78 = vector.shape_cast %56 : vector<1x256xi1> to vector<1x256xi1>
    %79 = vector.broadcast %78 : vector<1x256xi1> to vector<4x256xi1>
    %80 = arith.select %79, %60, %77 : vector<4x256xi1>, vector<4x256xf32>
    %c240_i32_27 = arith.constant 240 : i32
    %81 = tpu.dynamic_rotate %43 by %c240_i32_27 dim 1 : vector<4x256xf32>, i32 -> vector<4x256xf32>
    %82 = vector.shape_cast %56 : vector<1x256xi1> to vector<1x256xi1>
    %83 = vector.broadcast %82 : vector<1x256xi1> to vector<4x256xi1>
    %84 = arith.select %83, %43, %81 : vector<4x256xi1>, vector<4x256xf32>
    %c240_i32_28 = arith.constant 240 : i32
    %85 = tpu.dynamic_rotate %64 by %c240_i32_28 dim 1 : vector<4x256xf32>, i32 -> vector<4x256xf32>
    %86 = vector.shape_cast %56 : vector<1x256xi1> to vector<1x256xi1>
    %87 = vector.broadcast %86 : vector<1x256xi1> to vector<4x256xi1>
    %88 = arith.select %87, %64, %85 : vector<4x256xi1>, vector<4x256xf32>
    %89 = tpu.concatenate %68, %72, %76, %60, %43, %64, %80, %84, %88 in 0 : vector<4x256xf32>, vector<4x256xf32>, vector<4x256xf32>, vector<4x256xf32>, vector<4x256xf32>, vector<4x256xf32>, vector<4x256xf32>, vector<4x256xf32>, vector<4x256xf32> -> vector<36x256xf32>
    %90 = arith.truncf %89 : vector<36x256xf32> to vector<36x256xbf16>
    %c0_29 = arith.constant 0 : index
    %c0_30 = arith.constant 0 : index
    %91 = vector.load %arg4[%c0_29, %c0_30] : memref<4x36xbf16, #tpu.memory_space<vmem>>, vector<4x36xbf16>
    %cst_31 = arith.constant dense<0.000000e+00> : vector<4x256xf32>
    %92 = tpu.matmul %91, %90, %cst_31 {dimension_numbers = #tpu.dot_dimension_numbers<[1], [0], [0], [1], [0, 0, 1, 1], [], []>} : vector<4x36xbf16>, vector<36x256xbf16>, vector<4x256xf32> -> vector<4x256xf32>
    %c0_32 = arith.constant 0 : index
    %c0_33 = arith.constant 0 : index
    %93 = vector.load %arg5[%c0_32, %c0_33] : memref<4x1xf32, #tpu.memory_space<vmem>>, vector<4x1xf32>
    %94 = vector.broadcast %93 : vector<4x1xf32> to vector<4x256xf32>
    %95 = arith.addf %92, %94 : vector<4x256xf32>
    %96 = arith.truncf %95 : vector<4x256xf32> to vector<4x256xbf16>
    %c0_34 = arith.constant 0 : index
    %c0_35 = arith.constant 0 : index
    %97 = vector.load %arg14[%c0_34, %c0_35] : memref<256x64xbf16, #tpu.memory_space<vmem>>, vector<256x64xbf16>
    %cst_36 = arith.constant dense<0.000000e+00> : vector<4x64xf32>
    %98 = tpu.matmul %96, %97, %cst_36 {dimension_numbers = #tpu.dot_dimension_numbers<[1], [0], [0], [1], [0, 0, 1, 1], [], []>} : vector<4x256xbf16>, vector<256x64xbf16>, vector<4x64xf32> -> vector<4x64xf32>
    %99 = tpu.iota {dimensions = array<i32: 1>} : vector<1x64xi32>
    %c7_i32 = arith.constant 7 : i32
    %100 = vector.broadcast %c7_i32 : i32 to vector<1x64xi32>
    %101 = arith.andi %99, %100 : vector<1x64xi32>
    %c3_i32 = arith.constant 3 : i32
    %102 = vector.broadcast %c3_i32 : i32 to vector<1x64xi32>
    %103 = arith.shrsi %99, %102 : vector<1x64xi32>
    %c0_i32_37 = arith.constant 0 : i32
    %104 = vector.broadcast %c0_i32_37 : i32 to vector<1x64xi32>
    %105 = arith.cmpi eq, %101, %104 : vector<1x64xi32>
    %c7_i32_38 = arith.constant 7 : i32
    %106 = vector.broadcast %c7_i32_38 : i32 to vector<1x64xi32>
    %107 = arith.cmpi eq, %101, %106 : vector<1x64xi32>
    %c0_i32_39 = arith.constant 0 : i32
    %108 = vector.broadcast %c0_i32_39 : i32 to vector<1x64xi32>
    %109 = arith.cmpi eq, %103, %108 : vector<1x64xi32>
    %c7_i32_40 = arith.constant 7 : i32
    %110 = vector.broadcast %c7_i32_40 : i32 to vector<1x64xi32>
    %111 = arith.cmpi eq, %103, %110 : vector<1x64xi32>
    %112 = vector.extract_strided_slice %98 {offsets = [0, 63], sizes = [4, 1], strides = [1, 1]} : vector<4x64xf32> to vector<4x1xf32>
    %113 = vector.extract_strided_slice %98 {offsets = [0, 0], sizes = [4, 63], strides = [1, 1]} : vector<4x64xf32> to vector<4x63xf32>
    %114 = tpu.concatenate %112, %113 in 1 : vector<4x1xf32>, vector<4x63xf32> -> vector<4x64xf32>
    %115 = vector.shape_cast %105 : vector<1x64xi1> to vector<1x64xi1>
    %116 = vector.broadcast %115 : vector<1x64xi1> to vector<4x64xi1>
    %117 = arith.select %116, %98, %114 : vector<4x64xi1>, vector<4x64xf32>
    %118 = vector.extract_strided_slice %98 {offsets = [0, 1], sizes = [4, 63], strides = [1, 1]} : vector<4x64xf32> to vector<4x63xf32>
    %119 = vector.extract_strided_slice %98 {offsets = [0, 0], sizes = [4, 1], strides = [1, 1]} : vector<4x64xf32> to vector<4x1xf32>
    %120 = tpu.concatenate %118, %119 in 1 : vector<4x63xf32>, vector<4x1xf32> -> vector<4x64xf32>
    %121 = vector.shape_cast %107 : vector<1x64xi1> to vector<1x64xi1>
    %122 = vector.broadcast %121 : vector<1x64xi1> to vector<4x64xi1>
    %123 = arith.select %122, %98, %120 : vector<4x64xi1>, vector<4x64xf32>
    %124 = vector.extract_strided_slice %117 {offsets = [0, 56], sizes = [4, 8], strides = [1, 1]} : vector<4x64xf32> to vector<4x8xf32>
    %125 = vector.extract_strided_slice %117 {offsets = [0, 0], sizes = [4, 56], strides = [1, 1]} : vector<4x64xf32> to vector<4x56xf32>
    %126 = tpu.concatenate %124, %125 in 1 : vector<4x8xf32>, vector<4x56xf32> -> vector<4x64xf32>
    %127 = vector.shape_cast %109 : vector<1x64xi1> to vector<1x64xi1>
    %128 = vector.broadcast %127 : vector<1x64xi1> to vector<4x64xi1>
    %129 = arith.select %128, %117, %126 : vector<4x64xi1>, vector<4x64xf32>
    %130 = vector.extract_strided_slice %98 {offsets = [0, 56], sizes = [4, 8], strides = [1, 1]} : vector<4x64xf32> to vector<4x8xf32>
    %131 = vector.extract_strided_slice %98 {offsets = [0, 0], sizes = [4, 56], strides = [1, 1]} : vector<4x64xf32> to vector<4x56xf32>
    %132 = tpu.concatenate %130, %131 in 1 : vector<4x8xf32>, vector<4x56xf32> -> vector<4x64xf32>
    %133 = vector.shape_cast %109 : vector<1x64xi1> to vector<1x64xi1>
    %134 = vector.broadcast %133 : vector<1x64xi1> to vector<4x64xi1>
    %135 = arith.select %134, %98, %132 : vector<4x64xi1>, vector<4x64xf32>
    %136 = vector.extract_strided_slice %123 {offsets = [0, 56], sizes = [4, 8], strides = [1, 1]} : vector<4x64xf32> to vector<4x8xf32>
    %137 = vector.extract_strided_slice %123 {offsets = [0, 0], sizes = [4, 56], strides = [1, 1]} : vector<4x64xf32> to vector<4x56xf32>
    %138 = tpu.concatenate %136, %137 in 1 : vector<4x8xf32>, vector<4x56xf32> -> vector<4x64xf32>
    %139 = vector.shape_cast %109 : vector<1x64xi1> to vector<1x64xi1>
    %140 = vector.broadcast %139 : vector<1x64xi1> to vector<4x64xi1>
    %141 = arith.select %140, %123, %138 : vector<4x64xi1>, vector<4x64xf32>
    %142 = vector.extract_strided_slice %117 {offsets = [0, 8], sizes = [4, 56], strides = [1, 1]} : vector<4x64xf32> to vector<4x56xf32>
    %143 = vector.extract_strided_slice %117 {offsets = [0, 0], sizes = [4, 8], strides = [1, 1]} : vector<4x64xf32> to vector<4x8xf32>
    %144 = tpu.concatenate %142, %143 in 1 : vector<4x56xf32>, vector<4x8xf32> -> vector<4x64xf32>
    %145 = vector.shape_cast %111 : vector<1x64xi1> to vector<1x64xi1>
    %146 = vector.broadcast %145 : vector<1x64xi1> to vector<4x64xi1>
    %147 = arith.select %146, %117, %144 : vector<4x64xi1>, vector<4x64xf32>
    %148 = vector.extract_strided_slice %98 {offsets = [0, 8], sizes = [4, 56], strides = [1, 1]} : vector<4x64xf32> to vector<4x56xf32>
    %149 = vector.extract_strided_slice %98 {offsets = [0, 0], sizes = [4, 8], strides = [1, 1]} : vector<4x64xf32> to vector<4x8xf32>
    %150 = tpu.concatenate %148, %149 in 1 : vector<4x56xf32>, vector<4x8xf32> -> vector<4x64xf32>
    %151 = vector.shape_cast %111 : vector<1x64xi1> to vector<1x64xi1>
    %152 = vector.broadcast %151 : vector<1x64xi1> to vector<4x64xi1>
    %153 = arith.select %152, %98, %150 : vector<4x64xi1>, vector<4x64xf32>
    %154 = vector.extract_strided_slice %123 {offsets = [0, 8], sizes = [4, 56], strides = [1, 1]} : vector<4x64xf32> to vector<4x56xf32>
    %155 = vector.extract_strided_slice %123 {offsets = [0, 0], sizes = [4, 8], strides = [1, 1]} : vector<4x64xf32> to vector<4x8xf32>
    %156 = tpu.concatenate %154, %155 in 1 : vector<4x56xf32>, vector<4x8xf32> -> vector<4x64xf32>
    %157 = vector.shape_cast %111 : vector<1x64xi1> to vector<1x64xi1>
    %158 = vector.broadcast %157 : vector<1x64xi1> to vector<4x64xi1>
    %159 = arith.select %158, %123, %156 : vector<4x64xi1>, vector<4x64xf32>
    %160 = tpu.concatenate %129, %135, %141, %117, %98, %123, %147, %153, %159 in 0 : vector<4x64xf32>, vector<4x64xf32>, vector<4x64xf32>, vector<4x64xf32>, vector<4x64xf32>, vector<4x64xf32>, vector<4x64xf32>, vector<4x64xf32>, vector<4x64xf32> -> vector<36x64xf32>
    %161 = arith.truncf %160 : vector<36x64xf32> to vector<36x64xbf16>
    %c0_41 = arith.constant 0 : index
    %c0_42 = arith.constant 0 : index
    %162 = vector.load %arg6[%c0_41, %c0_42] : memref<8x36xbf16, #tpu.memory_space<vmem>>, vector<8x36xbf16>
    %cst_43 = arith.constant dense<0.000000e+00> : vector<8x64xf32>
    %163 = tpu.matmul %162, %161, %cst_43 {dimension_numbers = #tpu.dot_dimension_numbers<[1], [0], [0], [1], [0, 0, 1, 1], [], []>} : vector<8x36xbf16>, vector<36x64xbf16>, vector<8x64xf32> -> vector<8x64xf32>
    %c0_44 = arith.constant 0 : index
    %c0_45 = arith.constant 0 : index
    %164 = vector.load %arg7[%c0_44, %c0_45] : memref<8x1xf32, #tpu.memory_space<vmem>>, vector<8x1xf32>
    %165 = vector.broadcast %164 : vector<8x1xf32> to vector<8x64xf32>
    %166 = arith.addf %163, %165 : vector<8x64xf32>
    %cst_46 = arith.constant 0.000000e+00 : f32
    %167 = vector.broadcast %cst_46 : f32 to vector<8x64xf32>
    %168 = arith.cmpf ogt, %166, %167 : vector<8x64xf32>
    %169 = math.exp %166 : vector<8x64xf32>
    %cst_47 = arith.constant 1.000000e+00 : f32
    %170 = vector.broadcast %cst_47 : f32 to vector<8x64xf32>
    %171 = arith.subf %169, %170 : vector<8x64xf32>
    %172 = arith.select %168, %166, %171 : vector<8x64xi1>, vector<8x64xf32>
    %173 = tpu.iota {dimensions = array<i32: 1>} : vector<1x64xi32>
    %c7_i32_48 = arith.constant 7 : i32
    %174 = vector.broadcast %c7_i32_48 : i32 to vector<1x64xi32>
    %175 = arith.andi %173, %174 : vector<1x64xi32>
    %c3_i32_49 = arith.constant 3 : i32
    %176 = vector.broadcast %c3_i32_49 : i32 to vector<1x64xi32>
    %177 = arith.shrsi %173, %176 : vector<1x64xi32>
    %c0_i32_50 = arith.constant 0 : i32
    %178 = vector.broadcast %c0_i32_50 : i32 to vector<1x64xi32>
    %179 = arith.cmpi eq, %175, %178 : vector<1x64xi32>
    %c7_i32_51 = arith.constant 7 : i32
    %180 = vector.broadcast %c7_i32_51 : i32 to vector<1x64xi32>
    %181 = arith.cmpi eq, %175, %180 : vector<1x64xi32>
    %c0_i32_52 = arith.constant 0 : i32
    %182 = vector.broadcast %c0_i32_52 : i32 to vector<1x64xi32>
    %183 = arith.cmpi eq, %177, %182 : vector<1x64xi32>
    %c7_i32_53 = arith.constant 7 : i32
    %184 = vector.broadcast %c7_i32_53 : i32 to vector<1x64xi32>
    %185 = arith.cmpi eq, %177, %184 : vector<1x64xi32>
    %186 = vector.extract_strided_slice %172 {offsets = [0, 63], sizes = [8, 1], strides = [1, 1]} : vector<8x64xf32> to vector<8x1xf32>
    %187 = vector.extract_strided_slice %172 {offsets = [0, 0], sizes = [8, 63], strides = [1, 1]} : vector<8x64xf32> to vector<8x63xf32>
    %188 = tpu.concatenate %186, %187 in 1 : vector<8x1xf32>, vector<8x63xf32> -> vector<8x64xf32>
    %189 = vector.shape_cast %179 : vector<1x64xi1> to vector<1x64xi1>
    %190 = vector.broadcast %189 : vector<1x64xi1> to vector<8x64xi1>
    %191 = arith.select %190, %172, %188 : vector<8x64xi1>, vector<8x64xf32>
    %192 = vector.extract_strided_slice %172 {offsets = [0, 1], sizes = [8, 63], strides = [1, 1]} : vector<8x64xf32> to vector<8x63xf32>
    %193 = vector.extract_strided_slice %172 {offsets = [0, 0], sizes = [8, 1], strides = [1, 1]} : vector<8x64xf32> to vector<8x1xf32>
    %194 = tpu.concatenate %192, %193 in 1 : vector<8x63xf32>, vector<8x1xf32> -> vector<8x64xf32>
    %195 = vector.shape_cast %181 : vector<1x64xi1> to vector<1x64xi1>
    %196 = vector.broadcast %195 : vector<1x64xi1> to vector<8x64xi1>
    %197 = arith.select %196, %172, %194 : vector<8x64xi1>, vector<8x64xf32>
    %198 = vector.extract_strided_slice %191 {offsets = [0, 56], sizes = [8, 8], strides = [1, 1]} : vector<8x64xf32> to vector<8x8xf32>
    %199 = vector.extract_strided_slice %191 {offsets = [0, 0], sizes = [8, 56], strides = [1, 1]} : vector<8x64xf32> to vector<8x56xf32>
    %200 = tpu.concatenate %198, %199 in 1 : vector<8x8xf32>, vector<8x56xf32> -> vector<8x64xf32>
    %201 = vector.shape_cast %183 : vector<1x64xi1> to vector<1x64xi1>
    %202 = vector.broadcast %201 : vector<1x64xi1> to vector<8x64xi1>
    %203 = arith.select %202, %191, %200 : vector<8x64xi1>, vector<8x64xf32>
    %204 = vector.extract_strided_slice %172 {offsets = [0, 56], sizes = [8, 8], strides = [1, 1]} : vector<8x64xf32> to vector<8x8xf32>
    %205 = vector.extract_strided_slice %172 {offsets = [0, 0], sizes = [8, 56], strides = [1, 1]} : vector<8x64xf32> to vector<8x56xf32>
    %206 = tpu.concatenate %204, %205 in 1 : vector<8x8xf32>, vector<8x56xf32> -> vector<8x64xf32>
    %207 = vector.shape_cast %183 : vector<1x64xi1> to vector<1x64xi1>
    %208 = vector.broadcast %207 : vector<1x64xi1> to vector<8x64xi1>
    %209 = arith.select %208, %172, %206 : vector<8x64xi1>, vector<8x64xf32>
    %210 = vector.extract_strided_slice %197 {offsets = [0, 56], sizes = [8, 8], strides = [1, 1]} : vector<8x64xf32> to vector<8x8xf32>
    %211 = vector.extract_strided_slice %197 {offsets = [0, 0], sizes = [8, 56], strides = [1, 1]} : vector<8x64xf32> to vector<8x56xf32>
    %212 = tpu.concatenate %210, %211 in 1 : vector<8x8xf32>, vector<8x56xf32> -> vector<8x64xf32>
    %213 = vector.shape_cast %183 : vector<1x64xi1> to vector<1x64xi1>
    %214 = vector.broadcast %213 : vector<1x64xi1> to vector<8x64xi1>
    %215 = arith.select %214, %197, %212 : vector<8x64xi1>, vector<8x64xf32>
    %216 = vector.extract_strided_slice %191 {offsets = [0, 8], sizes = [8, 56], strides = [1, 1]} : vector<8x64xf32> to vector<8x56xf32>
    %217 = vector.extract_strided_slice %191 {offsets = [0, 0], sizes = [8, 8], strides = [1, 1]} : vector<8x64xf32> to vector<8x8xf32>
    %218 = tpu.concatenate %216, %217 in 1 : vector<8x56xf32>, vector<8x8xf32> -> vector<8x64xf32>
    %219 = vector.shape_cast %185 : vector<1x64xi1> to vector<1x64xi1>
    %220 = vector.broadcast %219 : vector<1x64xi1> to vector<8x64xi1>
    %221 = arith.select %220, %191, %218 : vector<8x64xi1>, vector<8x64xf32>
    %222 = vector.extract_strided_slice %172 {offsets = [0, 8], sizes = [8, 56], strides = [1, 1]} : vector<8x64xf32> to vector<8x56xf32>
    %223 = vector.extract_strided_slice %172 {offsets = [0, 0], sizes = [8, 8], strides = [1, 1]} : vector<8x64xf32> to vector<8x8xf32>
    %224 = tpu.concatenate %222, %223 in 1 : vector<8x56xf32>, vector<8x8xf32> -> vector<8x64xf32>
    %225 = vector.shape_cast %185 : vector<1x64xi1> to vector<1x64xi1>
    %226 = vector.broadcast %225 : vector<1x64xi1> to vector<8x64xi1>
    %227 = arith.select %226, %172, %224 : vector<8x64xi1>, vector<8x64xf32>
    %228 = vector.extract_strided_slice %197 {offsets = [0, 8], sizes = [8, 56], strides = [1, 1]} : vector<8x64xf32> to vector<8x56xf32>
    %229 = vector.extract_strided_slice %197 {offsets = [0, 0], sizes = [8, 8], strides = [1, 1]} : vector<8x64xf32> to vector<8x8xf32>
    %230 = tpu.concatenate %228, %229 in 1 : vector<8x56xf32>, vector<8x8xf32> -> vector<8x64xf32>
    %231 = vector.shape_cast %185 : vector<1x64xi1> to vector<1x64xi1>
    %232 = vector.broadcast %231 : vector<1x64xi1> to vector<8x64xi1>
    %233 = arith.select %232, %197, %230 : vector<8x64xi1>, vector<8x64xf32>
    %234 = tpu.concatenate %203, %209, %215, %191, %172, %197, %221, %227, %233 in 0 : vector<8x64xf32>, vector<8x64xf32>, vector<8x64xf32>, vector<8x64xf32>, vector<8x64xf32>, vector<8x64xf32>, vector<8x64xf32>, vector<8x64xf32>, vector<8x64xf32> -> vector<72x64xf32>
    %235 = arith.truncf %234 : vector<72x64xf32> to vector<72x64xbf16>
    %c0_54 = arith.constant 0 : index
    %c0_55 = arith.constant 0 : index
    %236 = vector.load %arg8[%c0_54, %c0_55] : memref<8x72xbf16, #tpu.memory_space<vmem>>, vector<8x72xbf16>
    %cst_56 = arith.constant dense<0.000000e+00> : vector<8x64xf32>
    %237 = tpu.matmul %236, %235, %cst_56 {dimension_numbers = #tpu.dot_dimension_numbers<[1], [0], [0], [1], [0, 0, 1, 1], [], []>} : vector<8x72xbf16>, vector<72x64xbf16>, vector<8x64xf32> -> vector<8x64xf32>
    %c0_57 = arith.constant 0 : index
    %c0_58 = arith.constant 0 : index
    %238 = vector.load %arg9[%c0_57, %c0_58] : memref<8x1xf32, #tpu.memory_space<vmem>>, vector<8x1xf32>
    %239 = vector.broadcast %238 : vector<8x1xf32> to vector<8x64xf32>
    %240 = arith.addf %237, %239 : vector<8x64xf32>
    %241 = arith.truncf %240 : vector<8x64xf32> to vector<8x64xbf16>
    %c0_59 = arith.constant 0 : index
    %c0_60 = arith.constant 0 : index
    %242 = vector.load %arg15[%c0_59, %c0_60] : memref<64x16xbf16, #tpu.memory_space<vmem>>, vector<64x16xbf16>
    %cst_61 = arith.constant dense<0.000000e+00> : vector<8x16xf32>
    %243 = tpu.matmul %241, %242, %cst_61 {dimension_numbers = #tpu.dot_dimension_numbers<[1], [0], [0], [1], [0, 0, 1, 1], [], []>} : vector<8x64xbf16>, vector<64x16xbf16>, vector<8x16xf32> -> vector<8x16xf32>
    %244 = tpu.iota {dimensions = array<i32: 1>} : vector<1x16xi32>
    %c3_i32_62 = arith.constant 3 : i32
    %245 = vector.broadcast %c3_i32_62 : i32 to vector<1x16xi32>
    %246 = arith.andi %244, %245 : vector<1x16xi32>
    %c2_i32 = arith.constant 2 : i32
    %247 = vector.broadcast %c2_i32 : i32 to vector<1x16xi32>
    %248 = arith.shrsi %244, %247 : vector<1x16xi32>
    %c0_i32_63 = arith.constant 0 : i32
    %249 = vector.broadcast %c0_i32_63 : i32 to vector<1x16xi32>
    %250 = arith.cmpi eq, %246, %249 : vector<1x16xi32>
    %c3_i32_64 = arith.constant 3 : i32
    %251 = vector.broadcast %c3_i32_64 : i32 to vector<1x16xi32>
    %252 = arith.cmpi eq, %246, %251 : vector<1x16xi32>
    %c0_i32_65 = arith.constant 0 : i32
    %253 = vector.broadcast %c0_i32_65 : i32 to vector<1x16xi32>
    %254 = arith.cmpi eq, %248, %253 : vector<1x16xi32>
    %c3_i32_66 = arith.constant 3 : i32
    %255 = vector.broadcast %c3_i32_66 : i32 to vector<1x16xi32>
    %256 = arith.cmpi eq, %248, %255 : vector<1x16xi32>
    %257 = vector.extract_strided_slice %243 {offsets = [0, 15], sizes = [8, 1], strides = [1, 1]} : vector<8x16xf32> to vector<8x1xf32>
    %258 = vector.extract_strided_slice %243 {offsets = [0, 0], sizes = [8, 15], strides = [1, 1]} : vector<8x16xf32> to vector<8x15xf32>
    %259 = tpu.concatenate %257, %258 in 1 : vector<8x1xf32>, vector<8x15xf32> -> vector<8x16xf32>
    %260 = vector.shape_cast %250 : vector<1x16xi1> to vector<1x16xi1>
    %261 = vector.broadcast %260 : vector<1x16xi1> to vector<8x16xi1>
    %262 = arith.select %261, %243, %259 : vector<8x16xi1>, vector<8x16xf32>
    %263 = vector.extract_strided_slice %243 {offsets = [0, 1], sizes = [8, 15], strides = [1, 1]} : vector<8x16xf32> to vector<8x15xf32>
    %264 = vector.extract_strided_slice %243 {offsets = [0, 0], sizes = [8, 1], strides = [1, 1]} : vector<8x16xf32> to vector<8x1xf32>
    %265 = tpu.concatenate %263, %264 in 1 : vector<8x15xf32>, vector<8x1xf32> -> vector<8x16xf32>
    %266 = vector.shape_cast %252 : vector<1x16xi1> to vector<1x16xi1>
    %267 = vector.broadcast %266 : vector<1x16xi1> to vector<8x16xi1>
    %268 = arith.select %267, %243, %265 : vector<8x16xi1>, vector<8x16xf32>
    %269 = vector.extract_strided_slice %262 {offsets = [0, 12], sizes = [8, 4], strides = [1, 1]} : vector<8x16xf32> to vector<8x4xf32>
    %270 = vector.extract_strided_slice %262 {offsets = [0, 0], sizes = [8, 12], strides = [1, 1]} : vector<8x16xf32> to vector<8x12xf32>
    %271 = tpu.concatenate %269, %270 in 1 : vector<8x4xf32>, vector<8x12xf32> -> vector<8x16xf32>
    %272 = vector.shape_cast %254 : vector<1x16xi1> to vector<1x16xi1>
    %273 = vector.broadcast %272 : vector<1x16xi1> to vector<8x16xi1>
    %274 = arith.select %273, %262, %271 : vector<8x16xi1>, vector<8x16xf32>
    %275 = vector.extract_strided_slice %243 {offsets = [0, 12], sizes = [8, 4], strides = [1, 1]} : vector<8x16xf32> to vector<8x4xf32>
    %276 = vector.extract_strided_slice %243 {offsets = [0, 0], sizes = [8, 12], strides = [1, 1]} : vector<8x16xf32> to vector<8x12xf32>
    %277 = tpu.concatenate %275, %276 in 1 : vector<8x4xf32>, vector<8x12xf32> -> vector<8x16xf32>
    %278 = vector.shape_cast %254 : vector<1x16xi1> to vector<1x16xi1>
    %279 = vector.broadcast %278 : vector<1x16xi1> to vector<8x16xi1>
    %280 = arith.select %279, %243, %277 : vector<8x16xi1>, vector<8x16xf32>
    %281 = vector.extract_strided_slice %268 {offsets = [0, 12], sizes = [8, 4], strides = [1, 1]} : vector<8x16xf32> to vector<8x4xf32>
    %282 = vector.extract_strided_slice %268 {offsets = [0, 0], sizes = [8, 12], strides = [1, 1]} : vector<8x16xf32> to vector<8x12xf32>
    %283 = tpu.concatenate %281, %282 in 1 : vector<8x4xf32>, vector<8x12xf32> -> vector<8x16xf32>
    %284 = vector.shape_cast %254 : vector<1x16xi1> to vector<1x16xi1>
    %285 = vector.broadcast %284 : vector<1x16xi1> to vector<8x16xi1>
    %286 = arith.select %285, %268, %283 : vector<8x16xi1>, vector<8x16xf32>
    %287 = vector.extract_strided_slice %262 {offsets = [0, 4], sizes = [8, 12], strides = [1, 1]} : vector<8x16xf32> to vector<8x12xf32>
    %288 = vector.extract_strided_slice %262 {offsets = [0, 0], sizes = [8, 4], strides = [1, 1]} : vector<8x16xf32> to vector<8x4xf32>
    %289 = tpu.concatenate %287, %288 in 1 : vector<8x12xf32>, vector<8x4xf32> -> vector<8x16xf32>
    %290 = vector.shape_cast %256 : vector<1x16xi1> to vector<1x16xi1>
    %291 = vector.broadcast %290 : vector<1x16xi1> to vector<8x16xi1>
    %292 = arith.select %291, %262, %289 : vector<8x16xi1>, vector<8x16xf32>
    %293 = vector.extract_strided_slice %243 {offsets = [0, 4], sizes = [8, 12], strides = [1, 1]} : vector<8x16xf32> to vector<8x12xf32>
    %294 = vector.extract_strided_slice %243 {offsets = [0, 0], sizes = [8, 4], strides = [1, 1]} : vector<8x16xf32> to vector<8x4xf32>
    %295 = tpu.concatenate %293, %294 in 1 : vector<8x12xf32>, vector<8x4xf32> -> vector<8x16xf32>
    %296 = vector.shape_cast %256 : vector<1x16xi1> to vector<1x16xi1>
    %297 = vector.broadcast %296 : vector<1x16xi1> to vector<8x16xi1>
    %298 = arith.select %297, %243, %295 : vector<8x16xi1>, vector<8x16xf32>
    %299 = vector.extract_strided_slice %268 {offsets = [0, 4], sizes = [8, 12], strides = [1, 1]} : vector<8x16xf32> to vector<8x12xf32>
    %300 = vector.extract_strided_slice %268 {offsets = [0, 0], sizes = [8, 4], strides = [1, 1]} : vector<8x16xf32> to vector<8x4xf32>
    %301 = tpu.concatenate %299, %300 in 1 : vector<8x12xf32>, vector<8x4xf32> -> vector<8x16xf32>
    %302 = vector.shape_cast %256 : vector<1x16xi1> to vector<1x16xi1>
    %303 = vector.broadcast %302 : vector<1x16xi1> to vector<8x16xi1>
    %304 = arith.select %303, %268, %301 : vector<8x16xi1>, vector<8x16xf32>
    %305 = tpu.concatenate %274, %280, %286, %262, %243, %268, %292, %298, %304 in 0 : vector<8x16xf32>, vector<8x16xf32>, vector<8x16xf32>, vector<8x16xf32>, vector<8x16xf32>, vector<8x16xf32>, vector<8x16xf32>, vector<8x16xf32>, vector<8x16xf32> -> vector<72x16xf32>
    %306 = arith.truncf %305 : vector<72x16xf32> to vector<72x16xbf16>
    %c0_67 = arith.constant 0 : index
    %c0_68 = arith.constant 0 : index
    %307 = vector.load %arg10[%c0_67, %c0_68] : memref<16x72xbf16, #tpu.memory_space<vmem>>, vector<16x72xbf16>
    %cst_69 = arith.constant dense<0.000000e+00> : vector<16x16xf32>
    %308 = tpu.matmul %307, %306, %cst_69 {dimension_numbers = #tpu.dot_dimension_numbers<[1], [0], [0], [1], [0, 0, 1, 1], [], []>} : vector<16x72xbf16>, vector<72x16xbf16>, vector<16x16xf32> -> vector<16x16xf32>
    %c0_70 = arith.constant 0 : index
    %c0_71 = arith.constant 0 : index
    %309 = vector.load %arg11[%c0_70, %c0_71] : memref<16x1xf32, #tpu.memory_space<vmem>>, vector<16x1xf32>
    %310 = vector.broadcast %309 : vector<16x1xf32> to vector<16x16xf32>
    %311 = arith.addf %308, %310 : vector<16x16xf32>
    %cst_72 = arith.constant 0.000000e+00 : f32
    %312 = vector.broadcast %cst_72 : f32 to vector<16x16xf32>
    %313 = arith.cmpf ogt, %311, %312 : vector<16x16xf32>
    %314 = math.exp %311 : vector<16x16xf32>
    %cst_73 = arith.constant 1.000000e+00 : f32
    %315 = vector.broadcast %cst_73 : f32 to vector<16x16xf32>
    %316 = arith.subf %314, %315 : vector<16x16xf32>
    %317 = arith.select %313, %311, %316 : vector<16x16xi1>, vector<16x16xf32>
    %318 = tpu.iota {dimensions = array<i32: 1>} : vector<1x16xi32>
    %c3_i32_74 = arith.constant 3 : i32
    %319 = vector.broadcast %c3_i32_74 : i32 to vector<1x16xi32>
    %320 = arith.andi %318, %319 : vector<1x16xi32>
    %c2_i32_75 = arith.constant 2 : i32
    %321 = vector.broadcast %c2_i32_75 : i32 to vector<1x16xi32>
    %322 = arith.shrsi %318, %321 : vector<1x16xi32>
    %c0_i32_76 = arith.constant 0 : i32
    %323 = vector.broadcast %c0_i32_76 : i32 to vector<1x16xi32>
    %324 = arith.cmpi eq, %320, %323 : vector<1x16xi32>
    %c3_i32_77 = arith.constant 3 : i32
    %325 = vector.broadcast %c3_i32_77 : i32 to vector<1x16xi32>
    %326 = arith.cmpi eq, %320, %325 : vector<1x16xi32>
    %c0_i32_78 = arith.constant 0 : i32
    %327 = vector.broadcast %c0_i32_78 : i32 to vector<1x16xi32>
    %328 = arith.cmpi eq, %322, %327 : vector<1x16xi32>
    %c3_i32_79 = arith.constant 3 : i32
    %329 = vector.broadcast %c3_i32_79 : i32 to vector<1x16xi32>
    %330 = arith.cmpi eq, %322, %329 : vector<1x16xi32>
    %331 = vector.extract_strided_slice %317 {offsets = [0, 15], sizes = [16, 1], strides = [1, 1]} : vector<16x16xf32> to vector<16x1xf32>
    %332 = vector.extract_strided_slice %317 {offsets = [0, 0], sizes = [16, 15], strides = [1, 1]} : vector<16x16xf32> to vector<16x15xf32>
    %333 = tpu.concatenate %331, %332 in 1 : vector<16x1xf32>, vector<16x15xf32> -> vector<16x16xf32>
    %334 = vector.shape_cast %324 : vector<1x16xi1> to vector<1x16xi1>
    %335 = vector.broadcast %334 : vector<1x16xi1> to vector<16x16xi1>
    %336 = arith.select %335, %317, %333 : vector<16x16xi1>, vector<16x16xf32>
    %337 = vector.extract_strided_slice %317 {offsets = [0, 1], sizes = [16, 15], strides = [1, 1]} : vector<16x16xf32> to vector<16x15xf32>
    %338 = vector.extract_strided_slice %317 {offsets = [0, 0], sizes = [16, 1], strides = [1, 1]} : vector<16x16xf32> to vector<16x1xf32>
    %339 = tpu.concatenate %337, %338 in 1 : vector<16x15xf32>, vector<16x1xf32> -> vector<16x16xf32>
    %340 = vector.shape_cast %326 : vector<1x16xi1> to vector<1x16xi1>
    %341 = vector.broadcast %340 : vector<1x16xi1> to vector<16x16xi1>
    %342 = arith.select %341, %317, %339 : vector<16x16xi1>, vector<16x16xf32>
    %343 = vector.extract_strided_slice %336 {offsets = [0, 12], sizes = [16, 4], strides = [1, 1]} : vector<16x16xf32> to vector<16x4xf32>
    %344 = vector.extract_strided_slice %336 {offsets = [0, 0], sizes = [16, 12], strides = [1, 1]} : vector<16x16xf32> to vector<16x12xf32>
    %345 = tpu.concatenate %343, %344 in 1 : vector<16x4xf32>, vector<16x12xf32> -> vector<16x16xf32>
    %346 = vector.shape_cast %328 : vector<1x16xi1> to vector<1x16xi1>
    %347 = vector.broadcast %346 : vector<1x16xi1> to vector<16x16xi1>
    %348 = arith.select %347, %336, %345 : vector<16x16xi1>, vector<16x16xf32>
    %349 = vector.extract_strided_slice %317 {offsets = [0, 12], sizes = [16, 4], strides = [1, 1]} : vector<16x16xf32> to vector<16x4xf32>
    %350 = vector.extract_strided_slice %317 {offsets = [0, 0], sizes = [16, 12], strides = [1, 1]} : vector<16x16xf32> to vector<16x12xf32>
    %351 = tpu.concatenate %349, %350 in 1 : vector<16x4xf32>, vector<16x12xf32> -> vector<16x16xf32>
    %352 = vector.shape_cast %328 : vector<1x16xi1> to vector<1x16xi1>
    %353 = vector.broadcast %352 : vector<1x16xi1> to vector<16x16xi1>
    %354 = arith.select %353, %317, %351 : vector<16x16xi1>, vector<16x16xf32>
    %355 = vector.extract_strided_slice %342 {offsets = [0, 12], sizes = [16, 4], strides = [1, 1]} : vector<16x16xf32> to vector<16x4xf32>
    %356 = vector.extract_strided_slice %342 {offsets = [0, 0], sizes = [16, 12], strides = [1, 1]} : vector<16x16xf32> to vector<16x12xf32>
    %357 = tpu.concatenate %355, %356 in 1 : vector<16x4xf32>, vector<16x12xf32> -> vector<16x16xf32>
    %358 = vector.shape_cast %328 : vector<1x16xi1> to vector<1x16xi1>
    %359 = vector.broadcast %358 : vector<1x16xi1> to vector<16x16xi1>
    %360 = arith.select %359, %342, %357 : vector<16x16xi1>, vector<16x16xf32>
    %361 = vector.extract_strided_slice %336 {offsets = [0, 4], sizes = [16, 12], strides = [1, 1]} : vector<16x16xf32> to vector<16x12xf32>
    %362 = vector.extract_strided_slice %336 {offsets = [0, 0], sizes = [16, 4], strides = [1, 1]} : vector<16x16xf32> to vector<16x4xf32>
    %363 = tpu.concatenate %361, %362 in 1 : vector<16x12xf32>, vector<16x4xf32> -> vector<16x16xf32>
    %364 = vector.shape_cast %330 : vector<1x16xi1> to vector<1x16xi1>
    %365 = vector.broadcast %364 : vector<1x16xi1> to vector<16x16xi1>
    %366 = arith.select %365, %336, %363 : vector<16x16xi1>, vector<16x16xf32>
    %367 = vector.extract_strided_slice %317 {offsets = [0, 4], sizes = [16, 12], strides = [1, 1]} : vector<16x16xf32> to vector<16x12xf32>
    %368 = vector.extract_strided_slice %317 {offsets = [0, 0], sizes = [16, 4], strides = [1, 1]} : vector<16x16xf32> to vector<16x4xf32>
    %369 = tpu.concatenate %367, %368 in 1 : vector<16x12xf32>, vector<16x4xf32> -> vector<16x16xf32>
    %370 = vector.shape_cast %330 : vector<1x16xi1> to vector<1x16xi1>
    %371 = vector.broadcast %370 : vector<1x16xi1> to vector<16x16xi1>
    %372 = arith.select %371, %317, %369 : vector<16x16xi1>, vector<16x16xf32>
    %373 = vector.extract_strided_slice %342 {offsets = [0, 4], sizes = [16, 12], strides = [1, 1]} : vector<16x16xf32> to vector<16x12xf32>
    %374 = vector.extract_strided_slice %342 {offsets = [0, 0], sizes = [16, 4], strides = [1, 1]} : vector<16x16xf32> to vector<16x4xf32>
    %375 = tpu.concatenate %373, %374 in 1 : vector<16x12xf32>, vector<16x4xf32> -> vector<16x16xf32>
    %376 = vector.shape_cast %330 : vector<1x16xi1> to vector<1x16xi1>
    %377 = vector.broadcast %376 : vector<1x16xi1> to vector<16x16xi1>
    %378 = arith.select %377, %342, %375 : vector<16x16xi1>, vector<16x16xf32>
    %379 = tpu.concatenate %348, %354, %360, %336, %317, %342, %366, %372, %378 in 0 : vector<16x16xf32>, vector<16x16xf32>, vector<16x16xf32>, vector<16x16xf32>, vector<16x16xf32>, vector<16x16xf32>, vector<16x16xf32>, vector<16x16xf32>, vector<16x16xf32> -> vector<144x16xf32>
    %380 = arith.truncf %379 : vector<144x16xf32> to vector<144x16xbf16>
    %c0_80 = arith.constant 0 : index
    %c0_81 = arith.constant 0 : index
    %381 = vector.load %arg12[%c0_80, %c0_81] : memref<8x144xbf16, #tpu.memory_space<vmem>>, vector<8x144xbf16>
    %cst_82 = arith.constant dense<0.000000e+00> : vector<8x16xf32>
    %382 = tpu.matmul %381, %380, %cst_82 {dimension_numbers = #tpu.dot_dimension_numbers<[1], [0], [0], [1], [0, 0, 1, 1], [], []>} : vector<8x144xbf16>, vector<144x16xbf16>, vector<8x16xf32> -> vector<8x16xf32>
    %c0_83 = arith.constant 0 : index
    %c0_84 = arith.constant 0 : index
    %383 = vector.load %arg13[%c0_83, %c0_84] : memref<8x1xf32, #tpu.memory_space<vmem>>, vector<8x1xf32>
    %384 = vector.broadcast %383 : vector<8x1xf32> to vector<8x16xf32>
    %385 = arith.addf %382, %384 : vector<8x16xf32>
    %c0_85 = arith.constant 0 : index
    %c0_86 = arith.constant 0 : index
    %386 = vector.load %arg16[%c0_85, %c0_86] : memref<32x8xbf16, #tpu.memory_space<vmem>>, vector<32x8xbf16>
    %387 = arith.truncf %385 : vector<8x16xf32> to vector<8x16xbf16>
    %cst_87 = arith.constant dense<0.000000e+00> : vector<32x16xf32>
    %388 = tpu.matmul %386, %387, %cst_87 {dimension_numbers = #tpu.dot_dimension_numbers<[1], [0], [0], [1], [0, 0, 1, 1], [], []>} : vector<32x8xbf16>, vector<8x16xbf16>, vector<32x16xf32> -> vector<32x16xf32>
    %389 = arith.truncf %388 : vector<32x16xf32> to vector<32x16xbf16>
    %390 = vector.extract_strided_slice %389 {offsets = [0, 0], sizes = [8, 16], strides = [1, 1]} : vector<32x16xbf16> to vector<8x16xbf16>
    %c0_88 = arith.constant 0 : index
    %c0_89 = arith.constant 0 : index
    %c0_90 = arith.constant 0 : index
    %391 = vector.load %arg17[%c0_88, %c0_89, %c0_90] : memref<4x16x64xbf16, #tpu.memory_space<vmem>>, vector<1x16x64xbf16>
    %392 = vector.shape_cast %391 : vector<1x16x64xbf16> to vector<16x64xbf16>
    %cst_91 = arith.constant dense<0.000000e+00> : vector<8x64xf32>
    %393 = tpu.matmul %390, %392, %cst_91 {dimension_numbers = #tpu.dot_dimension_numbers<[1], [0], [0], [1], [0, 0, 1, 1], [], []>} : vector<8x16xbf16>, vector<16x64xbf16>, vector<8x64xf32> -> vector<8x64xf32>
    %394 = vector.extract_strided_slice %389 {offsets = [8, 0], sizes = [8, 16], strides = [1, 1]} : vector<32x16xbf16> to vector<8x16xbf16>
    %c1 = arith.constant 1 : index
    %c0_92 = arith.constant 0 : index
    %c0_93 = arith.constant 0 : index
    %395 = vector.load %arg17[%c1, %c0_92, %c0_93] : memref<4x16x64xbf16, #tpu.memory_space<vmem>>, vector<1x16x64xbf16>
    %396 = vector.shape_cast %395 : vector<1x16x64xbf16> to vector<16x64xbf16>
    %cst_94 = arith.constant dense<0.000000e+00> : vector<8x64xf32>
    %397 = tpu.matmul %394, %396, %cst_94 {dimension_numbers = #tpu.dot_dimension_numbers<[1], [0], [0], [1], [0, 0, 1, 1], [], []>} : vector<8x16xbf16>, vector<16x64xbf16>, vector<8x64xf32> -> vector<8x64xf32>
    %398 = arith.addf %393, %397 : vector<8x64xf32>
    %399 = vector.extract_strided_slice %389 {offsets = [16, 0], sizes = [8, 16], strides = [1, 1]} : vector<32x16xbf16> to vector<8x16xbf16>
    %c2 = arith.constant 2 : index
    %c0_95 = arith.constant 0 : index
    %c0_96 = arith.constant 0 : index
    %400 = vector.load %arg17[%c2, %c0_95, %c0_96] : memref<4x16x64xbf16, #tpu.memory_space<vmem>>, vector<1x16x64xbf16>
    %401 = vector.shape_cast %400 : vector<1x16x64xbf16> to vector<16x64xbf16>
    %cst_97 = arith.constant dense<0.000000e+00> : vector<8x64xf32>
    %402 = tpu.matmul %399, %401, %cst_97 {dimension_numbers = #tpu.dot_dimension_numbers<[1], [0], [0], [1], [0, 0, 1, 1], [], []>} : vector<8x16xbf16>, vector<16x64xbf16>, vector<8x64xf32> -> vector<8x64xf32>
    %403 = arith.addf %398, %402 : vector<8x64xf32>
    %404 = vector.extract_strided_slice %389 {offsets = [24, 0], sizes = [8, 16], strides = [1, 1]} : vector<32x16xbf16> to vector<8x16xbf16>
    %c3 = arith.constant 3 : index
    %c0_98 = arith.constant 0 : index
    %c0_99 = arith.constant 0 : index
    %405 = vector.load %arg17[%c3, %c0_98, %c0_99] : memref<4x16x64xbf16, #tpu.memory_space<vmem>>, vector<1x16x64xbf16>
    %406 = vector.shape_cast %405 : vector<1x16x64xbf16> to vector<16x64xbf16>
    %cst_100 = arith.constant dense<0.000000e+00> : vector<8x64xf32>
    %407 = tpu.matmul %404, %406, %cst_100 {dimension_numbers = #tpu.dot_dimension_numbers<[1], [0], [0], [1], [0, 0, 1, 1], [], []>} : vector<8x16xbf16>, vector<16x64xbf16>, vector<8x64xf32> -> vector<8x64xf32>
    %408 = arith.addf %403, %407 : vector<8x64xf32>
    %409 = tpu.concatenate %408, %240 in 0 : vector<8x64xf32>, vector<8x64xf32> -> vector<16x64xf32>
    %410 = tpu.iota {dimensions = array<i32: 1>} : vector<1x64xi32>
    %c7_i32_101 = arith.constant 7 : i32
    %411 = vector.broadcast %c7_i32_101 : i32 to vector<1x64xi32>
    %412 = arith.andi %410, %411 : vector<1x64xi32>
    %c3_i32_102 = arith.constant 3 : i32
    %413 = vector.broadcast %c3_i32_102 : i32 to vector<1x64xi32>
    %414 = arith.shrsi %410, %413 : vector<1x64xi32>
    %c0_i32_103 = arith.constant 0 : i32
    %415 = vector.broadcast %c0_i32_103 : i32 to vector<1x64xi32>
    %416 = arith.cmpi eq, %412, %415 : vector<1x64xi32>
    %c7_i32_104 = arith.constant 7 : i32
    %417 = vector.broadcast %c7_i32_104 : i32 to vector<1x64xi32>
    %418 = arith.cmpi eq, %412, %417 : vector<1x64xi32>
    %c0_i32_105 = arith.constant 0 : i32
    %419 = vector.broadcast %c0_i32_105 : i32 to vector<1x64xi32>
    %420 = arith.cmpi eq, %414, %419 : vector<1x64xi32>
    %c7_i32_106 = arith.constant 7 : i32
    %421 = vector.broadcast %c7_i32_106 : i32 to vector<1x64xi32>
    %422 = arith.cmpi eq, %414, %421 : vector<1x64xi32>
    %423 = vector.extract_strided_slice %409 {offsets = [0, 63], sizes = [16, 1], strides = [1, 1]} : vector<16x64xf32> to vector<16x1xf32>
    %424 = vector.extract_strided_slice %409 {offsets = [0, 0], sizes = [16, 63], strides = [1, 1]} : vector<16x64xf32> to vector<16x63xf32>
    %425 = tpu.concatenate %423, %424 in 1 : vector<16x1xf32>, vector<16x63xf32> -> vector<16x64xf32>
    %426 = vector.shape_cast %416 : vector<1x64xi1> to vector<1x64xi1>
    %427 = vector.broadcast %426 : vector<1x64xi1> to vector<16x64xi1>
    %428 = arith.select %427, %409, %425 : vector<16x64xi1>, vector<16x64xf32>
    %429 = vector.extract_strided_slice %409 {offsets = [0, 1], sizes = [16, 63], strides = [1, 1]} : vector<16x64xf32> to vector<16x63xf32>
    %430 = vector.extract_strided_slice %409 {offsets = [0, 0], sizes = [16, 1], strides = [1, 1]} : vector<16x64xf32> to vector<16x1xf32>
    %431 = tpu.concatenate %429, %430 in 1 : vector<16x63xf32>, vector<16x1xf32> -> vector<16x64xf32>
    %432 = vector.shape_cast %418 : vector<1x64xi1> to vector<1x64xi1>
    %433 = vector.broadcast %432 : vector<1x64xi1> to vector<16x64xi1>
    %434 = arith.select %433, %409, %431 : vector<16x64xi1>, vector<16x64xf32>
    %435 = vector.extract_strided_slice %428 {offsets = [0, 56], sizes = [16, 8], strides = [1, 1]} : vector<16x64xf32> to vector<16x8xf32>
    %436 = vector.extract_strided_slice %428 {offsets = [0, 0], sizes = [16, 56], strides = [1, 1]} : vector<16x64xf32> to vector<16x56xf32>
    %437 = tpu.concatenate %435, %436 in 1 : vector<16x8xf32>, vector<16x56xf32> -> vector<16x64xf32>
    %438 = vector.shape_cast %420 : vector<1x64xi1> to vector<1x64xi1>
    %439 = vector.broadcast %438 : vector<1x64xi1> to vector<16x64xi1>
    %440 = arith.select %439, %428, %437 : vector<16x64xi1>, vector<16x64xf32>
    %441 = vector.extract_strided_slice %409 {offsets = [0, 56], sizes = [16, 8], strides = [1, 1]} : vector<16x64xf32> to vector<16x8xf32>
    %442 = vector.extract_strided_slice %409 {offsets = [0, 0], sizes = [16, 56], strides = [1, 1]} : vector<16x64xf32> to vector<16x56xf32>
    %443 = tpu.concatenate %441, %442 in 1 : vector<16x8xf32>, vector<16x56xf32> -> vector<16x64xf32>
    %444 = vector.shape_cast %420 : vector<1x64xi1> to vector<1x64xi1>
    %445 = vector.broadcast %444 : vector<1x64xi1> to vector<16x64xi1>
    %446 = arith.select %445, %409, %443 : vector<16x64xi1>, vector<16x64xf32>
    %447 = vector.extract_strided_slice %434 {offsets = [0, 56], sizes = [16, 8], strides = [1, 1]} : vector<16x64xf32> to vector<16x8xf32>
    %448 = vector.extract_strided_slice %434 {offsets = [0, 0], sizes = [16, 56], strides = [1, 1]} : vector<16x64xf32> to vector<16x56xf32>
    %449 = tpu.concatenate %447, %448 in 1 : vector<16x8xf32>, vector<16x56xf32> -> vector<16x64xf32>
    %450 = vector.shape_cast %420 : vector<1x64xi1> to vector<1x64xi1>
    %451 = vector.broadcast %450 : vector<1x64xi1> to vector<16x64xi1>
    %452 = arith.select %451, %434, %449 : vector<16x64xi1>, vector<16x64xf32>
    %453 = vector.extract_strided_slice %428 {offsets = [0, 8], sizes = [16, 56], strides = [1, 1]} : vector<16x64xf32> to vector<16x56xf32>
    %454 = vector.extract_strided_slice %428 {offsets = [0, 0], sizes = [16, 8], strides = [1, 1]} : vector<16x64xf32> to vector<16x8xf32>
    %455 = tpu.concatenate %453, %454 in 1 : vector<16x56xf32>, vector<16x8xf32> -> vector<16x64xf32>
    %456 = vector.shape_cast %422 : vector<1x64xi1> to vector<1x64xi1>
    %457 = vector.broadcast %456 : vector<1x64xi1> to vector<16x64xi1>
    %458 = arith.select %457, %428, %455 : vector<16x64xi1>, vector<16x64xf32>
    %459 = vector.extract_strided_slice %409 {offsets = [0, 8], sizes = [16, 56], strides = [1, 1]} : vector<16x64xf32> to vector<16x56xf32>
    %460 = vector.extract_strided_slice %409 {offsets = [0, 0], sizes = [16, 8], strides = [1, 1]} : vector<16x64xf32> to vector<16x8xf32>
    %461 = tpu.concatenate %459, %460 in 1 : vector<16x56xf32>, vector<16x8xf32> -> vector<16x64xf32>
    %462 = vector.shape_cast %422 : vector<1x64xi1> to vector<1x64xi1>
    %463 = vector.broadcast %462 : vector<1x64xi1> to vector<16x64xi1>
    %464 = arith.select %463, %409, %461 : vector<16x64xi1>, vector<16x64xf32>
    %465 = vector.extract_strided_slice %434 {offsets = [0, 8], sizes = [16, 56], strides = [1, 1]} : vector<16x64xf32> to vector<16x56xf32>
    %466 = vector.extract_strided_slice %434 {offsets = [0, 0], sizes = [16, 8], strides = [1, 1]} : vector<16x64xf32> to vector<16x8xf32>
    %467 = tpu.concatenate %465, %466 in 1 : vector<16x56xf32>, vector<16x8xf32> -> vector<16x64xf32>
    %468 = vector.shape_cast %422 : vector<1x64xi1> to vector<1x64xi1>
    %469 = vector.broadcast %468 : vector<1x64xi1> to vector<16x64xi1>
    %470 = arith.select %469, %434, %467 : vector<16x64xi1>, vector<16x64xf32>
    %471 = tpu.concatenate %440, %446, %452, %428, %409, %434, %458, %464, %470 in 0 : vector<16x64xf32>, vector<16x64xf32>, vector<16x64xf32>, vector<16x64xf32>, vector<16x64xf32>, vector<16x64xf32>, vector<16x64xf32>, vector<16x64xf32>, vector<16x64xf32> -> vector<144x64xf32>
    %472 = arith.truncf %471 : vector<144x64xf32> to vector<144x64xbf16>
    %c0_107 = arith.constant 0 : index
    %c0_108 = arith.constant 0 : index
    %473 = vector.load %arg18[%c0_107, %c0_108] : memref<8x144xbf16, #tpu.memory_space<vmem>>, vector<8x144xbf16>
    %cst_109 = arith.constant dense<0.000000e+00> : vector<8x64xf32>
    %474 = tpu.matmul %473, %472, %cst_109 {dimension_numbers = #tpu.dot_dimension_numbers<[1], [0], [0], [1], [0, 0, 1, 1], [], []>} : vector<8x144xbf16>, vector<144x64xbf16>, vector<8x64xf32> -> vector<8x64xf32>
    %c0_110 = arith.constant 0 : index
    %c0_111 = arith.constant 0 : index
    %475 = vector.load %arg19[%c0_110, %c0_111] : memref<8x1xf32, #tpu.memory_space<vmem>>, vector<8x1xf32>
    %476 = vector.broadcast %475 : vector<8x1xf32> to vector<8x64xf32>
    %477 = arith.addf %474, %476 : vector<8x64xf32>
    %cst_112 = arith.constant 0.000000e+00 : f32
    %478 = vector.broadcast %cst_112 : f32 to vector<8x64xf32>
    %479 = arith.cmpf ogt, %477, %478 : vector<8x64xf32>
    %480 = math.exp %477 : vector<8x64xf32>
    %cst_113 = arith.constant 1.000000e+00 : f32
    %481 = vector.broadcast %cst_113 : f32 to vector<8x64xf32>
    %482 = arith.subf %480, %481 : vector<8x64xf32>
    %483 = arith.select %479, %477, %482 : vector<8x64xi1>, vector<8x64xf32>
    %484 = tpu.iota {dimensions = array<i32: 1>} : vector<1x64xi32>
    %c7_i32_114 = arith.constant 7 : i32
    %485 = vector.broadcast %c7_i32_114 : i32 to vector<1x64xi32>
    %486 = arith.andi %484, %485 : vector<1x64xi32>
    %c3_i32_115 = arith.constant 3 : i32
    %487 = vector.broadcast %c3_i32_115 : i32 to vector<1x64xi32>
    %488 = arith.shrsi %484, %487 : vector<1x64xi32>
    %c0_i32_116 = arith.constant 0 : i32
    %489 = vector.broadcast %c0_i32_116 : i32 to vector<1x64xi32>
    %490 = arith.cmpi eq, %486, %489 : vector<1x64xi32>
    %c7_i32_117 = arith.constant 7 : i32
    %491 = vector.broadcast %c7_i32_117 : i32 to vector<1x64xi32>
    %492 = arith.cmpi eq, %486, %491 : vector<1x64xi32>
    %c0_i32_118 = arith.constant 0 : i32
    %493 = vector.broadcast %c0_i32_118 : i32 to vector<1x64xi32>
    %494 = arith.cmpi eq, %488, %493 : vector<1x64xi32>
    %c7_i32_119 = arith.constant 7 : i32
    %495 = vector.broadcast %c7_i32_119 : i32 to vector<1x64xi32>
    %496 = arith.cmpi eq, %488, %495 : vector<1x64xi32>
    %497 = vector.extract_strided_slice %483 {offsets = [0, 63], sizes = [8, 1], strides = [1, 1]} : vector<8x64xf32> to vector<8x1xf32>
    %498 = vector.extract_strided_slice %483 {offsets = [0, 0], sizes = [8, 63], strides = [1, 1]} : vector<8x64xf32> to vector<8x63xf32>
    %499 = tpu.concatenate %497, %498 in 1 : vector<8x1xf32>, vector<8x63xf32> -> vector<8x64xf32>
    %500 = vector.shape_cast %490 : vector<1x64xi1> to vector<1x64xi1>
    %501 = vector.broadcast %500 : vector<1x64xi1> to vector<8x64xi1>
    %502 = arith.select %501, %483, %499 : vector<8x64xi1>, vector<8x64xf32>
    %503 = vector.extract_strided_slice %483 {offsets = [0, 1], sizes = [8, 63], strides = [1, 1]} : vector<8x64xf32> to vector<8x63xf32>
    %504 = vector.extract_strided_slice %483 {offsets = [0, 0], sizes = [8, 1], strides = [1, 1]} : vector<8x64xf32> to vector<8x1xf32>
    %505 = tpu.concatenate %503, %504 in 1 : vector<8x63xf32>, vector<8x1xf32> -> vector<8x64xf32>
    %506 = vector.shape_cast %492 : vector<1x64xi1> to vector<1x64xi1>
    %507 = vector.broadcast %506 : vector<1x64xi1> to vector<8x64xi1>
    %508 = arith.select %507, %483, %505 : vector<8x64xi1>, vector<8x64xf32>
    %509 = vector.extract_strided_slice %502 {offsets = [0, 56], sizes = [8, 8], strides = [1, 1]} : vector<8x64xf32> to vector<8x8xf32>
    %510 = vector.extract_strided_slice %502 {offsets = [0, 0], sizes = [8, 56], strides = [1, 1]} : vector<8x64xf32> to vector<8x56xf32>
    %511 = tpu.concatenate %509, %510 in 1 : vector<8x8xf32>, vector<8x56xf32> -> vector<8x64xf32>
    %512 = vector.shape_cast %494 : vector<1x64xi1> to vector<1x64xi1>
    %513 = vector.broadcast %512 : vector<1x64xi1> to vector<8x64xi1>
    %514 = arith.select %513, %502, %511 : vector<8x64xi1>, vector<8x64xf32>
    %515 = vector.extract_strided_slice %483 {offsets = [0, 56], sizes = [8, 8], strides = [1, 1]} : vector<8x64xf32> to vector<8x8xf32>
    %516 = vector.extract_strided_slice %483 {offsets = [0, 0], sizes = [8, 56], strides = [1, 1]} : vector<8x64xf32> to vector<8x56xf32>
    %517 = tpu.concatenate %515, %516 in 1 : vector<8x8xf32>, vector<8x56xf32> -> vector<8x64xf32>
    %518 = vector.shape_cast %494 : vector<1x64xi1> to vector<1x64xi1>
    %519 = vector.broadcast %518 : vector<1x64xi1> to vector<8x64xi1>
    %520 = arith.select %519, %483, %517 : vector<8x64xi1>, vector<8x64xf32>
    %521 = vector.extract_strided_slice %508 {offsets = [0, 56], sizes = [8, 8], strides = [1, 1]} : vector<8x64xf32> to vector<8x8xf32>
    %522 = vector.extract_strided_slice %508 {offsets = [0, 0], sizes = [8, 56], strides = [1, 1]} : vector<8x64xf32> to vector<8x56xf32>
    %523 = tpu.concatenate %521, %522 in 1 : vector<8x8xf32>, vector<8x56xf32> -> vector<8x64xf32>
    %524 = vector.shape_cast %494 : vector<1x64xi1> to vector<1x64xi1>
    %525 = vector.broadcast %524 : vector<1x64xi1> to vector<8x64xi1>
    %526 = arith.select %525, %508, %523 : vector<8x64xi1>, vector<8x64xf32>
    %527 = vector.extract_strided_slice %502 {offsets = [0, 8], sizes = [8, 56], strides = [1, 1]} : vector<8x64xf32> to vector<8x56xf32>
    %528 = vector.extract_strided_slice %502 {offsets = [0, 0], sizes = [8, 8], strides = [1, 1]} : vector<8x64xf32> to vector<8x8xf32>
    %529 = tpu.concatenate %527, %528 in 1 : vector<8x56xf32>, vector<8x8xf32> -> vector<8x64xf32>
    %530 = vector.shape_cast %496 : vector<1x64xi1> to vector<1x64xi1>
    %531 = vector.broadcast %530 : vector<1x64xi1> to vector<8x64xi1>
    %532 = arith.select %531, %502, %529 : vector<8x64xi1>, vector<8x64xf32>
    %533 = vector.extract_strided_slice %483 {offsets = [0, 8], sizes = [8, 56], strides = [1, 1]} : vector<8x64xf32> to vector<8x56xf32>
    %534 = vector.extract_strided_slice %483 {offsets = [0, 0], sizes = [8, 8], strides = [1, 1]} : vector<8x64xf32> to vector<8x8xf32>
    %535 = tpu.concatenate %533, %534 in 1 : vector<8x56xf32>, vector<8x8xf32> -> vector<8x64xf32>
    %536 = vector.shape_cast %496 : vector<1x64xi1> to vector<1x64xi1>
    %537 = vector.broadcast %536 : vector<1x64xi1> to vector<8x64xi1>
    %538 = arith.select %537, %483, %535 : vector<8x64xi1>, vector<8x64xf32>
    %539 = vector.extract_strided_slice %508 {offsets = [0, 8], sizes = [8, 56], strides = [1, 1]} : vector<8x64xf32> to vector<8x56xf32>
    %540 = vector.extract_strided_slice %508 {offsets = [0, 0], sizes = [8, 8], strides = [1, 1]} : vector<8x64xf32> to vector<8x8xf32>
    %541 = tpu.concatenate %539, %540 in 1 : vector<8x56xf32>, vector<8x8xf32> -> vector<8x64xf32>
    %542 = vector.shape_cast %496 : vector<1x64xi1> to vector<1x64xi1>
    %543 = vector.broadcast %542 : vector<1x64xi1> to vector<8x64xi1>
    %544 = arith.select %543, %508, %541 : vector<8x64xi1>, vector<8x64xf32>
    %545 = tpu.concatenate %514, %520, %526, %502, %483, %508, %532, %538, %544 in 0 : vector<8x64xf32>, vector<8x64xf32>, vector<8x64xf32>, vector<8x64xf32>, vector<8x64xf32>, vector<8x64xf32>, vector<8x64xf32>, vector<8x64xf32>, vector<8x64xf32> -> vector<72x64xf32>
    %546 = arith.truncf %545 : vector<72x64xf32> to vector<72x64xbf16>
    %c0_120 = arith.constant 0 : index
    %c0_121 = arith.constant 0 : index
    %547 = vector.load %arg20[%c0_120, %c0_121] : memref<4x72xbf16, #tpu.memory_space<vmem>>, vector<4x72xbf16>
    %cst_122 = arith.constant dense<0.000000e+00> : vector<4x64xf32>
    %548 = tpu.matmul %547, %546, %cst_122 {dimension_numbers = #tpu.dot_dimension_numbers<[1], [0], [0], [1], [0, 0, 1, 1], [], []>} : vector<4x72xbf16>, vector<72x64xbf16>, vector<4x64xf32> -> vector<4x64xf32>
    %c0_123 = arith.constant 0 : index
    %c0_124 = arith.constant 0 : index
    %549 = vector.load %arg21[%c0_123, %c0_124] : memref<4x1xf32, #tpu.memory_space<vmem>>, vector<4x1xf32>
    %550 = vector.broadcast %549 : vector<4x1xf32> to vector<4x64xf32>
    %551 = arith.addf %548, %550 : vector<4x64xf32>
    %c0_125 = arith.constant 0 : index
    %c0_126 = arith.constant 0 : index
    %552 = vector.load %arg22[%c0_125, %c0_126] : memref<16x4xbf16, #tpu.memory_space<vmem>>, vector<16x4xbf16>
    %553 = arith.truncf %551 : vector<4x64xf32> to vector<4x64xbf16>
    %cst_127 = arith.constant dense<0.000000e+00> : vector<16x64xf32>
    %554 = tpu.matmul %552, %553, %cst_127 {dimension_numbers = #tpu.dot_dimension_numbers<[1], [0], [0], [1], [0, 0, 1, 1], [], []>} : vector<16x4xbf16>, vector<4x64xbf16>, vector<16x64xf32> -> vector<16x64xf32>
    %555 = arith.truncf %554 : vector<16x64xf32> to vector<16x64xbf16>
    %556 = vector.extract_strided_slice %555 {offsets = [0, 0], sizes = [4, 64], strides = [1, 1]} : vector<16x64xbf16> to vector<4x64xbf16>
    %c0_128 = arith.constant 0 : index
    %c0_129 = arith.constant 0 : index
    %c0_130 = arith.constant 0 : index
    %557 = vector.load %arg23[%c0_128, %c0_129, %c0_130] : memref<4x64x256xbf16, #tpu.memory_space<vmem>>, vector<1x64x256xbf16>
    %558 = vector.shape_cast %557 : vector<1x64x256xbf16> to vector<64x256xbf16>
    %cst_131 = arith.constant dense<0.000000e+00> : vector<4x256xf32>
    %559 = tpu.matmul %556, %558, %cst_131 {dimension_numbers = #tpu.dot_dimension_numbers<[1], [0], [0], [1], [0, 0, 1, 1], [], []>} : vector<4x64xbf16>, vector<64x256xbf16>, vector<4x256xf32> -> vector<4x256xf32>
    %560 = vector.extract_strided_slice %555 {offsets = [4, 0], sizes = [4, 64], strides = [1, 1]} : vector<16x64xbf16> to vector<4x64xbf16>
    %c1_132 = arith.constant 1 : index
    %c0_133 = arith.constant 0 : index
    %c0_134 = arith.constant 0 : index
    %561 = vector.load %arg23[%c1_132, %c0_133, %c0_134] : memref<4x64x256xbf16, #tpu.memory_space<vmem>>, vector<1x64x256xbf16>
    %562 = vector.shape_cast %561 : vector<1x64x256xbf16> to vector<64x256xbf16>
    %cst_135 = arith.constant dense<0.000000e+00> : vector<4x256xf32>
    %563 = tpu.matmul %560, %562, %cst_135 {dimension_numbers = #tpu.dot_dimension_numbers<[1], [0], [0], [1], [0, 0, 1, 1], [], []>} : vector<4x64xbf16>, vector<64x256xbf16>, vector<4x256xf32> -> vector<4x256xf32>
    %564 = arith.addf %559, %563 : vector<4x256xf32>
    %565 = vector.extract_strided_slice %555 {offsets = [8, 0], sizes = [4, 64], strides = [1, 1]} : vector<16x64xbf16> to vector<4x64xbf16>
    %c2_136 = arith.constant 2 : index
    %c0_137 = arith.constant 0 : index
    %c0_138 = arith.constant 0 : index
    %566 = vector.load %arg23[%c2_136, %c0_137, %c0_138] : memref<4x64x256xbf16, #tpu.memory_space<vmem>>, vector<1x64x256xbf16>
    %567 = vector.shape_cast %566 : vector<1x64x256xbf16> to vector<64x256xbf16>
    %cst_139 = arith.constant dense<0.000000e+00> : vector<4x256xf32>
    %568 = tpu.matmul %565, %567, %cst_139 {dimension_numbers = #tpu.dot_dimension_numbers<[1], [0], [0], [1], [0, 0, 1, 1], [], []>} : vector<4x64xbf16>, vector<64x256xbf16>, vector<4x256xf32> -> vector<4x256xf32>
    %569 = arith.addf %564, %568 : vector<4x256xf32>
    %570 = vector.extract_strided_slice %555 {offsets = [12, 0], sizes = [4, 64], strides = [1, 1]} : vector<16x64xbf16> to vector<4x64xbf16>
    %c3_140 = arith.constant 3 : index
    %c0_141 = arith.constant 0 : index
    %c0_142 = arith.constant 0 : index
    %571 = vector.load %arg23[%c3_140, %c0_141, %c0_142] : memref<4x64x256xbf16, #tpu.memory_space<vmem>>, vector<1x64x256xbf16>
    %572 = vector.shape_cast %571 : vector<1x64x256xbf16> to vector<64x256xbf16>
    %cst_143 = arith.constant dense<0.000000e+00> : vector<4x256xf32>
    %573 = tpu.matmul %570, %572, %cst_143 {dimension_numbers = #tpu.dot_dimension_numbers<[1], [0], [0], [1], [0, 0, 1, 1], [], []>} : vector<4x64xbf16>, vector<64x256xbf16>, vector<4x256xf32> -> vector<4x256xf32>
    %574 = arith.addf %569, %573 : vector<4x256xf32>
    %575 = tpu.concatenate %574, %95 in 0 : vector<4x256xf32>, vector<4x256xf32> -> vector<8x256xf32>
    %576 = tpu.iota {dimensions = array<i32: 1>} : vector<1x256xi32>
    %c15_i32_144 = arith.constant 15 : i32
    %577 = vector.broadcast %c15_i32_144 : i32 to vector<1x256xi32>
    %578 = arith.andi %576, %577 : vector<1x256xi32>
    %c4_i32_145 = arith.constant 4 : i32
    %579 = vector.broadcast %c4_i32_145 : i32 to vector<1x256xi32>
    %580 = arith.shrsi %576, %579 : vector<1x256xi32>
    %c0_i32_146 = arith.constant 0 : i32
    %581 = vector.broadcast %c0_i32_146 : i32 to vector<1x256xi32>
    %582 = arith.cmpi eq, %578, %581 : vector<1x256xi32>
    %c15_i32_147 = arith.constant 15 : i32
    %583 = vector.broadcast %c15_i32_147 : i32 to vector<1x256xi32>
    %584 = arith.cmpi eq, %578, %583 : vector<1x256xi32>
    %c0_i32_148 = arith.constant 0 : i32
    %585 = vector.broadcast %c0_i32_148 : i32 to vector<1x256xi32>
    %586 = arith.cmpi eq, %580, %585 : vector<1x256xi32>
    %c15_i32_149 = arith.constant 15 : i32
    %587 = vector.broadcast %c15_i32_149 : i32 to vector<1x256xi32>
    %588 = arith.cmpi eq, %580, %587 : vector<1x256xi32>
    %c1_i32_150 = arith.constant 1 : i32
    %589 = tpu.dynamic_rotate %575 by %c1_i32_150 dim 1 : vector<8x256xf32>, i32 -> vector<8x256xf32>
    %590 = vector.shape_cast %582 : vector<1x256xi1> to vector<1x256xi1>
    %591 = vector.broadcast %590 : vector<1x256xi1> to vector<8x256xi1>
    %592 = arith.select %591, %575, %589 : vector<8x256xi1>, vector<8x256xf32>
    %c255_i32_151 = arith.constant 255 : i32
    %593 = tpu.dynamic_rotate %575 by %c255_i32_151 dim 1 : vector<8x256xf32>, i32 -> vector<8x256xf32>
    %594 = vector.shape_cast %584 : vector<1x256xi1> to vector<1x256xi1>
    %595 = vector.broadcast %594 : vector<1x256xi1> to vector<8x256xi1>
    %596 = arith.select %595, %575, %593 : vector<8x256xi1>, vector<8x256xf32>
    %c16_i32_152 = arith.constant 16 : i32
    %597 = tpu.dynamic_rotate %592 by %c16_i32_152 dim 1 : vector<8x256xf32>, i32 -> vector<8x256xf32>
    %598 = vector.shape_cast %586 : vector<1x256xi1> to vector<1x256xi1>
    %599 = vector.broadcast %598 : vector<1x256xi1> to vector<8x256xi1>
    %600 = arith.select %599, %592, %597 : vector<8x256xi1>, vector<8x256xf32>
    %c16_i32_153 = arith.constant 16 : i32
    %601 = tpu.dynamic_rotate %575 by %c16_i32_153 dim 1 : vector<8x256xf32>, i32 -> vector<8x256xf32>
    %602 = vector.shape_cast %586 : vector<1x256xi1> to vector<1x256xi1>
    %603 = vector.broadcast %602 : vector<1x256xi1> to vector<8x256xi1>
    %604 = arith.select %603, %575, %601 : vector<8x256xi1>, vector<8x256xf32>
    %c16_i32_154 = arith.constant 16 : i32
    %605 = tpu.dynamic_rotate %596 by %c16_i32_154 dim 1 : vector<8x256xf32>, i32 -> vector<8x256xf32>
    %606 = vector.shape_cast %586 : vector<1x256xi1> to vector<1x256xi1>
    %607 = vector.broadcast %606 : vector<1x256xi1> to vector<8x256xi1>
    %608 = arith.select %607, %596, %605 : vector<8x256xi1>, vector<8x256xf32>
    %c240_i32_155 = arith.constant 240 : i32
    %609 = tpu.dynamic_rotate %592 by %c240_i32_155 dim 1 : vector<8x256xf32>, i32 -> vector<8x256xf32>
    %610 = vector.shape_cast %588 : vector<1x256xi1> to vector<1x256xi1>
    %611 = vector.broadcast %610 : vector<1x256xi1> to vector<8x256xi1>
    %612 = arith.select %611, %592, %609 : vector<8x256xi1>, vector<8x256xf32>
    %c240_i32_156 = arith.constant 240 : i32
    %613 = tpu.dynamic_rotate %575 by %c240_i32_156 dim 1 : vector<8x256xf32>, i32 -> vector<8x256xf32>
    %614 = vector.shape_cast %588 : vector<1x256xi1> to vector<1x256xi1>
    %615 = vector.broadcast %614 : vector<1x256xi1> to vector<8x256xi1>
    %616 = arith.select %615, %575, %613 : vector<8x256xi1>, vector<8x256xf32>
    %c240_i32_157 = arith.constant 240 : i32
    %617 = tpu.dynamic_rotate %596 by %c240_i32_157 dim 1 : vector<8x256xf32>, i32 -> vector<8x256xf32>
    %618 = vector.shape_cast %588 : vector<1x256xi1> to vector<1x256xi1>
    %619 = vector.broadcast %618 : vector<1x256xi1> to vector<8x256xi1>
    %620 = arith.select %619, %596, %617 : vector<8x256xi1>, vector<8x256xf32>
    %621 = tpu.concatenate %600, %604, %608, %592, %575, %596, %612, %616, %620 in 0 : vector<8x256xf32>, vector<8x256xf32>, vector<8x256xf32>, vector<8x256xf32>, vector<8x256xf32>, vector<8x256xf32>, vector<8x256xf32>, vector<8x256xf32>, vector<8x256xf32> -> vector<72x256xf32>
    %622 = arith.truncf %621 : vector<72x256xf32> to vector<72x256xbf16>
    %c0_158 = arith.constant 0 : index
    %c0_159 = arith.constant 0 : index
    %623 = vector.load %arg24[%c0_158, %c0_159] : memref<4x72xbf16, #tpu.memory_space<vmem>>, vector<4x72xbf16>
    %cst_160 = arith.constant dense<0.000000e+00> : vector<4x256xf32>
    %624 = tpu.matmul %623, %622, %cst_160 {dimension_numbers = #tpu.dot_dimension_numbers<[1], [0], [0], [1], [0, 0, 1, 1], [], []>} : vector<4x72xbf16>, vector<72x256xbf16>, vector<4x256xf32> -> vector<4x256xf32>
    %c0_161 = arith.constant 0 : index
    %c0_162 = arith.constant 0 : index
    %625 = vector.load %arg25[%c0_161, %c0_162] : memref<4x1xf32, #tpu.memory_space<vmem>>, vector<4x1xf32>
    %626 = vector.broadcast %625 : vector<4x1xf32> to vector<4x256xf32>
    %627 = arith.addf %624, %626 : vector<4x256xf32>
    %cst_163 = arith.constant 0.000000e+00 : f32
    %628 = vector.broadcast %cst_163 : f32 to vector<4x256xf32>
    %629 = arith.cmpf ogt, %627, %628 : vector<4x256xf32>
    %630 = math.exp %627 : vector<4x256xf32>
    %cst_164 = arith.constant 1.000000e+00 : f32
    %631 = vector.broadcast %cst_164 : f32 to vector<4x256xf32>
    %632 = arith.subf %630, %631 : vector<4x256xf32>
    %633 = arith.select %629, %627, %632 : vector<4x256xi1>, vector<4x256xf32>
    %634 = tpu.iota {dimensions = array<i32: 1>} : vector<1x256xi32>
    %c15_i32_165 = arith.constant 15 : i32
    %635 = vector.broadcast %c15_i32_165 : i32 to vector<1x256xi32>
    %636 = arith.andi %634, %635 : vector<1x256xi32>
    %c4_i32_166 = arith.constant 4 : i32
    %637 = vector.broadcast %c4_i32_166 : i32 to vector<1x256xi32>
    %638 = arith.shrsi %634, %637 : vector<1x256xi32>
    %c0_i32_167 = arith.constant 0 : i32
    %639 = vector.broadcast %c0_i32_167 : i32 to vector<1x256xi32>
    %640 = arith.cmpi eq, %636, %639 : vector<1x256xi32>
    %c15_i32_168 = arith.constant 15 : i32
    %641 = vector.broadcast %c15_i32_168 : i32 to vector<1x256xi32>
    %642 = arith.cmpi eq, %636, %641 : vector<1x256xi32>
    %c0_i32_169 = arith.constant 0 : i32
    %643 = vector.broadcast %c0_i32_169 : i32 to vector<1x256xi32>
    %644 = arith.cmpi eq, %638, %643 : vector<1x256xi32>
    %c15_i32_170 = arith.constant 15 : i32
    %645 = vector.broadcast %c15_i32_170 : i32 to vector<1x256xi32>
    %646 = arith.cmpi eq, %638, %645 : vector<1x256xi32>
    %c1_i32_171 = arith.constant 1 : i32
    %647 = tpu.dynamic_rotate %633 by %c1_i32_171 dim 1 : vector<4x256xf32>, i32 -> vector<4x256xf32>
    %648 = vector.shape_cast %640 : vector<1x256xi1> to vector<1x256xi1>
    %649 = vector.broadcast %648 : vector<1x256xi1> to vector<4x256xi1>
    %650 = arith.select %649, %633, %647 : vector<4x256xi1>, vector<4x256xf32>
    %c255_i32_172 = arith.constant 255 : i32
    %651 = tpu.dynamic_rotate %633 by %c255_i32_172 dim 1 : vector<4x256xf32>, i32 -> vector<4x256xf32>
    %652 = vector.shape_cast %642 : vector<1x256xi1> to vector<1x256xi1>
    %653 = vector.broadcast %652 : vector<1x256xi1> to vector<4x256xi1>
    %654 = arith.select %653, %633, %651 : vector<4x256xi1>, vector<4x256xf32>
    %c16_i32_173 = arith.constant 16 : i32
    %655 = tpu.dynamic_rotate %650 by %c16_i32_173 dim 1 : vector<4x256xf32>, i32 -> vector<4x256xf32>
    %656 = vector.shape_cast %644 : vector<1x256xi1> to vector<1x256xi1>
    %657 = vector.broadcast %656 : vector<1x256xi1> to vector<4x256xi1>
    %658 = arith.select %657, %650, %655 : vector<4x256xi1>, vector<4x256xf32>
    %c16_i32_174 = arith.constant 16 : i32
    %659 = tpu.dynamic_rotate %633 by %c16_i32_174 dim 1 : vector<4x256xf32>, i32 -> vector<4x256xf32>
    %660 = vector.shape_cast %644 : vector<1x256xi1> to vector<1x256xi1>
    %661 = vector.broadcast %660 : vector<1x256xi1> to vector<4x256xi1>
    %662 = arith.select %661, %633, %659 : vector<4x256xi1>, vector<4x256xf32>
    %c16_i32_175 = arith.constant 16 : i32
    %663 = tpu.dynamic_rotate %654 by %c16_i32_175 dim 1 : vector<4x256xf32>, i32 -> vector<4x256xf32>
    %664 = vector.shape_cast %644 : vector<1x256xi1> to vector<1x256xi1>
    %665 = vector.broadcast %664 : vector<1x256xi1> to vector<4x256xi1>
    %666 = arith.select %665, %654, %663 : vector<4x256xi1>, vector<4x256xf32>
    %c240_i32_176 = arith.constant 240 : i32
    %667 = tpu.dynamic_rotate %650 by %c240_i32_176 dim 1 : vector<4x256xf32>, i32 -> vector<4x256xf32>
    %668 = vector.shape_cast %646 : vector<1x256xi1> to vector<1x256xi1>
    %669 = vector.broadcast %668 : vector<1x256xi1> to vector<4x256xi1>
    %670 = arith.select %669, %650, %667 : vector<4x256xi1>, vector<4x256xf32>
    %c240_i32_177 = arith.constant 240 : i32
    %671 = tpu.dynamic_rotate %633 by %c240_i32_177 dim 1 : vector<4x256xf32>, i32 -> vector<4x256xf32>
    %672 = vector.shape_cast %646 : vector<1x256xi1> to vector<1x256xi1>
    %673 = vector.broadcast %672 : vector<1x256xi1> to vector<4x256xi1>
    %674 = arith.select %673, %633, %671 : vector<4x256xi1>, vector<4x256xf32>
    %c240_i32_178 = arith.constant 240 : i32
    %675 = tpu.dynamic_rotate %654 by %c240_i32_178 dim 1 : vector<4x256xf32>, i32 -> vector<4x256xf32>
    %676 = vector.shape_cast %646 : vector<1x256xi1> to vector<1x256xi1>
    %677 = vector.broadcast %676 : vector<1x256xi1> to vector<4x256xi1>
    %678 = arith.select %677, %654, %675 : vector<4x256xi1>, vector<4x256xf32>
    %679 = tpu.concatenate %658, %662, %666, %650, %633, %654, %670, %674, %678 in 0 : vector<4x256xf32>, vector<4x256xf32>, vector<4x256xf32>, vector<4x256xf32>, vector<4x256xf32>, vector<4x256xf32>, vector<4x256xf32>, vector<4x256xf32>, vector<4x256xf32> -> vector<36x256xf32>
    %680 = arith.truncf %679 : vector<36x256xf32> to vector<36x256xbf16>
    %c0_179 = arith.constant 0 : index
    %c0_180 = arith.constant 0 : index
    %681 = vector.load %arg26[%c0_179, %c0_180] : memref<2x36xbf16, #tpu.memory_space<vmem>>, vector<2x36xbf16>
    %cst_181 = arith.constant dense<0.000000e+00> : vector<2x256xf32>
    %682 = tpu.matmul %681, %680, %cst_181 {dimension_numbers = #tpu.dot_dimension_numbers<[1], [0], [0], [1], [0, 0, 1, 1], [], []>} : vector<2x36xbf16>, vector<36x256xbf16>, vector<2x256xf32> -> vector<2x256xf32>
    %c0_182 = arith.constant 0 : index
    %c0_183 = arith.constant 0 : index
    %683 = vector.load %arg27[%c0_182, %c0_183] : memref<2x1xf32, #tpu.memory_space<vmem>>, vector<2x1xf32>
    %684 = vector.broadcast %683 : vector<2x1xf32> to vector<2x256xf32>
    %685 = arith.addf %682, %684 : vector<2x256xf32>
    %c0_184 = arith.constant 0 : index
    %c0_185 = arith.constant 0 : index
    %686 = vector.load %arg28[%c0_184, %c0_185] : memref<2x2xbf16, #tpu.memory_space<vmem>>, vector<2x2xbf16>
    %687 = arith.truncf %685 : vector<2x256xf32> to vector<2x256xbf16>
    %cst_186 = arith.constant dense<0.000000e+00> : vector<2x256xf32>
    %688 = tpu.matmul %686, %687, %cst_186 {dimension_numbers = #tpu.dot_dimension_numbers<[1], [0], [0], [1], [0, 0, 1, 1], [], []>} : vector<2x2xbf16>, vector<2x256xbf16>, vector<2x256xf32> -> vector<2x256xf32>
    %c0_187 = arith.constant 0 : index
    %c0_188 = arith.constant 0 : index
    %c0_189 = arith.constant 0 : index
    %689 = vector.load %arg29[%c0_187, %c0_188, %c0_189] : memref<1x2x256xf32, #tpu.memory_space<vmem>>, vector<1x2x256xf32>
    %690 = vector.shape_cast %689 : vector<1x2x256xf32> to vector<2x256xf32>
    %691 = vector.shape_cast %688 : vector<2x256xf32> to vector<1x2x256xf32>
    tpu.vector_store %arg29[%c0_187, %c0_188, %c0_189], %691 {strides = array<i32>} : memref<1x2x256xf32, #tpu.memory_space<vmem>>, vector<1x2x256xf32>,
    return
  }
  func.func @transform_0(%arg0: i32) -> (i32, i32, i32) {
    %c0_i32 = arith.constant 0 : i32
    %c0_i32_0 = arith.constant 0 : i32
    %c0_i32_1 = arith.constant 0 : i32
    return %arg0, %c0_i32, %c0_i32_0 : i32, i32, i32
  }
  func.func @transform_1(%arg0: i32) -> (i32, i32) {
    %c0_i32 = arith.constant 0 : i32
    %c0_i32_0 = arith.constant 0 : i32
    %c0_i32_1 = arith.constant 0 : i32
    return %c0_i32, %c0_i32_0 : i32, i32
  }
  func.func @transform_2(%arg0: i32) -> (i32, i32) {
    %c0_i32 = arith.constant 0 : i32
    %c0_i32_0 = arith.constant 0 : i32
    %c0_i32_1 = arith.constant 0 : i32
    return %c0_i32, %c0_i32_0 : i32, i32
  }
  func.func @transform_3(%arg0: i32) -> (i32, i32) {
    %c0_i32 = arith.constant 0 : i32
    %c0_i32_0 = arith.constant 0 : i32
    %c0_i32_1 = arith.constant 0 : i32
    return %c0_i32, %c0_i32_0 : i32, i32
  }
  func.func @transform_4(%arg0: i32) -> (i32, i32) {
    %c0_i32 = arith.constant 0 : i32
    %c0_i32_0 = arith.constant 0 : i32
    %c0_i32_1 = arith.constant 0 : i32
    return %c0_i32, %c0_i32_0 : i32, i32
  }
  func.func @transform_5(%arg0: i32) -> (i32, i32) {
    %c0_i32 = arith.constant 0 : i32
    %c0_i32_0 = arith.constant 0 : i32
    %c0_i32_1 = arith.constant 0 : i32
    return %c0_i32, %c0_i32_0 : i32, i32
  }
  func.func @transform_6(%arg0: i32) -> (i32, i32) {
    %c0_i32 = arith.constant 0 : i32
    %c0_i32_0 = arith.constant 0 : i32
    %c0_i32_1 = arith.constant 0 : i32
    return %c0_i32, %c0_i32_0 : i32, i32
  }
  func.func @transform_7(%arg0: i32) -> (i32, i32) {
    %c0_i32 = arith.constant 0 : i32
    %c0_i32_0 = arith.constant 0 : i32
    %c0_i32_1 = arith.constant 0 : i32
    return %c0_i32, %c0_i32_0 : i32, i32
  }
  func.func @transform_8(%arg0: i32) -> (i32, i32) {
    %c0_i32 = arith.constant 0 : i32
    %c0_i32_0 = arith.constant 0 : i32
    %c0_i32_1 = arith.constant 0 : i32
    return %c0_i32, %c0_i32_0 : i32, i32
  }
  func.func @transform_9(%arg0: i32) -> (i32, i32) {
    %c0_i32 = arith.constant 0 : i32
    %c0_i32_0 = arith.constant 0 : i32
    %c0_i32_1 = arith.constant 0 : i32
    return %c0_i32, %c0_i32_0 : i32, i32
  }
  func.func @transform_10(%arg0: i32) -> (i32, i32) {
    %c0_i32 = arith.constant 0 : i32
    %c0_i32_0 = arith.constant 0 : i32
    %c0_i32_1 = arith.constant 0 : i32
    return %c0_i32, %c0_i32_0 : i32, i32
  }
  func.func @transform_11(%arg0: i32) -> (i32, i32) {
    %c0_i32 = arith.constant 0 : i32
    %c0_i32_0 = arith.constant 0 : i32
    %c0_i32_1 = arith.constant 0 : i32
    return %c0_i32, %c0_i32_0 : i32, i32
  }
  func.func @transform_12(%arg0: i32) -> (i32, i32) {
    %c0_i32 = arith.constant 0 : i32
    %c0_i32_0 = arith.constant 0 : i32
    %c0_i32_1 = arith.constant 0 : i32
    return %c0_i32, %c0_i32_0 : i32, i32
  }
  func.func @transform_13(%arg0: i32) -> (i32, i32) {
    %c0_i32 = arith.constant 0 : i32
    %c0_i32_0 = arith.constant 0 : i32
    %c0_i32_1 = arith.constant 0 : i32
    return %c0_i32, %c0_i32_0 : i32, i32
  }
  func.func @transform_14(%arg0: i32) -> (i32, i32) {
    %c0_i32 = arith.constant 0 : i32
    %c0_i32_0 = arith.constant 0 : i32
    %c0_i32_1 = arith.constant 0 : i32
    return %c0_i32, %c0_i32_0 : i32, i32
  }
  func.func @transform_15(%arg0: i32) -> (i32, i32) {
    %c0_i32 = arith.constant 0 : i32
    %c0_i32_0 = arith.constant 0 : i32
    %c0_i32_1 = arith.constant 0 : i32
    return %c0_i32, %c0_i32_0 : i32, i32
  }
  func.func @transform_16(%arg0: i32) -> (i32, i32, i32) {
    %c0_i32 = arith.constant 0 : i32
    %c0_i32_0 = arith.constant 0 : i32
    %c0_i32_1 = arith.constant 0 : i32
    %c0_i32_2 = arith.constant 0 : i32
    return %c0_i32, %c0_i32_0, %c0_i32_1 : i32, i32, i32
  }
  func.func @transform_17(%arg0: i32) -> (i32, i32) {
    %c0_i32 = arith.constant 0 : i32
    %c0_i32_0 = arith.constant 0 : i32
    %c0_i32_1 = arith.constant 0 : i32
    return %c0_i32, %c0_i32_0 : i32, i32
  }
  func.func @transform_18(%arg0: i32) -> (i32, i32) {
    %c0_i32 = arith.constant 0 : i32
    %c0_i32_0 = arith.constant 0 : i32
    %c0_i32_1 = arith.constant 0 : i32
    return %c0_i32, %c0_i32_0 : i32, i32
  }
  func.func @transform_19(%arg0: i32) -> (i32, i32) {
    %c0_i32 = arith.constant 0 : i32
    %c0_i32_0 = arith.constant 0 : i32
    %c0_i32_1 = arith.constant 0 : i32
    return %c0_i32, %c0_i32_0 : i32, i32
  }
  func.func @transform_20(%arg0: i32) -> (i32, i32) {
    %c0_i32 = arith.constant 0 : i32
    %c0_i32_0 = arith.constant 0 : i32
    %c0_i32_1 = arith.constant 0 : i32
    return %c0_i32, %c0_i32_0 : i32, i32
  }
  func.func @transform_21(%arg0: i32) -> (i32, i32) {
    %c0_i32 = arith.constant 0 : i32
    %c0_i32_0 = arith.constant 0 : i32
    %c0_i32_1 = arith.constant 0 : i32
    return %c0_i32, %c0_i32_0 : i32, i32
  }
  func.func @transform_22(%arg0: i32) -> (i32, i32, i32) {
    %c0_i32 = arith.constant 0 : i32
    %c0_i32_0 = arith.constant 0 : i32
    %c0_i32_1 = arith.constant 0 : i32
    %c0_i32_2 = arith.constant 0 : i32
    return %c0_i32, %c0_i32_0, %c0_i32_1 : i32, i32, i32
  }
  func.func @transform_23(%arg0: i32) -> (i32, i32) {
    %c0_i32 = arith.constant 0 : i32
    %c0_i32_0 = arith.constant 0 : i32
    %c0_i32_1 = arith.constant 0 : i32
    return %c0_i32, %c0_i32_0 : i32, i32
  }
  func.func @transform_24(%arg0: i32) -> (i32, i32) {
    %c0_i32 = arith.constant 0 : i32
    %c0_i32_0 = arith.constant 0 : i32
    %c0_i32_1 = arith.constant 0 : i32
    return %c0_i32, %c0_i32_0 : i32, i32
  }
  func.func @transform_25(%arg0: i32) -> (i32, i32) {
    %c0_i32 = arith.constant 0 : i32
    %c0_i32_0 = arith.constant 0 : i32
    %c0_i32_1 = arith.constant 0 : i32
    return %c0_i32, %c0_i32_0 : i32, i32
  }
  func.func @transform_26(%arg0: i32) -> (i32, i32) {
    %c0_i32 = arith.constant 0 : i32
    %c0_i32_0 = arith.constant 0 : i32
    %c0_i32_1 = arith.constant 0 : i32
    return %c0_i32, %c0_i32_0 : i32, i32
  }
  func.func @transform_27(%arg0: i32) -> (i32, i32) {
    %c0_i32 = arith.constant 0 : i32
    %c0_i32_0 = arith.constant 0 : i32
    %c0_i32_1 = arith.constant 0 : i32
    return %c0_i32, %c0_i32_0 : i32, i32
  }
  func.func @transform_28(%arg0: i32) -> (i32, i32, i32) {
    %c0_i32 = arith.constant 0 : i32
    %c0_i32_0 = arith.constant 0 : i32
    %c0_i32_1 = arith.constant 0 : i32
    return %arg0, %c0_i32, %c0_i32_0 : i32, i32, i32
  }
}

</mosaic_0001>

<llo_original>
// kernel: unet_forward.1
$region0: #{unet_forward.1}
  #allocation0 [shape = 'u32[]', space=smem, size = 0x4, offset = 0x4, fixed_abs, tag = 'smem constant byte address 0x4 - core index']
  #allocation1 [shape = 'u32[144,128]{1,0:T(1,128)}', space=vmem, size = 0x12000, scoped, tag = 'internal scratch']
  %s0 = inlined_call_operand.vmem [shape: f32[2,1,256], index: 0, kind: input, shape index: {}]
  %s1 = inlined_call_operand.vmem [shape: bf16[4,9], index: 1, kind: input, shape index: {}]
  %s2 = inlined_call_operand.vmem [shape: f32[4,1], index: 2, kind: input, shape index: {}]
  %s3 = inlined_call_operand.vmem [shape: bf16[4,36], index: 3, kind: input, shape index: {}]
  %s4 = inlined_call_operand.vmem [shape: f32[4,1], index: 4, kind: input, shape index: {}]
  %s5 = inlined_call_operand.vmem [shape: bf16[8,36], index: 5, kind: input, shape index: {}]
  %s6 = inlined_call_operand.vmem [shape: f32[8,1], index: 6, kind: input, shape index: {}]
  %s7 = inlined_call_operand.vmem [shape: bf16[8,72], index: 7, kind: input, shape index: {}]
  %s8 = inlined_call_operand.vmem [shape: f32[8,1], index: 8, kind: input, shape index: {}]
  %s9 = inlined_call_operand.vmem [shape: bf16[16,72], index: 9, kind: input, shape index: {}]
  %s10 = inlined_call_operand.vmem [shape: f32[16,1], index: 10, kind: input, shape index: {}]
  %s11 = inlined_call_operand.vmem [shape: bf16[8,144], index: 11, kind: input, shape index: {}]
  %s12 = inlined_call_operand.vmem [shape: f32[8,1], index: 12, kind: input, shape index: {}]
  %s13 = inlined_call_operand.vmem [shape: bf16[256,64], index: 13, kind: input, shape index: {}]
  %s14 = inlined_call_operand.vmem [shape: bf16[64,16], index: 14, kind: input, shape index: {}]
  %s15 = inlined_call_operand.vmem [shape: bf16[32,8], index: 15, kind: input, shape index: {}]
  %s16 = inlined_call_operand.vmem [shape: bf16[4,16,64], index: 16, kind: input, shape index: {}]
  %s17 = inlined_call_operand.vmem [shape: bf16[8,144], index: 17, kind: input, shape index: {}]
  %s18 = inlined_call_operand.vmem [shape: f32[8,1], index: 18, kind: input, shape index: {}]
  %s19 = inlined_call_operand.vmem [shape: bf16[4,72], index: 19, kind: input, shape index: {}]
  %s20 = inlined_call_operand.vmem [shape: f32[4,1], index: 20, kind: input, shape index: {}]
  %s21 = inlined_call_operand.vmem [shape: bf16[16,4], index: 21, kind: input, shape index: {}]
  %s22 = inlined_call_operand.vmem [shape: bf16[4,64,256], index: 22, kind: input, shape index: {}]
  %s23 = inlined_call_operand.vmem [shape: bf16[4,72], index: 23, kind: input, shape index: {}]
  %s24 = inlined_call_operand.vmem [shape: f32[4,1], index: 24, kind: input, shape index: {}]
  %s25 = inlined_call_operand.vmem [shape: bf16[2,36], index: 25, kind: input, shape index: {}]
  %s26 = inlined_call_operand.vmem [shape: f32[2,1], index: 26, kind: input, shape index: {}]
  %s27 = inlined_call_operand.vmem [shape: bf16[2,2], index: 27, kind: input, shape index: {}]
  %s28 = inlined_call_operand.vmem [shape: f32[2,2,256], index: 28, kind: output, shape index: {}]
  %s29 = sld [smem:[#allocation0]]
  $region145: #{unet_forward.1} parent=0
    _
  %s31 = ssub.s32 1, %s29
  %s32 = scalar_select 0, %s31, %s29
  loop: start=0, step=1, limit=4
  $region2: #{unet_forward.1} parent=0 // loop_pre_header
    _
  $region3: #{unet_forward.1} parent=0 // loop_header
    %s34 = sphi 0, %s38
    %p35 = scmp.ge.s32.totalorder %s34, 4
    %s44 = sphi 0, %s46
    %s47 = sphi 0, %s44
    %s48 = sphi 0, %s47
    %s64 = sphi 0, %s48
    %s68 = sphi 0, %s68
    %s70 = sphi 0, %s68
    %s71 = sphi 0, %s70
    %s85 = sphi 0, %s71
    %s89 = sphi 0, %s89
    %s91 = sphi 0, %s89
    %s92 = sphi 0, %s91
    %s106 = sphi 0, %s92
    %s110 = sphi 0, %s110
    %s112 = sphi 0, %s110
    %s113 = sphi 0, %s112
    %s127 = sphi 0, %s113
    %s131 = sphi 0, %s131
    %s133 = sphi 0, %s131
    %s134 = sphi 0, %s133
    %s148 = sphi 0, %s134
    %s152 = sphi 0, %s152
    %s154 = sphi 0, %s152
    %s155 = sphi 0, %s154
    %s169 = sphi 0, %s155
    %s173 = sphi 0, %s173
    %s175 = sphi 0, %s173
    %s176 = sphi 0, %s175
    %s190 = sphi 0, %s176
    %s194 = sphi 0, %s194
    %s196 = sphi 0, %s194
    %s197 = sphi 0, %s196
    %s211 = sphi 0, %s197
    %s215 = sphi 0, %s215
    %s217 = sphi 0, %s215
    %s218 = sphi 0, %s217
    %s232 = sphi 0, %s218
    %s236 = sphi 0, %s236
    %s238 = sphi 0, %s236
    %s239 = sphi 0, %s238
    %s253 = sphi 0, %s239
    %s257 = sphi 0, %s257
    %s259 = sphi 0, %s257
    %s260 = sphi 0, %s259
    %s274 = sphi 0, %s260
    %s278 = sphi 0, %s278
    %s280 = sphi 0, %s278
    %s281 = sphi 0, %s280
    %s295 = sphi 0, %s281
    %s299 = sphi 0, %s299
    %s301 = sphi 0, %s299
    %s302 = sphi 0, %s301
    %s316 = sphi 0, %s302
    %s320 = sphi 0, %s320
    %s322 = sphi 0, %s320
    %s323 = sphi 0, %s322
    %s337 = sphi 0, %s323
    %s341 = sphi 0, %s341
    %s343 = sphi 0, %s341
    %s344 = sphi 0, %s343
    %s358 = sphi 0, %s344
    %s362 = sphi 0, %s362
    %s364 = sphi 0, %s362
    %s365 = sphi 0, %s364
    %s379 = sphi 0, %s365
    %s383 = sphi 0, %s383
    %s385 = sphi 0, %s383
    %s386 = sphi 0, %s385
    %s400 = sphi 0, %s386
    %s404 = sphi 0, %s404
    %s406 = sphi 0, %s404
    %s407 = sphi 0, %s406
    %s421 = sphi 0, %s407
    %s425 = sphi 0, %s425
    %s427 = sphi 0, %s425
    %s428 = sphi 0, %s427
    %s442 = sphi 0, %s428
    %s446 = sphi 0, %s446
    %s448 = sphi 0, %s446
    %s449 = sphi 0, %s448
    %s463 = sphi 0, %s449
    %s467 = sphi 0, %s467
    %s469 = sphi 0, %s467
    %s470 = sphi 0, %s469
    %s484 = sphi 0, %s470
    %s488 = sphi 0, %s488
    %s490 = sphi 0, %s488
    %s491 = sphi 0, %s490
    %s505 = sphi 0, %s491
    %s509 = sphi 0, %s509
    %s511 = sphi 0, %s509
    %s512 = sphi 0, %s511
    %s526 = sphi 0, %s512
    %s530 = sphi 0, %s530
    %s532 = sphi 0, %s530
    %s533 = sphi 0, %s532
    %s547 = sphi 0, %s533
    %s551 = sphi 0, %s551
    %s553 = sphi 0, %s551
    %s554 = sphi 0, %s553
    %s568 = sphi 0, %s554
    %s572 = sphi 0, %s572
    %s574 = sphi 0, %s572
    %s575 = sphi 0, %s574
    %s589 = sphi 0, %s575
    %s593 = sphi 0, %s593
    %s595 = sphi 0, %s593
    %s596 = sphi 0, %s595
    %s610 = sphi 0, %s596
    %s614 = sphi 0, %s614
    %s616 = sphi 0, %s614
    %s617 = sphi 0, %s616
    %s631 = sphi 0, %s617
    %s637 = sphi 0, %s639
    %s640 = sphi 0, %s637
    %s641 = sphi 0, %s640
    %s657 = sphi 0, %s641
  $region4: #{unet_forward.1} parent=0 // loop_header_branch
    %37 = sbr.rel (%p35) target = $region8
  $region5: #{unet_forward.1} parent=0 // loop_body
    %s39 = ssub.s32 %s34, 1
    %s40 = ssub.s32 %s34, 2
    %s41 = sadd.s32 %s34, 1
    %s42 = ssub.s32 %s34, %s41
    %p43 = scmp.eq.s32.totalorder %s42, 0
    %s45 = sadd.s32 %s44, 1
    %s46 = scalar_select %p43, %s44, %s45
    %p49 = pneg %p43
    %p50 = scmp.eq.s32.totalorder %s34, 1
    %p51 = por %p49, %p50
    %p52 = scmp.ne.s32.totalorder %s44, %s47
    %p53 = scmp.eq.s32.totalorder %s34, 0
    %p54 = por %p52, %p53
    %p55 = scmp.ne.s32.totalorder %s44, %s47
    %p56 = scmp.eq.s32.totalorder %s39, 1
    %p57 = por %p55, %p56
    %p58 = scmp.ne.s32.totalorder %s47, %s48
    %p59 = scmp.eq.s32.totalorder %s39, 0
    %p60 = por %p58, %p59
    %p61 = scmp.ne.s32.totalorder %s47, %s48
    %p62 = scmp.eq.s32.totalorder %s40, 1
    %p63 = por %p61, %p62
    %p65 = scmp.ne.s32.totalorder %s48, %s64
    %p66 = scmp.eq.s32.totalorder %s40, 0
    %p67 = por %p65, %p66
    %s69 = sadd.s32 %s68, 1
    %p72 = scmp.eq.s32.totalorder %s34, 1
    %p73 = scmp.ne.s32.totalorder %s68, %s70
    %p74 = scmp.eq.s32.totalorder %s34, 0
    %p75 = por %p73, %p74
    %p76 = scmp.ne.s32.totalorder %s68, %s70
    %p77 = scmp.eq.s32.totalorder %s39, 1
    %p78 = por %p76, %p77
    %p79 = scmp.ne.s32.totalorder %s70, %s71
    %p80 = scmp.eq.s32.totalorder %s39, 0
    %p81 = por %p79, %p80
    %p82 = scmp.ne.s32.totalorder %s70, %s71
    %p83 = scmp.eq.s32.totalorder %s40, 1
    %p84 = por %p82, %p83
    %p86 = scmp.ne.s32.totalorder %s71, %s85
    %p87 = scmp.eq.s32.totalorder %s40, 0
    %p88 = por %p86, %p87
    %s90 = sadd.s32 %s89, 1
    %p93 = scmp.eq.s32.totalorder %s34, 1
    %p94 = scmp.ne.s32.totalorder %s89, %s91
    %p95 = scmp.eq.s32.totalorder %s34, 0
    %p96 = por %p94, %p95
    %p97 = scmp.ne.s32.totalorder %s89, %s91
    %p98 = scmp.eq.s32.totalorder %s39, 1
    %p99 = por %p97, %p98
    %p100 = scmp.ne.s32.totalorder %s91, %s92
    %p101 = scmp.eq.s32.totalorder %s39, 0
    %p102 = por %p100, %p101
    %p103 = scmp.ne.s32.totalorder %s91, %s92
    %p104 = scmp.eq.s32.totalorder %s40, 1
    %p105 = por %p103, %p104
    %p107 = scmp.ne.s32.totalorder %s92, %s106
    %p108 = scmp.eq.s32.totalorder %s40, 0
    %p109 = por %p107, %p108
    %s111 = sadd.s32 %s110, 1
    %p114 = scmp.eq.s32.totalorder %s34, 1
    %p115 = scmp.ne.s32.totalorder %s110, %s112
    %p116 = scmp.eq.s32.totalorder %s34, 0
    %p117 = por %p115, %p116
    %p118 = scmp.ne.s32.totalorder %s110, %s112
    %p119 = scmp.eq.s32.totalorder %s39, 1
    %p120 = por %p118, %p119
    %p121 = scmp.ne.s32.totalorder %s112, %s113
    %p122 = scmp.eq.s32.totalorder %s39, 0
    %p123 = por %p121, %p122
    %p124 = scmp.ne.s32.totalorder %s112, %s113
    %p125 = scmp.eq.s32.totalorder %s40, 1
    %p126 = por %p124, %p125
    %p128 = scmp.ne.s32.totalorder %s113, %s127
    %p129 = scmp.eq.s32.totalorder %s40, 0
    %p130 = por %p128, %p129
    %s132 = sadd.s32 %s131, 1
    %p135 = scmp.eq.s32.totalorder %s34, 1
    %p136 = scmp.ne.s32.totalorder %s131, %s133
    %p137 = scmp.eq.s32.totalorder %s34, 0
    %p138 = por %p136, %p137
    %p139 = scmp.ne.s32.totalorder %s131, %s133
    %p140 = scmp.eq.s32.totalorder %s39, 1
    %p141 = por %p139, %p140
    %p142 = scmp.ne.s32.totalorder %s133, %s134
    %p143 = scmp.eq.s32.totalorder %s39, 0
    %p144 = por %p142, %p143
    %p145 = scmp.ne.s32.totalorder %s133, %s134
    %p146 = scmp.eq.s32.totalorder %s40, 1
    %p147 = por %p145, %p146
    %p149 = scmp.ne.s32.totalorder %s134, %s148
    %p150 = scmp.eq.s32.totalorder %s40, 0
    %p151 = por %p149, %p150
    %s153 = sadd.s32 %s152, 1
    %p156 = scmp.eq.s32.totalorder %s34, 1
    %p157 = scmp.ne.s32.totalorder %s152, %s154
    %p158 = scmp.eq.s32.totalorder %s34, 0
    %p159 = por %p157, %p158
    %p160 = scmp.ne.s32.totalorder %s152, %s154
    %p161 = scmp.eq.s32.totalorder %s39, 1
    %p162 = por %p160, %p161
    %p163 = scmp.ne.s32.totalorder %s154, %s155
    %p164 = scmp.eq.s32.totalorder %s39, 0
    %p165 = por %p163, %p164
    %p166 = scmp.ne.s32.totalorder %s154, %s155
    %p167 = scmp.eq.s32.totalorder %s40, 1
    %p168 = por %p166, %p167
    %p170 = scmp.ne.s32.totalorder %s155, %s169
    %p171 = scmp.eq.s32.totalorder %s40, 0
    %p172 = por %p170, %p171
    %s174 = sadd.s32 %s173, 1
    %p177 = scmp.eq.s32.totalorder %s34, 1
    %p178 = scmp.ne.s32.totalorder %s173, %s175
    %p179 = scmp.eq.s32.totalorder %s34, 0
    %p180 = por %p178, %p179
    %p181 = scmp.ne.s32.totalorder %s173, %s175
    %p182 = scmp.eq.s32.totalorder %s39, 1
    %p183 = por %p181, %p182
    %p184 = scmp.ne.s32.totalorder %s175, %s176
    %p185 = scmp.eq.s32.totalorder %s39, 0
    %p186 = por %p184, %p185
    %p187 = scmp.ne.s32.totalorder %s175, %s176
    %p188 = scmp.eq.s32.totalorder %s40, 1
    %p189 = por %p187, %p188
    %p191 = scmp.ne.s32.totalorder %s176, %s190
    %p192 = scmp.eq.s32.totalorder %s40, 0
    %p193 = por %p191, %p192
    %s195 = sadd.s32 %s194, 1
    %p198 = scmp.eq.s32.totalorder %s34, 1
    %p199 = scmp.ne.s32.totalorder %s194, %s196
    %p200 = scmp.eq.s32.totalorder %s34, 0
    %p201 = por %p199, %p200
    %p202 = scmp.ne.s32.totalorder %s194, %s196
    %p203 = scmp.eq.s32.totalorder %s39, 1
    %p204 = por %p202, %p203
    %p205 = scmp.ne.s32.totalorder %s196, %s197
    %p206 = scmp.eq.s32.totalorder %s39, 0
    %p207 = por %p205, %p206
    %p208 = scmp.ne.s32.totalorder %s196, %s197
    %p209 = scmp.eq.s32.totalorder %s40, 1
    %p210 = por %p208, %p209
    %p212 = scmp.ne.s32.totalorder %s197, %s211
    %p213 = scmp.eq.s32.totalorder %s40, 0
    %p214 = por %p212, %p213
    %s216 = sadd.s32 %s215, 1
    %p219 = scmp.eq.s32.totalorder %s34, 1
    %p220 = scmp.ne.s32.totalorder %s215, %s217
    %p221 = scmp.eq.s32.totalorder %s34, 0
    %p222 = por %p220, %p221
    %p223 = scmp.ne.s32.totalorder %s215, %s217
    %p224 = scmp.eq.s32.totalorder %s39, 1
    %p225 = por %p223, %p224
    %p226 = scmp.ne.s32.totalorder %s217, %s218
    %p227 = scmp.eq.s32.totalorder %s39, 0
    %p228 = por %p226, %p227
    %p229 = scmp.ne.s32.totalorder %s217, %s218
    %p230 = scmp.eq.s32.totalorder %s40, 1
    %p231 = por %p229, %p230
    %p233 = scmp.ne.s32.totalorder %s218, %s232
    %p234 = scmp.eq.s32.totalorder %s40, 0
    %p235 = por %p233, %p234
    %s237 = sadd.s32 %s236, 1
    %p240 = scmp.eq.s32.totalorder %s34, 1
    %p241 = scmp.ne.s32.totalorder %s236, %s238
    %p242 = scmp.eq.s32.totalorder %s34, 0
    %p243 = por %p241, %p242
    %p244 = scmp.ne.s32.totalorder %s236, %s238
    %p245 = scmp.eq.s32.totalorder %s39, 1
    %p246 = por %p244, %p245
    %p247 = scmp.ne.s32.totalorder %s238, %s239
    %p248 = scmp.eq.s32.totalorder %s39, 0
    %p249 = por %p247, %p248
    %p250 = scmp.ne.s32.totalorder %s238, %s239
    %p251 = scmp.eq.s32.totalorder %s40, 1
    %p252 = por %p250, %p251
    %p254 = scmp.ne.s32.totalorder %s239, %s253
    %p255 = scmp.eq.s32.totalorder %s40, 0
    %p256 = por %p254, %p255
    %s258 = sadd.s32 %s257, 1
    %p261 = scmp.eq.s32.totalorder %s34, 1
    %p262 = scmp.ne.s32.totalorder %s257, %s259
    %p263 = scmp.eq.s32.totalorder %s34, 0
    %p264 = por %p262, %p263
    %p265 = scmp.ne.s32.totalorder %s257, %s259
    %p266 = scmp.eq.s32.totalorder %s39, 1
    %p267 = por %p265, %p266
    %p268 = scmp.ne.s32.totalorder %s259, %s260
    %p269 = scmp.eq.s32.totalorder %s39, 0
    %p270 = por %p268, %p269
    %p271 = scmp.ne.s32.totalorder %s259, %s260
    %p272 = scmp.eq.s32.totalorder %s40, 1
    %p273 = por %p271, %p272
    %p275 = scmp.ne.s32.totalorder %s260, %s274
    %p276 = scmp.eq.s32.totalorder %s40, 0
    %p277 = por %p275, %p276
    %s279 = sadd.s32 %s278, 1
    %p282 = scmp.eq.s32.totalorder %s34, 1
    %p283 = scmp.ne.s32.totalorder %s278, %s280
    %p284 = scmp.eq.s32.totalorder %s34, 0
    %p285 = por %p283, %p284
    %p286 = scmp.ne.s32.totalorder %s278, %s280
    %p287 = scmp.eq.s32.totalorder %s39, 1
    %p288 = por %p286, %p287
    %p289 = scmp.ne.s32.totalorder %s280, %s281
    %p290 = scmp.eq.s32.totalorder %s39, 0
    %p291 = por %p289, %p290
    %p292 = scmp.ne.s32.totalorder %s280, %s281
    %p293 = scmp.eq.s32.totalorder %s40, 1
    %p294 = por %p292, %p293
    %p296 = scmp.ne.s32.totalorder %s281, %s295
    %p297 = scmp.eq.s32.totalorder %s40, 0
    %p298 = por %p296, %p297
    %s300 = sadd.s32 %s299, 1
    %p303 = scmp.eq.s32.totalorder %s34, 1
    %p304 = scmp.ne.s32.totalorder %s299, %s301
    %p305 = scmp.eq.s32.totalorder %s34, 0
    %p306 = por %p304, %p305
    %p307 = scmp.ne.s32.totalorder %s299, %s301
    %p308 = scmp.eq.s32.totalorder %s39, 1
    %p309 = por %p307, %p308
    %p310 = scmp.ne.s32.totalorder %s301, %s302
    %p311 = scmp.eq.s32.totalorder %s39, 0
    %p312 = por %p310, %p311
    %p313 = scmp.ne.s32.totalorder %s301, %s302
    %p314 = scmp.eq.s32.totalorder %s40, 1
    %p315 = por %p313, %p314
    %p317 = scmp.ne.s32.totalorder %s302, %s316
    %p318 = scmp.eq.s32.totalorder %s40, 0
    %p319 = por %p317, %p318
    %s321 = sadd.s32 %s320, 1
    %p324 = scmp.eq.s32.totalorder %s34, 1
    %p325 = scmp.ne.s32.totalorder %s320, %s322
    %p326 = scmp.eq.s32.totalorder %s34, 0
    %p327 = por %p325, %p326
    %p328 = scmp.ne.s32.totalorder %s320, %s322
    %p329 = scmp.eq.s32.totalorder %s39, 1
    %p330 = por %p328, %p329
    %p331 = scmp.ne.s32.totalorder %s322, %s323
    %p332 = scmp.eq.s32.totalorder %s39, 0
    %p333 = por %p331, %p332
    %p334 = scmp.ne.s32.totalorder %s322, %s323
    %p335 = scmp.eq.s32.totalorder %s40, 1
    %p336 = por %p334, %p335
    %p338 = scmp.ne.s32.totalorder %s323, %s337
    %p339 = scmp.eq.s32.totalorder %s40, 0
    %p340 = por %p338, %p339
    %s342 = sadd.s32 %s341, 1
    %p345 = scmp.eq.s32.totalorder %s34, 1
    %p346 = scmp.ne.s32.totalorder %s341, %s343
    %p347 = scmp.eq.s32.totalorder %s34, 0
    %p348 = por %p346, %p347
    %p349 = scmp.ne.s32.totalorder %s341, %s343
    %p350 = scmp.eq.s32.totalorder %s39, 1
    %p351 = por %p349, %p350
    %p352 = scmp.ne.s32.totalorder %s343, %s344
    %p353 = scmp.eq.s32.totalorder %s39, 0
    %p354 = por %p352, %p353
    %p355 = scmp.ne.s32.totalorder %s343, %s344
    %p356 = scmp.eq.s32.totalorder %s40, 1
    %p357 = por %p355, %p356
    %p359 = scmp.ne.s32.totalorder %s344, %s358
    %p360 = scmp.eq.s32.totalorder %s40, 0
    %p361 = por %p359, %p360
    %s363 = sadd.s32 %s362, 1
    %p366 = scmp.eq.s32.totalorder %s34, 1
    %p367 = scmp.ne.s32.totalorder %s362, %s364
    %p368 = scmp.eq.s32.totalorder %s34, 0
    %p369 = por %p367, %p368
    %p370 = scmp.ne.s32.totalorder %s362, %s364
    %p371 = scmp.eq.s32.totalorder %s39, 1
    %p372 = por %p370, %p371
    %p373 = scmp.ne.s32.totalorder %s364, %s365
    %p374 = scmp.eq.s32.totalorder %s39, 0
    %p375 = por %p373, %p374
    %p376 = scmp.ne.s32.totalorder %s364, %s365
    %p377 = scmp.eq.s32.totalorder %s40, 1
    %p378 = por %p376, %p377
    %p380 = scmp.ne.s32.totalorder %s365, %s379
    %p381 = scmp.eq.s32.totalorder %s40, 0
    %p382 = por %p380, %p381
    %s384 = sadd.s32 %s383, 1
    %p387 = scmp.eq.s32.totalorder %s34, 1
    %p388 = scmp.ne.s32.totalorder %s383, %s385
    %p389 = scmp.eq.s32.totalorder %s34, 0
    %p390 = por %p388, %p389
    %p391 = scmp.ne.s32.totalorder %s383, %s385
    %p392 = scmp.eq.s32.totalorder %s39, 1
    %p393 = por %p391, %p392
    %p394 = scmp.ne.s32.totalorder %s385, %s386
    %p395 = scmp.eq.s32.totalorder %s39, 0
    %p396 = por %p394, %p395
    %p397 = scmp.ne.s32.totalorder %s385, %s386
    %p398 = scmp.eq.s32.totalorder %s40, 1
    %p399 = por %p397, %p398
    %p401 = scmp.ne.s32.totalorder %s386, %s400
    %p402 = scmp.eq.s32.totalorder %s40, 0
    %p403 = por %p401, %p402
    %s405 = sadd.s32 %s404, 1
    %p408 = scmp.eq.s32.totalorder %s34, 1
    %p409 = scmp.ne.s32.totalorder %s404, %s406
    %p410 = scmp.eq.s32.totalorder %s34, 0
    %p411 = por %p409, %p410
    %p412 = scmp.ne.s32.totalorder %s404, %s406
    %p413 = scmp.eq.s32.totalorder %s39, 1
    %p414 = por %p412, %p413
    %p415 = scmp.ne.s32.totalorder %s406, %s407
    %p416 = scmp.eq.s32.totalorder %s39, 0
    %p417 = por %p415, %p416
    %p418 = scmp.ne.s32.totalorder %s406, %s407
    %p419 = scmp.eq.s32.totalorder %s40, 1
    %p420 = por %p418, %p419
    %p422 = scmp.ne.s32.totalorder %s407, %s421
    %p423 = scmp.eq.s32.totalorder %s40, 0
    %p424 = por %p422, %p423
    %s426 = sadd.s32 %s425, 1
    %p429 = scmp.eq.s32.totalorder %s34, 1
    %p430 = scmp.ne.s32.totalorder %s425, %s427
    %p431 = scmp.eq.s32.totalorder %s34, 0
    %p432 = por %p430, %p431
    %p433 = scmp.ne.s32.totalorder %s425, %s427
    %p434 = scmp.eq.s32.totalorder %s39, 1
    %p435 = por %p433, %p434
    %p436 = scmp.ne.s32.totalorder %s427, %s428
    %p437 = scmp.eq.s32.totalorder %s39, 0
    %p438 = por %p436, %p437
    %p439 = scmp.ne.s32.totalorder %s427, %s428
    %p440 = scmp.eq.s32.totalorder %s40, 1
    %p441 = por %p439, %p440
    %p443 = scmp.ne.s32.totalorder %s428, %s442
    %p444 = scmp.eq.s32.totalorder %s40, 0
    %p445 = por %p443, %p444
    %s447 = sadd.s32 %s446, 1
    %p450 = scmp.eq.s32.totalorder %s34, 1
    %p451 = scmp.ne.s32.totalorder %s446, %s448
    %p452 = scmp.eq.s32.totalorder %s34, 0
    %p453 = por %p451, %p452
    %p454 = scmp.ne.s32.totalorder %s446, %s448
    %p455 = scmp.eq.s32.totalorder %s39, 1
    %p456 = por %p454, %p455
    %p457 = scmp.ne.s32.totalorder %s448, %s449
    %p458 = scmp.eq.s32.totalorder %s39, 0
    %p459 = por %p457, %p458
    %p460 = scmp.ne.s32.totalorder %s448, %s449
    %p461 = scmp.eq.s32.totalorder %s40, 1
    %p462 = por %p460, %p461
    %p464 = scmp.ne.s32.totalorder %s449, %s463
    %p465 = scmp.eq.s32.totalorder %s40, 0
    %p466 = por %p464, %p465
    %s468 = sadd.s32 %s467, 1
    %p471 = scmp.eq.s32.totalorder %s34, 1
    %p472 = scmp.ne.s32.totalorder %s467, %s469
    %p473 = scmp.eq.s32.totalorder %s34, 0
    %p474 = por %p472, %p473
    %p475 = scmp.ne.s32.totalorder %s467, %s469
    %p476 = scmp.eq.s32.totalorder %s39, 1
    %p477 = por %p475, %p476
    %p478 = scmp.ne.s32.totalorder %s469, %s470
    %p479 = scmp.eq.s32.totalorder %s39, 0
    %p480 = por %p478, %p479
    %p481 = scmp.ne.s32.totalorder %s469, %s470
    %p482 = scmp.eq.s32.totalorder %s40, 1
    %p483 = por %p481, %p482
    %p485 = scmp.ne.s32.totalorder %s470, %s484
    %p486 = scmp.eq.s32.totalorder %s40, 0
    %p487 = por %p485, %p486
    %s489 = sadd.s32 %s488, 1
    %p492 = scmp.eq.s32.totalorder %s34, 1
    %p493 = scmp.ne.s32.totalorder %s488, %s490
    %p494 = scmp.eq.s32.totalorder %s34, 0
    %p495 = por %p493, %p494
    %p496 = scmp.ne.s32.totalorder %s488, %s490
    %p497 = scmp.eq.s32.totalorder %s39, 1
    %p498 = por %p496, %p497
    %p499 = scmp.ne.s32.totalorder %s490, %s491
    %p500 = scmp.eq.s32.totalorder %s39, 0
    %p501 = por %p499, %p500
    %p502 = scmp.ne.s32.totalorder %s490, %s491
    %p503 = scmp.eq.s32.totalorder %s40, 1
    %p504 = por %p502, %p503
    %p506 = scmp.ne.s32.totalorder %s491, %s505
    %p507 = scmp.eq.s32.totalorder %s40, 0
    %p508 = por %p506, %p507
    %s510 = sadd.s32 %s509, 1
    %p513 = scmp.eq.s32.totalorder %s34, 1
    %p514 = scmp.ne.s32.totalorder %s509, %s511
    %p515 = scmp.eq.s32.totalorder %s34, 0
    %p516 = por %p514, %p515
    %p517 = scmp.ne.s32.totalorder %s509, %s511
    %p518 = scmp.eq.s32.totalorder %s39, 1
    %p519 = por %p517, %p518
    %p520 = scmp.ne.s32.totalorder %s511, %s512
    %p521 = scmp.eq.s32.totalorder %s39, 0
    %p522 = por %p520, %p521
    %p523 = scmp.ne.s32.totalorder %s511, %s512
    %p524 = scmp.eq.s32.totalorder %s40, 1
    %p525 = por %p523, %p524
    %p527 = scmp.ne.s32.totalorder %s512, %s526
    %p528 = scmp.eq.s32.totalorder %s40, 0
    %p529 = por %p527, %p528
    %s531 = sadd.s32 %s530, 1
    %p534 = scmp.eq.s32.totalorder %s34, 1
    %p535 = scmp.ne.s32.totalorder %s530, %s532
    %p536 = scmp.eq.s32.totalorder %s34, 0
    %p537 = por %p535, %p536
    %p538 = scmp.ne.s32.totalorder %s530, %s532
    %p539 = scmp.eq.s32.totalorder %s39, 1
    %p540 = por %p538, %p539
    %p541 = scmp.ne.s32.totalorder %s532, %s533
    %p542 = scmp.eq.s32.totalorder %s39, 0
    %p543 = por %p541, %p542
    %p544 = scmp.ne.s32.totalorder %s532, %s533
    %p545 = scmp.eq.s32.totalorder %s40, 1
    %p546 = por %p544, %p545
    %p548 = scmp.ne.s32.totalorder %s533, %s547
    %p549 = scmp.eq.s32.totalorder %s40, 0
    %p550 = por %p548, %p549
    %s552 = sadd.s32 %s551, 1
    %p555 = scmp.eq.s32.totalorder %s34, 1
    %p556 = scmp.ne.s32.totalorder %s551, %s553
    %p557 = scmp.eq.s32.totalorder %s34, 0
    %p558 = por %p556, %p557
    %p559 = scmp.ne.s32.totalorder %s551, %s553
    %p560 = scmp.eq.s32.totalorder %s39, 1
    %p561 = por %p559, %p560
    %p562 = scmp.ne.s32.totalorder %s553, %s554
    %p563 = scmp.eq.s32.totalorder %s39, 0
    %p564 = por %p562, %p563
    %p565 = scmp.ne.s32.totalorder %s553, %s554
    %p566 = scmp.eq.s32.totalorder %s40, 1
    %p567 = por %p565, %p566
    %p569 = scmp.ne.s32.totalorder %s554, %s568
    %p570 = scmp.eq.s32.totalorder %s40, 0
    %p571 = por %p569, %p570
    %s573 = sadd.s32 %s572, 1
    %p576 = scmp.eq.s32.totalorder %s34, 1
    %p577 = scmp.ne.s32.totalorder %s572, %s574
    %p578 = scmp.eq.s32.totalorder %s34, 0
    %p579 = por %p577, %p578
    %p580 = scmp.ne.s32.totalorder %s572, %s574
    %p581 = scmp.eq.s32.totalorder %s39, 1
    %p582 = por %p580, %p581
    %p583 = scmp.ne.s32.totalorder %s574, %s575
    %p584 = scmp.eq.s32.totalorder %s39, 0
    %p585 = por %p583, %p584
    %p586 = scmp.ne.s32.totalorder %s574, %s575
    %p587 = scmp.eq.s32.totalorder %s40, 1
    %p588 = por %p586, %p587
    %p590 = scmp.ne.s32.totalorder %s575, %s589
    %p591 = scmp.eq.s32.totalorder %s40, 0
    %p592 = por %p590, %p591
    %s594 = sadd.s32 %s593, 1
    %p597 = scmp.eq.s32.totalorder %s34, 1
    %p598 = scmp.ne.s32.totalorder %s593, %s595
    %p599 = scmp.eq.s32.totalorder %s34, 0
    %p600 = por %p598, %p599
    %p601 = scmp.ne.s32.totalorder %s593, %s595
    %p602 = scmp.eq.s32.totalorder %s39, 1
    %p603 = por %p601, %p602
    %p604 = scmp.ne.s32.totalorder %s595, %s596
    %p605 = scmp.eq.s32.totalorder %s39, 0
    %p606 = por %p604, %p605
    %p607 = scmp.ne.s32.totalorder %s595, %s596
    %p608 = scmp.eq.s32.totalorder %s40, 1
    %p609 = por %p607, %p608
    %p611 = scmp.ne.s32.totalorder %s596, %s610
    %p612 = scmp.eq.s32.totalorder %s40, 0
    %p613 = por %p611, %p612
    %s615 = sadd.s32 %s614, 1
    %p618 = scmp.eq.s32.totalorder %s34, 1
    %p619 = scmp.ne.s32.totalorder %s614, %s616
    %p620 = scmp.eq.s32.totalorder %s34, 0
    %p621 = por %p619, %p620
    %p622 = scmp.ne.s32.totalorder %s614, %s616
    %p623 = scmp.eq.s32.totalorder %s39, 1
    %p624 = por %p622, %p623
    %p625 = scmp.ne.s32.totalorder %s616, %s617
    %p626 = scmp.eq.s32.totalorder %s39, 0
    %p627 = por %p625, %p626
    %p628 = scmp.ne.s32.totalorder %s616, %s617
    %p629 = scmp.eq.s32.totalorder %s40, 1
    %p630 = por %p628, %p629
    %p632 = scmp.ne.s32.totalorder %s617, %s631
    %p633 = scmp.eq.s32.totalorder %s40, 0
    %p634 = por %p632, %p633
    %s635 = ssub.s32 %s34, %s41
    %p636 = scmp.eq.s32.totalorder %s635, 0
    %s638 = sadd.s32 %s637, 1
    %s639 = scalar_select %p636, %s637, %s638
    %p642 = pneg %p636
    %p643 = scmp.eq.s32.totalorder %s34, 1
    %p644 = por %p642, %p643
    %p645 = scmp.ne.s32.totalorder %s637, %s640
    %p646 = scmp.eq.s32.totalorder %s34, 0
    %p647 = por %p645, %p646
    %p648 = scmp.ne.s32.totalorder %s637, %s640
    %p649 = scmp.eq.s32.totalorder %s39, 1
    %p650 = por %p648, %p649
    %p651 = scmp.ne.s32.totalorder %s640, %s641
    %p652 = scmp.eq.s32.totalorder %s39, 0
    %p653 = por %p651, %p652
    %p654 = scmp.ne.s32.totalorder %s640, %s641
    %p655 = scmp.eq.s32.totalorder %s40, 1
    %p656 = por %p654, %p655
    %p658 = scmp.ne.s32.totalorder %s641, %s657
    %p659 = scmp.eq.s32.totalorder %s40, 0
    %p660 = por %p658, %p659
    %p661 = scmp.le.s32.totalorder 1, %s34
    %p662 = scmp.lt.s32.totalorder %s34, 3
    %p663 = pnand %p661, %p662
    %p664 = pneg %p663
    // Predicated region
    $region9: #{unet_forward.1} parent=5 // pred_check
      _
    $region10: #{unet_forward.1} parent=5 // pred_check_branch
      %666 = sbr.rel (%p663) target = $region12
    $region11: #{unet_forward.1} parent=5 // pred_region
      %s667 = ssub.s32 %s34, 1
      // Predicated region
      $region13: #{unet_forward.1} parent=11 // pred_check
        %p668 = pneg %p81
      $region14: #{unet_forward.1} parent=11 // pred_check_branch
        %670 = sbr.rel (%p668) target = $region16
      $region15: #{unet_forward.1} parent=11 // pred_region
        _
      $region16: #{unet_forward.1} parent=11 // pred_fallthru
        _
      // Predicated region
      $region17: #{unet_forward.1} parent=11 // pred_check
        %p671 = pneg %p102
      $region18: #{unet_forward.1} parent=11 // pred_check_branch
        %673 = sbr.rel (%p671) target = $region20
      $region19: #{unet_forward.1} parent=11 // pred_region
        _
      $region20: #{unet_forward.1} parent=11 // pred_fallthru
        _
      // Predicated region
      $region21: #{unet_forward.1} parent=11 // pred_check
        %p674 = pneg %p123
      $region22: #{unet_forward.1} parent=11 // pred_check_branch
        %676 = sbr.rel (%p674) target = $region24
      $region23: #{unet_forward.1} parent=11 // pred_region
        _
      $region24: #{unet_forward.1} parent=11 // pred_fallthru
        _
      // Predicated region
      $region25: #{unet_forward.1} parent=11 // pred_check
        %p677 = pneg %p144
      $region26: #{unet_forward.1} parent=11 // pred_check_branch
        %679 = sbr.rel (%p677) target = $region28
      $region27: #{unet_forward.1} parent=11 // pred_region
        _
      $region28: #{unet_forward.1} parent=11 // pred_fallthru
        _
      // Predicated region
      $region29: #{unet_forward.1} parent=11 // pred_check
        %p680 = pneg %p165
      $region30: #{unet_forward.1} parent=11 // pred_check_branch
        %682 = sbr.rel (%p680) target = $region32
      $region31: #{unet_forward.1} parent=11 // pred_region
        _
      $region32: #{unet_forward.1} parent=11 // pred_fallthru
        _
      // Predicated region
      $region33: #{unet_forward.1} parent=11 // pred_check
        %p683 = pneg %p186
      $region34: #{unet_forward.1} parent=11 // pred_check_branch
        %685 = sbr.rel (%p683) target = $region36
      $region35: #{unet_forward.1} parent=11 // pred_region
        _
      $region36: #{unet_forward.1} parent=11 // pred_fallthru
        _
      // Predicated region
      $region37: #{unet_forward.1} parent=11 // pred_check
        %p686 = pneg %p207
      $region38: #{unet_forward.1} parent=11 // pred_check_branch
        %688 = sbr.rel (%p686) target = $region40
      $region39: #{unet_forward.1} parent=11 // pred_region
        _
      $region40: #{unet_forward.1} parent=11 // pred_fallthru
        _
      // Predicated region
      $region41: #{unet_forward.1} parent=11 // pred_check
        %p689 = pneg %p228
      $region42: #{unet_forward.1} parent=11 // pred_check_branch
        %691 = sbr.rel (%p689) target = $region44
      $region43: #{unet_forward.1} parent=11 // pred_region
        _
      $region44: #{unet_forward.1} parent=11 // pred_fallthru
        _
      // Predicated region
      $region45: #{unet_forward.1} parent=11 // pred_check
        %p692 = pneg %p249
      $region46: #{unet_forward.1} parent=11 // pred_check_branch
        %694 = sbr.rel (%p692) target = $region48
      $region47: #{unet_forward.1} parent=11 // pred_region
        _
      $region48: #{unet_forward.1} parent=11 // pred_fallthru
        _
      // Predicated region
      $region49: #{unet_forward.1} parent=11 // pred_check
        %p695 = pneg %p270
      $region50: #{unet_forward.1} parent=11 // pred_check_branch
        %697 = sbr.rel (%p695) target = $region52
      $region51: #{unet_forward.1} parent=11 // pred_region
        _
      $region52: #{unet_forward.1} parent=11 // pred_fallthru
        _
      // Predicated region
      $region53: #{unet_forward.1} parent=11 // pred_check
        %p698 = pneg %p291
      $region54: #{unet_forward.1} parent=11 // pred_check_branch
        %700 = sbr.rel (%p698) target = $region56
      $region55: #{unet_forward.1} parent=11 // pred_region
        _
      $region56: #{unet_forward.1} parent=11 // pred_fallthru
        _
      // Predicated region
      $region57: #{unet_forward.1} parent=11 // pred_check
        %p701 = pneg %p312
      $region58: #{unet_forward.1} parent=11 // pred_check_branch
        %703 = sbr.rel (%p701) target = $region60
      $region59: #{unet_forward.1} parent=11 // pred_region
        _
      $region60: #{unet_forward.1} parent=11 // pred_fallthru
        _
      // Predicated region
      $region61: #{unet_forward.1} parent=11 // pred_check
        %p704 = pneg %p333
      $region62: #{unet_forward.1} parent=11 // pred_check_branch
        %706 = sbr.rel (%p704) target = $region64
      $region63: #{unet_forward.1} parent=11 // pred_region
        _
      $region64: #{unet_forward.1} parent=11 // pred_fallthru
        _
      // Predicated region
      $region65: #{unet_forward.1} parent=11 // pred_check
        %p707 = pneg %p354
      $region66: #{unet_forward.1} parent=11 // pred_check_branch
        %709 = sbr.rel (%p707) target = $region68
      $region67: #{unet_forward.1} parent=11 // pred_region
        _
      $region68: #{unet_forward.1} parent=11 // pred_fallthru
        _
      // Predicated region
      $region69: #{unet_forward.1} parent=11 // pred_check
        %p710 = pneg %p375
      $region70: #{unet_forward.1} parent=11 // pred_check_branch
        %712 = sbr.rel (%p710) target = $region72
      $region71: #{unet_forward.1} parent=11 // pred_region
        _
      $region72: #{unet_forward.1} parent=11 // pred_fallthru
        _
      // Predicated region
      $region73: #{unet_forward.1} parent=11 // pred_check
        %p713 = pneg %p396
      $region74: #{unet_forward.1} parent=11 // pred_check_branch
        %715 = sbr.rel (%p713) target = $region76
      $region75: #{unet_forward.1} parent=11 // pred_region
        _
      $region76: #{unet_forward.1} parent=11 // pred_fallthru
        _
      // Predicated region
      $region77: #{unet_forward.1} parent=11 // pred_check
        %p716 = pneg %p417
      $region78: #{unet_forward.1} parent=11 // pred_check_branch
        %718 = sbr.rel (%p716) target = $region80
      $region79: #{unet_forward.1} parent=11 // pred_region
        _
      $region80: #{unet_forward.1} parent=11 // pred_fallthru
        _
      // Predicated region
      $region81: #{unet_forward.1} parent=11 // pred_check
        %p719 = pneg %p438
      $region82: #{unet_forward.1} parent=11 // pred_check_branch
        %721 = sbr.rel (%p719) target = $region84
      $region83: #{unet_forward.1} parent=11 // pred_region
        _
      $region84: #{unet_forward.1} parent=11 // pred_fallthru
        _
      // Predicated region
      $region85: #{unet_forward.1} parent=11 // pred_check
        %p722 = pneg %p459
      $region86: #{unet_forward.1} parent=11 // pred_check_branch
        %724 = sbr.rel (%p722) target = $region88
      $region87: #{unet_forward.1} parent=11 // pred_region
        _
      $region88: #{unet_forward.1} parent=11 // pred_fallthru
        _
      // Predicated region
      $region89: #{unet_forward.1} parent=11 // pred_check
        %p725 = pneg %p480
      $region90: #{unet_forward.1} parent=11 // pred_check_branch
        %727 = sbr.rel (%p725) target = $region92
      $region91: #{unet_forward.1} parent=11 // pred_region
        _
      $region92: #{unet_forward.1} parent=11 // pred_fallthru
        _
      // Predicated region
      $region93: #{unet_forward.1} parent=11 // pred_check
        %p728 = pneg %p501
      $region94: #{unet_forward.1} parent=11 // pred_check_branch
        %730 = sbr.rel (%p728) target = $region96
      $region95: #{unet_forward.1} parent=11 // pred_region
        _
      $region96: #{unet_forward.1} parent=11 // pred_fallthru
        _
      // Predicated region
      $region97: #{unet_forward.1} parent=11 // pred_check
        %p731 = pneg %p522
      $region98: #{unet_forward.1} parent=11 // pred_check_branch
        %733 = sbr.rel (%p731) target = $region100
      $region99: #{unet_forward.1} parent=11 // pred_region
        _
      $region100: #{unet_forward.1} parent=11 // pred_fallthru
        _
      // Predicated region
      $region101: #{unet_forward.1} parent=11 // pred_check
        %p734 = pneg %p543
      $region102: #{unet_forward.1} parent=11 // pred_check_branch
        %736 = sbr.rel (%p734) target = $region104
      $region103: #{unet_forward.1} parent=11 // pred_region
        _
      $region104: #{unet_forward.1} parent=11 // pred_fallthru
        _
      // Predicated region
      $region105: #{unet_forward.1} parent=11 // pred_check
        %p737 = pneg %p564
      $region106: #{unet_forward.1} parent=11 // pred_check_branch
        %739 = sbr.rel (%p737) target = $region108
      $region107: #{unet_forward.1} parent=11 // pred_region
        _
      $region108: #{unet_forward.1} parent=11 // pred_fallthru
        _
      // Predicated region
      $region109: #{unet_forward.1} parent=11 // pred_check
        %p740 = pneg %p585
      $region110: #{unet_forward.1} parent=11 // pred_check_branch
        %742 = sbr.rel (%p740) target = $region112
      $region111: #{unet_forward.1} parent=11 // pred_region
        _
      $region112: #{unet_forward.1} parent=11 // pred_fallthru
        _
      // Predicated region
      $region113: #{unet_forward.1} parent=11 // pred_check
        %p743 = pneg %p606
      $region114: #{unet_forward.1} parent=11 // pred_check_branch
        %745 = sbr.rel (%p743) target = $region116
      $region115: #{unet_forward.1} parent=11 // pred_region
        _
      $region116: #{unet_forward.1} parent=11 // pred_fallthru
        _
      // Predicated region
      $region117: #{unet_forward.1} parent=11 // pred_check
        %p746 = pneg %p627
      $region118: #{unet_forward.1} parent=11 // pred_check_branch
        %748 = sbr.rel (%p746) target = $region120
      $region119: #{unet_forward.1} parent=11 // pred_region
        _
      $region120: #{unet_forward.1} parent=11 // pred_fallthru
        _
    $region12: #{unet_forward.1} parent=5 // pred_fallthru
      _
    %p749 = scmp.lt.s32.totalorder %s34, 2
    // Predicated region
    $region121: #{unet_forward.1} parent=5 // pred_check
      %p750 = pneg %p749
    $region122: #{unet_forward.1} parent=5 // pred_check_branch
      %752 = sbr.rel (%p750) target = $region124
    $region123: #{unet_forward.1} parent=5 // pred_region
      // Predicated region
      $region125: #{unet_forward.1} parent=123 // pred_check
        %p753 = pneg %p54
      $region126: #{unet_forward.1} parent=123 // pred_check_branch
        %755 = sbr.rel (%p753) target = $region128
      $region127: #{unet_forward.1} parent=123 // pred_region
        %p756 = scmp.lt.s32.totalorder %s34, 1
        %s757 = scalar_select %p756, %s34, 1
        %s758 = smul.addr %s757, 2
        %s759 = scalar_lea.vmem %s0, %s758
      $region128: #{unet_forward.1} parent=123 // pred_fallthru
        _
    $region124: #{unet_forward.1} parent=5 // pred_fallthru
      _
    %p760 = scmp.le.s32.totalorder 1, %s34
    %p761 = scmp.lt.s32.totalorder %s34, 3
    %p762 = pnand %p760, %p761
    %p763 = pneg %p762
    // Predicated region
    $region129: #{unet_forward.1} parent=5 // pred_check
      _
    $region130: #{unet_forward.1} parent=5 // pred_check_branch
      %765 = sbr.rel (%p762) target = $region132
    $region131: #{unet_forward.1} parent=5 // pred_region
      %s766 = ssub.s32 %s34, 1
      %p767 = scmp.lt.s32.totalorder %s39, 1
      %s768 = scalar_select %p767, %s39, 1
      %s769 = smul.addr %s768, 2
      %s770 = scalar_lea.vmem %s0, %s769
      %p771 = pneg %p60
      %p772 = pneg %p57
      %p773 = pneg %p81
      %p774 = pneg %p78
      %p775 = pneg %p102
      %p776 = pneg %p99
      %p777 = pneg %p123
      %p778 = pneg %p120
      %p779 = pneg %p144
      %p780 = pneg %p141
      %p781 = pneg %p165
      %p782 = pneg %p162
      %p783 = pneg %p186
      %p784 = pneg %p183
      %p785 = pneg %p207
      %p786 = pneg %p204
      %p787 = pneg %p228
      %p788 = pneg %p225
      %p789 = pneg %p249
      %p790 = pneg %p246
      %p791 = pneg %p270
      %p792 = pneg %p267
      %p793 = pneg %p291
      %p794 = pneg %p288
      %p795 = pneg %p312
      %p796 = pneg %p309
      %p797 = pneg %p333
      %p798 = pneg %p330
      %p799 = pneg %p354
      %p800 = pneg %p351
      %p801 = pneg %p375
      %p802 = pneg %p372
      %p803 = pneg %p396
      %p804 = pneg %p393
      %p805 = pneg %p417
      %p806 = pneg %p414
      %p807 = pneg %p438
      %p808 = pneg %p435
      %p809 = pneg %p459
      %p810 = pneg %p456
      %p811 = pneg %p480
      %p812 = pneg %p477
      %p813 = pneg %p501
      %p814 = pneg %p498
      %p815 = pneg %p522
      %p816 = pneg %p519
      %p817 = pneg %p543
      %p818 = pneg %p540
      %p819 = pneg %p564
      %p820 = pneg %p561
      %p821 = pneg %p585
      %p822 = pneg %p582
      %p823 = pneg %p606
      %p824 = pneg %p603
      %p825 = pneg %p627
      %p826 = pneg %p624
      %p827 = pneg %p653
      %p828 = pneg %p650
      %p829 = scmp.lt.s32.totalorder %s39, 1
      %s830 = scalar_select %p829, %s39, 1
      %s831 = smul.addr %s830, 2
      %s832 = smul.addr %s831, 2
      %s833 = scalar_lea.vmem %s28, %s832
      %p834 = scmp.lt.s32.totalorder %s39, 1
      %s835 = scalar_select %p834, %s39, 1
      %s836 = smul.addr %s835, 2
      %s837 = scalar_lea.vmem %s0, %s836
      %p838 = scmp.lt.s32.totalorder %s39, 1
      %s839 = scalar_select %p838, %s39, 1
      %s840 = smul.addr %s839, 2
      %s841 = smul.addr %s840, 2
      %s842 = scalar_lea.vmem %s28, %s841
      %v844 = vld [vmem:[%s837] sm:$0x3]
      %v845 = vlaneseq
      %v846 = vand.u32 %v845, 127
      %v847 = vadd.s32 %v846, 128
      %v848 = vand.u32 %v846, 15
      %v849 = vand.u32 %v847, 15
      %v850 = vshra.s32 %v846, 4
      %v851 = vshra.s32 %v847, 4
      %vm852 = vcmp.eq.s32.totalorder %v848, 0
      %vm853 = vcmp.eq.s32.totalorder %v849, 0
      %vm854 = vcmp.eq.s32.totalorder %v848, 15
      %vm855 = vcmp.eq.s32.totalorder %v849, 15
      %vm856 = vcmp.eq.s32.totalorder %v850, 0
      %vm857 = vcmp.eq.s32.totalorder %v851, 0
      %vm858 = vcmp.eq.s32.totalorder %v850, 15
      %vm859 = vcmp.eq.s32.totalorder %v851, 15
      %v861 = vlaneseq
      %v862 = vshrl.u32 %v861, 7
      %v863 = vsub.s32 0, %v862
      %v864 = vrot.slane %v844, %v863
      %v865 = vlaneseq
      %v866 = vshrl.u32 %v865, 7
      %v867 = vsub.s32 1, %v866
      %v868 = vrot.slane %v844, %v867
      %871 = vrot.lane.b32.xlu0 %v864, 1
      %v872 = vpop.permute.xlu0 %871
      %873 = vrot.lane.b32.xlu0 %v868, 1
      %v874 = vpop.permute.xlu0 %873
      %vm875 = vcmp.lt.s32.totalorder %v846, 1
      %v876 = vsel %vm875, %v872, %v874
      %v877 = vsel %vm875, %v874, %v872
      %v878 = vsel %vm852, %v864, %v877
      %v879 = vsel %vm853, %v868, %v876
      %880 = vrot.lane.b32.xlu0 %v864, 127
      %v881 = vpop.permute.xlu0 %880
      %882 = vrot.lane.b32.xlu0 %v868, 127
      %v883 = vpop.permute.xlu0 %882
      %vm884 = vcmp.lt.s32.totalorder %v846, 127
      %v885 = vsel %vm884, %v881, %v883
      %v886 = vsel %vm884, %v883, %v881
      %v887 = vsel %vm854, %v864, %v885
      %v888 = vsel %vm855, %v868, %v886
      %889 = vrot.lane.b32.xlu0 %v878, 16
      %v890 = vpop.permute.xlu0 %889
      %891 = vrot.lane.b32.xlu0 %v879, 16
      %v892 = vpop.permute.xlu0 %891
      %vm893 = vcmp.lt.s32.totalorder %v846, 16
      %v894 = vsel %vm893, %v890, %v892
      %v895 = vsel %vm893, %v892, %v890
      %v896 = vsel %vm856, %v878, %v895
      %v897 = vsel %vm857, %v879, %v894
      %898 = vrot.lane.b32.xlu0 %v864, 16
      %v899 = vpop.permute.xlu0 %898
      %900 = vrot.lane.b32.xlu0 %v868, 16
      %v901 = vpop.permute.xlu0 %900
      %v902 = vsel %vm893, %v899, %v901
      %v903 = vsel %vm893, %v901, %v899
      %v904 = vsel %vm856, %v864, %v903
      %v905 = vsel %vm857, %v868, %v902
      %906 = vrot.lane.b32.xlu0 %v887, 16
      %v907 = vpop.permute.xlu0 %906
      %908 = vrot.lane.b32.xlu0 %v888, 16
      %v909 = vpop.permute.xlu0 %908
      %v910 = vsel %vm893, %v907, %v909
      %v911 = vsel %vm893, %v909, %v907
      %v912 = vsel %vm856, %v887, %v911
      %v913 = vsel %vm857, %v888, %v910
      %914 = vrot.lane.b32.xlu0 %v878, 112
      %v915 = vpop.permute.xlu0 %914
      %916 = vrot.lane.b32.xlu0 %v879, 112
      %v917 = vpop.permute.xlu0 %916
      %vm918 = vcmp.lt.s32.totalorder %v846, 112
      %v919 = vsel %vm918, %v915, %v917
      %v920 = vsel %vm918, %v917, %v915
      %v921 = vsel %vm858, %v878, %v919
      %v922 = vsel %vm859, %v879, %v920
      %923 = vrot.lane.b32.xlu0 %v864, 112
      %v924 = vpop.permute.xlu0 %923
      %925 = vrot.lane.b32.xlu0 %v868, 112
      %v926 = vpop.permute.xlu0 %925
      %v927 = vsel %vm918, %v924, %v926
      %v928 = vsel %vm918, %v926, %v924
      %v929 = vsel %vm858, %v864, %v927
      %v930 = vsel %vm859, %v868, %v928
      %931 = vrot.lane.b32.xlu0 %v887, 112
      %v932 = vpop.permute.xlu0 %931
      %933 = vrot.lane.b32.xlu0 %v888, 112
      %v934 = vpop.permute.xlu0 %933
      %v935 = vsel %vm918, %v932, %v934
      %v936 = vsel %vm918, %v934, %v932
      %v937 = vsel %vm858, %v887, %v935
      %v938 = vsel %vm859, %v888, %v936
      %v941 = vrot.slane %v904, 7
      %v942 = vrot.slane %v905, 7
      %v947 = vrot.slane %v912, 6
      %v948 = vrot.slane %v913, 6
      %v953 = vrot.slane %v878, 5
      %v954 = vrot.slane %v879, 5
      %v959 = vrot.slane %v887, 3
      %v960 = vrot.slane %v888, 3
      %v965 = vrot.slane %v921, 2
      %v966 = vrot.slane %v922, 2
      %v971 = vrot.slane %v929, 1
      %v972 = vrot.slane %v930, 1
      %vm975 = vcmask 1040384
      %v976 = vsel %vm975, %v896, %v941
      %v977 = vsel %vm975, %v897, %v942
      %vm978 = vcmask 1041408
      %v979 = vsel %vm978, %v976, %v947
      %v980 = vsel %vm978, %v977, %v948
      %vm981 = vcmask 1042432
      %v982 = vsel %vm981, %v979, %v953
      %v983 = vsel %vm981, %v980, %v954
      %vm984 = vcmask 1043456
      %v985 = vsel %vm984, %v982, %v864
      %v986 = vsel %vm984, %v983, %v868
      %vm987 = vcmask 1044480
      %v988 = vsel %vm987, %v985, %v959
      %v989 = vsel %vm987, %v986, %v960
      %vm990 = vcmask 1045504
      %v991 = vsel %vm990, %v988, %v965
      %v992 = vsel %vm990, %v989, %v966
      %vm993 = vcmask 1046528
      %v994 = vsel %vm993, %v991, %v971
      %v995 = vsel %vm993, %v992, %v972
      %v996 = vpack.c.bf16 %v937, %v994
      %v997 = vpack.c.bf16 %v938, %v995
      %v998 = vld [vmem:[%s1] sm:$0x3]
      %v999 = vld [vmem:[%s2] sm:$0xf]
      %1001 = vset.pattern.permute.xlu0 0
      %1002 = vperm.xlu0 %1001, %v999
      %v1003 = vpop.permute.xlu0 %1002
      %vm1005 = vcmask 72704
      %v1007 = vsel %vm1005, %v998, 0
      %v1009 = vsel %vm984, 4294967295, 65535
      %v1010 = vsel %vm987, %v1009, 0
      %v1012 = vand.u32 %v996, %v1010
      %v1015 = vand.u32 %v997, %v1010
      %1017 = vmatprep.subr.bf16.mxu0 %v1015
      %1018 = vmatpush1.bf16.msra.mxu0 %v1012
      %1019 = vmatprep.subr.bf16.mxu0 0
      %1020 = vmatpush1.bf16.msra.mxu0 0
      %1021 = vmatprep.subr.bf16.mxu0 0
      %1022 = vmatpush1.bf16.msra.mxu0 0
      %1023 = vmatprep.subr.bf16.mxu0 0
      %1024 = vmatpush1.bf16.msra.mxu0 0
      %1025 = vmatprep.subr.bf16.mxu0 0
      %1026 = vmatpush1.bf16.msra.mxu0 0
      %1027 = vmatprep.subr.bf16.mxu0 0
      %1028 = vmatpush1.bf16.msra.mxu0 0
      %1029 = vmatprep.subr.bf16.mxu0 0
      %1030 = vmatpush1.bf16.msra.mxu0 0
      %1031 = vmatprep.subr.bf16.mxu0 0
      %1032 = vmatpush1.bf16.msra.mxu0 0
      %1033 = vmatprep.subr.bf16.mxu0 0
      %1034 = vmatpush1.bf16.msra.mxu0 0
      %1035 = vmatprep.subr.bf16.mxu0 0
      %1036 = vmatpush1.bf16.msra.mxu0 0
      %1037 = vmatprep.subr.bf16.mxu0 0
      %1038 = vmatpush1.bf16.msra.mxu0 0
      %1039 = vmatprep.subr.bf16.mxu0 0
      %1040 = vmatpush1.bf16.msra.mxu0 0
      %1041 = vmatprep.subr.bf16.mxu0 0
      %1042 = vmatpush1.bf16.msra.mxu0 0
      %1043 = vmatprep.subr.bf16.mxu0 0
      %1044 = vmatpush1.bf16.msra.mxu0 0
      %1045 = vmatprep.subr.bf16.mxu0 0
      %1046 = vmatpush1.bf16.msra.mxu0 0
      %1047 = vmatprep.subr.bf16.mxu0 0
      %1048 = vmatpush1.bf16.msra.mxu0 0
      %1049 = vmatprep.mubr.bf16.mxu0 0
      %1050 = vmatmul.mubr.bf16.gmra.mrb[0].mxu0 %v1007
      %v1051 = vpop.f32.mrb[0].mxu0
      %v1052 = vadd.f32 %v1003, %v1051
      %v1053 = vpop.f32.mrb[0].mxu0
      %v1054 = vadd.f32 %v1003, %v1053
      %v1055 = vpop.f32.mrb[0].mxu0
      %v1056 = vpop.f32.mrb[0].mxu0
      %1057 = vdwg.mxu0
      %vm1058 = vcmp.gt.f32.partialorder %v1052, 0.0
      %vm1059 = vcmp.gt.f32.partialorder %v1054, 0.0
      %v1060 = vmul.f32 %v1052, 1.442695
      %v1061 = vpow.pop %v1060
      %v1062 = vmul.f32 %v1054, 1.442695
      %v1063 = vpow.pop %v1062
      %v1064 = vsub.f32 %v1061, 1.0
      %v1065 = vsub.f32 %v1063, 1.0
      %v1066 = vsel %vm1058, %v1052, %v1064
      %v1067 = vsel %vm1059, %v1054, %v1065
      %1068 = vrot.lane.b32.xlu0 %v1066, 1
      %v1069 = vpop.permute.xlu0 %1068
      %1070 = vrot.lane.b32.xlu0 %v1067, 1
      %v1071 = vpop.permute.xlu0 %1070
      %v1072 = vsel %vm875, %v1069, %v1071
      %v1073 = vsel %vm875, %v1071, %v1069
      %v1074 = vsel %vm852, 1, 0
      %v1075 = vsel %vm853, 1, 0
      %vm1076 = vcmp.eq.s32.totalorder %v1074, 1
      %vm1077 = vcmp.eq.s32.totalorder %v1075, 1
      %v1078 = vsel %vm1076, %v1066, %v1073
      %v1079 = vsel %vm1077, %v1067, %v1072
      %1080 = vrot.lane.b32.xlu0 %v1066, 127
      %v1081 = vpop.permute.xlu0 %1080
      %1082 = vrot.lane.b32.xlu0 %v1067, 127
      %v1083 = vpop.permute.xlu0 %1082
      %v1084 = vsel %vm884, %v1081, %v1083
      %v1085 = vsel %vm884, %v1083, %v1081
      %v1086 = vsel %vm854, 1, 0
      %v1087 = vsel %vm855, 1, 0
      %vm1088 = vcmp.eq.s32.totalorder %v1086, 1
      %vm1089 = vcmp.eq.s32.totalorder %v1087, 1
      %v1090 = vsel %vm1088, %v1066, %v1084
      %v1091 = vsel %vm1089, %v1067, %v1085
      %1092 = vrot.lane.b32.xlu0 %v1078, 16
      %v1093 = vpop.permute.xlu0 %1092
      %1094 = vrot.lane.b32.xlu0 %v1079, 16
      %v1095 = vpop.permute.xlu0 %1094
      %v1096 = vsel %vm893, %v1093, %v1095
      %v1097 = vsel %vm893, %v1095, %v1093
      %v1098 = vsel %vm856, 1, 0
      %v1099 = vsel %vm857, 1, 0
      %vm1100 = vcmp.eq.s32.totalorder %v1098, 1
      %vm1101 = vcmp.eq.s32.totalorder %v1099, 1
      %v1102 = vsel %vm1100, %v1078, %v1097
      %v1103 = vsel %vm1101, %v1079, %v1096
      %1104 = vrot.lane.b32.xlu0 %v1066, 16
      %v1105 = vpop.permute.xlu0 %1104
      %1106 = vrot.lane.b32.xlu0 %v1067, 16
      %v1107 = vpop.permute.xlu0 %1106
      %v1108 = vsel %vm893, %v1105, %v1107
      %v1109 = vsel %vm893, %v1107, %v1105
      %v1110 = vsel %vm1100, %v1066, %v1109
      %v1111 = vsel %vm1101, %v1067, %v1108
      %1112 = vrot.lane.b32.xlu0 %v1090, 16
      %v1113 = vpop.permute.xlu0 %1112
      %1114 = vrot.lane.b32.xlu0 %v1091, 16
      %v1115 = vpop.permute.xlu0 %1114
      %v1116 = vsel %vm893, %v1113, %v1115
      %v1117 = vsel %vm893, %v1115, %v1113
      %v1118 = vsel %vm1100, %v1090, %v1117
      %v1119 = vsel %vm1101, %v1091, %v1116
      %1120 = vrot.lane.b32.xlu0 %v1078, 112
      %v1121 = vpop.permute.xlu0 %1120
      %1122 = vrot.lane.b32.xlu0 %v1079, 112
      %v1123 = vpop.permute.xlu0 %1122
      %v1124 = vsel %vm918, %v1121, %v1123
      %v1125 = vsel %vm918, %v1123, %v1121
      %v1126 = vsel %vm858, 1, 0
      %v1127 = vsel %vm859, 1, 0
      %vm1128 = vcmp.eq.s32.totalorder %v1126, 1
      %vm1129 = vcmp.eq.s32.totalorder %v1127, 1
      %v1130 = vsel %vm1128, %v1078, %v1124
      %v1131 = vsel %vm1129, %v1079, %v1125
      %1132 = vrot.lane.b32.xlu0 %v1066, 112
      %v1133 = vpop.permute.xlu0 %1132
      %1134 = vrot.lane.b32.xlu0 %v1067, 112
      %v1135 = vpop.permute.xlu0 %1134
      %v1136 = vsel %vm918, %v1133, %v1135
      %v1137 = vsel %vm918, %v1135, %v1133
      %v1138 = vsel %vm1128, %v1066, %v1136
      %v1139 = vsel %vm1129, %v1067, %v1137
      %1140 = vrot.lane.b32.xlu0 %v1090, 112
      %v1141 = vpop.permute.xlu0 %1140
      %1142 = vrot.lane.b32.xlu0 %v1091, 112
      %v1143 = vpop.permute.xlu0 %1142
      %v1144 = vsel %vm918, %v1141, %v1143
      %v1145 = vsel %vm918, %v1143, %v1141
      %v1146 = vsel %vm1128, %v1090, %v1144
      %v1147 = vsel %vm1129, %v1091, %v1145
      %v1150 = vrot.slane %v1110, 4
      %v1151 = vrot.slane %v1111, 4
      %v1156 = vrot.slane %v1078, 4
      %v1157 = vrot.slane %v1079, 4
      %v1162 = vrot.slane %v1090, 4
      %v1163 = vrot.slane %v1091, 4
      %v1168 = vrot.slane %v1138, 4
      %v1169 = vrot.slane %v1139, 4
      %v1172 = vsel %vm984, %v1102, %v1150
      %v1173 = vsel %vm984, %v1103, %v1151
      %v1174 = vsel %vm984, %v1118, %v1156
      %v1175 = vsel %vm984, %v1119, %v1157
      %v1176 = vsel %vm984, %v1066, %v1162
      %v1177 = vsel %vm984, %v1067, %v1163
      %v1178 = vsel %vm984, %v1130, %v1168
      %v1179 = vsel %vm984, %v1131, %v1169
      %v1180 = vpack.c.bf16 %v1174, %v1172
      %v1181 = vpack.c.bf16 %v1175, %v1173
      %v1182 = vpack.c.bf16 %v1178, %v1176
      %v1183 = vpack.c.bf16 %v1179, %v1177
      %v1184 = vpack.c.bf16 %v1146, %v1146
      %v1185 = vpack.c.bf16 %v1147, %v1147
      %v1186 = vld [vmem:[%s3] sm:$0x3]
      %v1187 = vld [vmem:[%s4] sm:$0xf]
      %1189 = vset.pattern.permute.xlu0 0
      %1190 = vperm.xlu0 %1189, %v1187
      %v1191 = vpop.permute.xlu0 %1190
      %vm1193 = vcmask 293888
      %v1195 = vsel %vm1193, %v1186, 0
      %v1198 = vsel %vm978, %v1184, 0
      %v1201 = vsel %vm978, %v1185, 0
      %1203 = vmatprep.subr.bf16.mxu0 %v1181
      %1204 = vmatpush1.bf16.msra.mxu0 %v1180
      %1205 = vmatprep.subr.bf16.mxu0 %v1183
      %1206 = vmatpush1.bf16.msra.mxu0 %v1182
      %1207 = vmatprep.subr.bf16.mxu0 %v1201
      %1208 = vmatpush1.bf16.msra.mxu0 %v1198
      %1209 = vmatprep.subr.bf16.mxu0 0
      %1210 = vmatpush1.bf16.msra.mxu0 0
      %1211 = vmatprep.subr.bf16.mxu0 0
      %1212 = vmatpush1.bf16.msra.mxu0 0
      %1213 = vmatprep.subr.bf16.mxu0 0
      %1214 = vmatpush1.bf16.msra.mxu0 0
      %1215 = vmatprep.subr.bf16.mxu0 0
      %1216 = vmatpush1.bf16.msra.mxu0 0
      %1217 = vmatprep.subr.bf16.mxu0 0
      %1218 = vmatpush1.bf16.msra.mxu0 0
      %1219 = vmatprep.subr.bf16.mxu0 0
      %1220 = vmatpush1.bf16.msra.mxu0 0
      %1221 = vmatprep.subr.bf16.mxu0 0
      %1222 = vmatpush1.bf16.msra.mxu0 0
      %1223 = vmatprep.subr.bf16.mxu0 0
      %1224 = vmatpush1.bf16.msra.mxu0 0
      %1225 = vmatprep.subr.bf16.mxu0 0
      %1226 = vmatpush1.bf16.msra.mxu0 0
      %1227 = vmatprep.subr.bf16.mxu0 0
      %1228 = vmatpush1.bf16.msra.mxu0 0
      %1229 = vmatprep.subr.bf16.mxu0 0
      %1230 = vmatpush1.bf16.msra.mxu0 0
      %1231 = vmatprep.subr.bf16.mxu0 0
      %1232 = vmatpush1.bf16.msra.mxu0 0
      %1233 = vmatprep.subr.bf16.mxu0 0
      %1234 = vmatpush1.bf16.msra.mxu0 0
      %1235 = vmatprep.mubr.bf16.mxu0 0
      %1236 = vmatmul.mubr.bf16.gmra.mrb[0].mxu0 %v1195
      %v1237 = vpop.f32.mrb[0].mxu0
      %v1238 = vadd.f32 %v1191, %v1237
      %v1239 = vpop.f32.mrb[0].mxu0
      %v1240 = vadd.f32 %v1191, %v1239
      %v1241 = vpop.f32.mrb[0].mxu0
      %v1242 = vpop.f32.mrb[0].mxu0
      %1243 = vdwg.mxu0
      %v1244 = vpack.c.bf16 %v1238, %v1238
      %v1245 = vpack.c.bf16 %v1240, %v1240
      %v1246 = vld [vmem:[%s13] sm:$0xf]
      %v1247 = vld [vmem:[%s13 + $0x4] sm:$0xf]
      %v1248 = vld [vmem:[%s13 + $0x8] sm:$0xf]
      %v1249 = vld [vmem:[%s13 + $0xc] sm:$0xf]
      %v1250 = vld [vmem:[%s13 + $0x10] sm:$0xf]
      %v1251 = vld [vmem:[%s13 + $0x14] sm:$0xf]
      %v1252 = vld [vmem:[%s13 + $0x18] sm:$0xf]
      %v1253 = vld [vmem:[%s13 + $0x1c] sm:$0xf]
      %v1254 = vld [vmem:[%s13 + $0x20] sm:$0xf]
      %v1255 = vld [vmem:[%s13 + $0x24] sm:$0xf]
      %v1256 = vld [vmem:[%s13 + $0x28] sm:$0xf]
      %v1257 = vld [vmem:[%s13 + $0x2c] sm:$0xf]
      %v1258 = vld [vmem:[%s13 + $0x30] sm:$0xf]
      %v1259 = vld [vmem:[%s13 + $0x34] sm:$0xf]
      %v1260 = vld [vmem:[%s13 + $0x38] sm:$0xf]
      %v1261 = vld [vmem:[%s13 + $0x3c] sm:$0xf]
      %v1262 = vld [vmem:[%s13 + $0x40] sm:$0xf]
      %v1263 = vld [vmem:[%s13 + $0x44] sm:$0xf]
      %v1264 = vld [vmem:[%s13 + $0x48] sm:$0xf]
      %v1265 = vld [vmem:[%s13 + $0x4c] sm:$0xf]
      %v1266 = vld [vmem:[%s13 + $0x50] sm:$0xf]
      %v1267 = vld [vmem:[%s13 + $0x54] sm:$0xf]
      %v1268 = vld [vmem:[%s13 + $0x58] sm:$0xf]
      %v1269 = vld [vmem:[%s13 + $0x5c] sm:$0xf]
      %v1270 = vld [vmem:[%s13 + $0x60] sm:$0xf]
      %v1271 = vld [vmem:[%s13 + $0x64] sm:$0xf]
      %v1272 = vld [vmem:[%s13 + $0x68] sm:$0xf]
      %v1273 = vld [vmem:[%s13 + $0x6c] sm:$0xf]
      %v1274 = vld [vmem:[%s13 + $0x70] sm:$0xf]
      %v1275 = vld [vmem:[%s13 + $0x74] sm:$0xf]
      %v1276 = vld [vmem:[%s13 + $0x78] sm:$0xf]
      %v1277 = vld [vmem:[%s13 + $0x7c] sm:$0xf]
      %v1310 = vunpack.c.l.b16 %v1246
      %v1311 = vunpack.c.l.b16 %v1247
      %v1312 = vunpack.c.l.b16 %v1248
      %v1313 = vunpack.c.l.b16 %v1249
      %v1314 = vunpack.c.l.b16 %v1250
      %v1315 = vunpack.c.l.b16 %v1251
      %v1316 = vunpack.c.l.b16 %v1252
      %v1317 = vunpack.c.l.b16 %v1253
      %v1318 = vunpack.c.l.b16 %v1254
      %v1319 = vunpack.c.l.b16 %v1255
      %v1320 = vunpack.c.l.b16 %v1256
      %v1321 = vunpack.c.l.b16 %v1257
      %v1322 = vunpack.c.l.b16 %v1258
      %v1323 = vunpack.c.l.b16 %v1259
      %v1324 = vunpack.c.l.b16 %v1260
      %v1325 = vunpack.c.l.b16 %v1261
      %v1326 = vunpack.c.l.b16 %v1262
      %v1327 = vunpack.c.l.b16 %v1263
      %v1328 = vunpack.c.l.b16 %v1264
      %v1329 = vunpack.c.l.b16 %v1265
      %v1330 = vunpack.c.l.b16 %v1266
      %v1331 = vunpack.c.l.b16 %v1267
      %v1332 = vunpack.c.l.b16 %v1268
      %v1333 = vunpack.c.l.b16 %v1269
      %v1334 = vunpack.c.l.b16 %v1270
      %v1335 = vunpack.c.l.b16 %v1271
      %v1336 = vunpack.c.l.b16 %v1272
      %v1337 = vunpack.c.l.b16 %v1273
      %v1338 = vunpack.c.l.b16 %v1274
      %v1339 = vunpack.c.l.b16 %v1275
      %v1340 = vunpack.c.l.b16 %v1276
      %v1341 = vunpack.c.l.b16 %v1277
      %v1342 = vpack.c.b16 %v1311, %v1310
      %v1343 = vpack.c.b16 %v1313, %v1312
      %v1344 = vpack.c.b16 %v1315, %v1314
      %v1345 = vpack.c.b16 %v1317, %v1316
      %v1346 = vpack.c.b16 %v1319, %v1318
      %v1347 = vpack.c.b16 %v1321, %v1320
      %v1348 = vpack.c.b16 %v1323, %v1322
      %v1349 = vpack.c.b16 %v1325, %v1324
      %v1350 = vpack.c.b16 %v1327, %v1326
      %v1351 = vpack.c.b16 %v1329, %v1328
      %v1352 = vpack.c.b16 %v1331, %v1330
      %v1353 = vpack.c.b16 %v1333, %v1332
      %v1354 = vpack.c.b16 %v1335, %v1334
      %v1355 = vpack.c.b16 %v1337, %v1336
      %v1356 = vpack.c.b16 %v1339, %v1338
      %v1357 = vpack.c.b16 %v1341, %v1340
      %1374 = vmatprep.subr.bf16.mxu0 0
      %1375 = vmatpush1.bf16.msra.mxu0 %v1342
      %1376 = vmatprep.subr.bf16.mxu0 0
      %1377 = vmatpush1.bf16.msra.mxu0 %v1343
      %1378 = vmatprep.subr.bf16.mxu0 0
      %1379 = vmatpush1.bf16.msra.mxu0 %v1344
      %1380 = vmatprep.subr.bf16.mxu0 0
      %1381 = vmatpush1.bf16.msra.mxu0 %v1345
      %1382 = vmatprep.subr.bf16.mxu0 0
      %1383 = vmatpush1.bf16.msra.mxu0 %v1346
      %1384 = vmatprep.subr.bf16.mxu0 0
      %1385 = vmatpush1.bf16.msra.mxu0 %v1347
      %1386 = vmatprep.subr.bf16.mxu0 0
      %1387 = vmatpush1.bf16.msra.mxu0 %v1348
      %1388 = vmatprep.subr.bf16.mxu0 0
      %1389 = vmatpush1.bf16.msra.mxu0 %v1349
      %1390 = vmatprep.subr.bf16.mxu0 0
      %1391 = vmatpush1.bf16.msra.mxu0 %v1350
      %1392 = vmatprep.subr.bf16.mxu0 0
      %1393 = vmatpush1.bf16.msra.mxu0 %v1351
      %1394 = vmatprep.subr.bf16.mxu0 0
      %1395 = vmatpush1.bf16.msra.mxu0 %v1352
      %1396 = vmatprep.subr.bf16.mxu0 0
      %1397 = vmatpush1.bf16.msra.mxu0 %v1353
      %1398 = vmatprep.subr.bf16.mxu0 0
      %1399 = vmatpush1.bf16.msra.mxu0 %v1354
      %1400 = vmatprep.subr.bf16.mxu0 0
      %1401 = vmatpush1.bf16.msra.mxu0 %v1355
      %1402 = vmatprep.subr.bf16.mxu0 0
      %1403 = vmatpush1.bf16.msra.mxu0 %v1356
      %1404 = vmatprep.subr.bf16.mxu0 0
      %1405 = vmatpush1.bf16.msra.mxu0 %v1357
      %1406 = vmatprep.mubr.bf16.mxu0 %v1245
      %1407 = vmatmul.mubr.bf16.gmra.mrb[0].mxu0 %v1244
      %v1408 = vpop.f32.mrb[0].mxu0
      %v1409 = vadd.f32 0.0, %v1408
      %v1410 = vpop.f32.mrb[0].mxu0
      %v1411 = vpop.f32.mrb[0].mxu0
      %v1412 = vpop.f32.mrb[0].mxu0
      %1413 = vdwg.mxu0
      %v1414 = vand.u32 %v846, 7
      %v1415 = vshra.s32 %v846, 3
      %vm1416 = vcmp.eq.s32.totalorder %v1414, 0
      %vm1417 = vcmp.eq.s32.totalorder %v1414, 7
      %vm1418 = vcmp.eq.s32.totalorder %v1415, 0
      %vm1419 = vcmp.eq.s32.totalorder %v1415, 7
      %1421 = vrot.lane.b32.xlu0 %v1409, 65
      %v1422 = vpop.permute.xlu0 %1421
      %1424 = vrot.lane.b32.xlu0 %v1409, 1
      %v1425 = vpop.permute.xlu0 %1424
      %vm1427 = vcmask 7168
      %v1428 = vsel %vm1427, %v1422, %v1425
      %v1429 = vsel %vm1416, 1, 0
      %vm1430 = vcmp.eq.s32.totalorder %v1429, 1
      %v1431 = vsel %vm1430, %v1409, %v1428
      %1432 = vrot.lane.b32.xlu0 %v1409, 127
      %v1433 = vpop.permute.xlu0 %1432
      %1435 = vrot.lane.b32.xlu0 %v1409, 63
      %v1436 = vpop.permute.xlu0 %1435
      %vm1438 = vcmask 515072
      %v1439 = vsel %vm1438, %v1433, %v1436
      %v1440 = vsel %vm1417, 1, 0
      %vm1441 = vcmp.eq.s32.totalorder %v1440, 1
      %v1442 = vsel %vm1441, %v1409, %v1439
      %1444 = vrot.lane.b32.xlu0 %v1431, 72
      %v1445 = vpop.permute.xlu0 %1444
      %1447 = vrot.lane.b32.xlu0 %v1431, 8
      %v1448 = vpop.permute.xlu0 %1447
      %vm1450 = vcmask 64512
      %v1451 = vsel %vm1450, %v1445, %v1448
      %v1452 = vsel %vm1418, 1, 0
      %vm1453 = vcmp.eq.s32.totalorder %v1452, 1
      %v1454 = vsel %vm1453, %v1431, %v1451
      %1455 = vrot.lane.b32.xlu0 %v1409, 72
      %v1456 = vpop.permute.xlu0 %1455
      %1458 = vrot.lane.b32.xlu0 %v1409, 8
      %v1459 = vpop.permute.xlu0 %1458
      %v1461 = vsel %vm1450, %v1456, %v1459
      %v1462 = vsel %vm1453, %v1409, %v1461
      %1464 = vrot.lane.b32.xlu0 %v1442, 72
      %v1465 = vpop.permute.xlu0 %1464
      %1467 = vrot.lane.b32.xlu0 %v1442, 8
      %v1468 = vpop.permute.xlu0 %1467
      %v1470 = vsel %vm1450, %v1465, %v1468
      %v1471 = vsel %vm1453, %v1442, %v1470
      %1472 = vrot.lane.b32.xlu0 %v1431, 120
      %v1473 = vpop.permute.xlu0 %1472
      %1475 = vrot.lane.b32.xlu0 %v1431, 56
      %v1476 = vpop.permute.xlu0 %1475
      %vm1478 = vcmask 457728
      %v1479 = vsel %vm1478, %v1473, %v1476
      %v1480 = vsel %vm1419, 1, 0
      %vm1481 = vcmp.eq.s32.totalorder %v1480, 1
      %v1482 = vsel %vm1481, %v1431, %v1479
      %1483 = vrot.lane.b32.xlu0 %v1409, 120
      %v1484 = vpop.permute.xlu0 %1483
      %1486 = vrot.lane.b32.xlu0 %v1409, 56
      %v1487 = vpop.permute.xlu0 %1486
      %v1489 = vsel %vm1478, %v1484, %v1487
      %v1490 = vsel %vm1481, %v1409, %v1489
      %1491 = vrot.lane.b32.xlu0 %v1442, 120
      %v1492 = vpop.permute.xlu0 %1491
      %1494 = vrot.lane.b32.xlu0 %v1442, 56
      %v1495 = vpop.permute.xlu0 %1494
      %v1497 = vsel %vm1478, %v1492, %v1495
      %v1498 = vsel %vm1481, %v1442, %v1497
      %v1500 = vrot.slane %v1462, 4
      %v1502 = vrot.slane %v1431, 4
      %v1504 = vrot.slane %v1442, 4
      %v1507 = vrot.slane %v1490, 4
      %v1509 = vsel %vm984, %v1454, %v1500
      %v1510 = vsel %vm984, %v1471, %v1502
      %v1511 = vsel %vm984, %v1409, %v1504
      %v1512 = vsel %vm984, %v1482, %v1507
      %v1513 = vpack.c.bf16 %v1510, %v1509
      %v1514 = vpack.c.bf16 %v1512, %v1511
      %v1515 = vpack.c.bf16 %v1498, %v1498
      %v1516 = vld [vmem:[%s5] sm:$0xf]
      %v1517 = vld [vmem:[%s6] sm:$0xff]
      %1519 = vset.pattern.permute.xlu0 0
      %1520 = vperm.xlu0 %1519, %v1517
      %v1521 = vpop.permute.xlu0 %1520
      %v1524 = vsel %vm1193, %v1516, 0
      %v1527 = vsel %vm978, %v1515, 0
      %1529 = vmatprep.subr.bf16.mxu0 0
      %1530 = vmatpush1.bf16.msra.mxu0 %v1513
      %1531 = vmatprep.subr.bf16.mxu0 0
      %1532 = vmatpush1.bf16.msra.mxu0 %v1514
      %1533 = vmatprep.subr.bf16.mxu0 0
      %1534 = vmatpush1.bf16.msra.mxu0 %v1527
      %1535 = vmatprep.subr.bf16.mxu0 0
      %1536 = vmatpush1.bf16.msra.mxu0 0
      %1537 = vmatprep.subr.bf16.mxu0 0
      %1538 = vmatpush1.bf16.msra.mxu0 0
      %1539 = vmatprep.subr.bf16.mxu0 0
      %1540 = vmatpush1.bf16.msra.mxu0 0
      %1541 = vmatprep.subr.bf16.mxu0 0
      %1542 = vmatpush1.bf16.msra.mxu0 0
      %1543 = vmatprep.subr.bf16.mxu0 0
      %1544 = vmatpush1.bf16.msra.mxu0 0
      %1545 = vmatprep.subr.bf16.mxu0 0
      %1546 = vmatpush1.bf16.msra.mxu0 0
      %1547 = vmatprep.subr.bf16.mxu0 0
      %1548 = vmatpush1.bf16.msra.mxu0 0
      %1549 = vmatprep.subr.bf16.mxu0 0
      %1550 = vmatpush1.bf16.msra.mxu0 0
      %1551 = vmatprep.subr.bf16.mxu0 0
      %1552 = vmatpush1.bf16.msra.mxu0 0
      %1553 = vmatprep.subr.bf16.mxu0 0
      %1554 = vmatpush1.bf16.msra.mxu0 0
      %1555 = vmatprep.subr.bf16.mxu0 0
      %1556 = vmatpush1.bf16.msra.mxu0 0
      %1557 = vmatprep.subr.bf16.mxu0 0
      %1558 = vmatpush1.bf16.msra.mxu0 0
      %1559 = vmatprep.subr.bf16.mxu0 0
      %1560 = vmatpush1.bf16.msra.mxu0 0
      %1561 = vmatprep.mubr.bf16.mxu0 0
      %1562 = vmatmul.mubr.bf16.gmra.mrb[0].mxu0 %v1524
      %v1563 = vpop.f32.mrb[0].mxu0
      %v1564 = vadd.f32 %v1521, %v1563
      %v1565 = vpop.f32.mrb[0].mxu0
      %v1566 = vpop.f32.mrb[0].mxu0
      %v1567 = vpop.f32.mrb[0].mxu0
      %1568 = vdwg.mxu0
      %vm1569 = vcmp.gt.f32.partialorder %v1564, 0.0
      %v1570 = vmul.f32 %v1564, 1.442695
      %v1571 = vpow.pop %v1570
      %v1572 = vsub.f32 %v1571, 1.0
      %v1573 = vsel %vm1569, %v1564, %v1572
      %1575 = vrot.lane.b32.xlu0 %v1573, 65
      %v1576 = vpop.permute.xlu0 %1575
      %1578 = vrot.lane.b32.xlu0 %v1573, 1
      %v1579 = vpop.permute.xlu0 %1578
      %v1581 = vsel %vm1427, %v1576, %v1579
      %v1582 = vsel %vm1430, %v1573, %v1581
      %1583 = vrot.lane.b32.xlu0 %v1573, 127
      %v1584 = vpop.permute.xlu0 %1583
      %1586 = vrot.lane.b32.xlu0 %v1573, 63
      %v1587 = vpop.permute.xlu0 %1586
      %v1589 = vsel %vm1438, %v1584, %v1587
      %v1590 = vsel %vm1441, %v1573, %v1589
      %1592 = vrot.lane.b32.xlu0 %v1582, 72
      %v1593 = vpop.permute.xlu0 %1592
      %1595 = vrot.lane.b32.xlu0 %v1582, 8
      %v1596 = vpop.permute.xlu0 %1595
      %v1598 = vsel %vm1450, %v1593, %v1596
      %v1599 = vsel %vm1453, %v1582, %v1598
      %1600 = vrot.lane.b32.xlu0 %v1573, 72
      %v1601 = vpop.permute.xlu0 %1600
      %1603 = vrot.lane.b32.xlu0 %v1573, 8
      %v1604 = vpop.permute.xlu0 %1603
      %v1606 = vsel %vm1450, %v1601, %v1604
      %v1607 = vsel %vm1453, %v1573, %v1606
      %1609 = vrot.lane.b32.xlu0 %v1590, 72
      %v1610 = vpop.permute.xlu0 %1609
      %1612 = vrot.lane.b32.xlu0 %v1590, 8
      %v1613 = vpop.permute.xlu0 %1612
      %v1615 = vsel %vm1450, %v1610, %v1613
      %v1616 = vsel %vm1453, %v1590, %v1615
      %1617 = vrot.lane.b32.xlu0 %v1582, 120
      %v1618 = vpop.permute.xlu0 %1617
      %1620 = vrot.lane.b32.xlu0 %v1582, 56
      %v1621 = vpop.permute.xlu0 %1620
      %v1623 = vsel %vm1478, %v1618, %v1621
      %v1624 = vsel %vm1481, %v1582, %v1623
      %1625 = vrot.lane.b32.xlu0 %v1573, 120
      %v1626 = vpop.permute.xlu0 %1625
      %1628 = vrot.lane.b32.xlu0 %v1573, 56
      %v1629 = vpop.permute.xlu0 %1628
      %v1631 = vsel %vm1478, %v1626, %v1629
      %v1632 = vsel %vm1481, %v1573, %v1631
      %1633 = vrot.lane.b32.xlu0 %v1590, 120
      %v1634 = vpop.permute.xlu0 %1633
      %1636 = vrot.lane.b32.xlu0 %v1590, 56
      %v1637 = vpop.permute.xlu0 %1636
      %v1639 = vsel %vm1478, %v1634, %v1637
      %v1640 = vsel %vm1481, %v1590, %v1639
      %v1641 = vpack.c.bf16 %v1607, %v1599
      %v1642 = vpack.c.bf16 %v1582, %v1616
      %v1643 = vpack.c.bf16 %v1590, %v1573
      %v1644 = vpack.c.bf16 %v1632, %v1624
      %v1645 = vpack.c.bf16 %v1640, %v1640
      %v1646 = vld [vmem:[%s7] sm:$0xf]
      %v1647 = vld [vmem:[%s8] sm:$0xff]
      %1649 = vset.pattern.permute.xlu0 0
      %1650 = vperm.xlu0 %1649, %v1647
      %v1651 = vpop.permute.xlu0 %1650
      %vm1653 = vcmask 588800
      %v1655 = vsel %vm1653, %v1646, 0
      %v1658 = vsel %vm984, %v1645, 0
      %1660 = vmatprep.subr.bf16.mxu0 0
      %1661 = vmatpush1.bf16.msra.mxu0 %v1641
      %1662 = vmatprep.subr.bf16.mxu0 0
      %1663 = vmatpush1.bf16.msra.mxu0 %v1642
      %1664 = vmatprep.subr.bf16.mxu0 0
      %1665 = vmatpush1.bf16.msra.mxu0 %v1643
      %1666 = vmatprep.subr.bf16.mxu0 0
      %1667 = vmatpush1.bf16.msra.mxu0 %v1644
      %1668 = vmatprep.subr.bf16.mxu0 0
      %1669 = vmatpush1.bf16.msra.mxu0 %v1658
      %1670 = vmatprep.subr.bf16.mxu0 0
      %1671 = vmatpush1.bf16.msra.mxu0 0
      %1672 = vmatprep.subr.bf16.mxu0 0
      %1673 = vmatpush1.bf16.msra.mxu0 0
      %1674 = vmatprep.subr.bf16.mxu0 0
      %1675 = vmatpush1.bf16.msra.mxu0 0
      %1676 = vmatprep.subr.bf16.mxu0 0
      %1677 = vmatpush1.bf16.msra.mxu0 0
      %1678 = vmatprep.subr.bf16.mxu0 0
      %1679 = vmatpush1.bf16.msra.mxu0 0
      %1680 = vmatprep.subr.bf16.mxu0 0
      %1681 = vmatpush1.bf16.msra.mxu0 0
      %1682 = vmatprep.subr.bf16.mxu0 0
      %1683 = vmatpush1.bf16.msra.mxu0 0
      %1684 = vmatprep.subr.bf16.mxu0 0
      %1685 = vmatpush1.bf16.msra.mxu0 0
      %1686 = vmatprep.subr.bf16.mxu0 0
      %1687 = vmatpush1.bf16.msra.mxu0 0
      %1688 = vmatprep.subr.bf16.mxu0 0
      %1689 = vmatpush1.bf16.msra.mxu0 0
      %1690 = vmatprep.subr.bf16.mxu0 0
      %1691 = vmatpush1.bf16.msra.mxu0 0
      %1692 = vmatprep.mubr.bf16.mxu0 0
      %1693 = vmatmul.mubr.bf16.gmra.mrb[0].mxu0 %v1655
      %v1694 = vpop.f32.mrb[0].mxu0
      %v1695 = vadd.f32 %v1651, %v1694
      %v1696 = vpop.f32.mrb[0].mxu0
      %v1697 = vpop.f32.mrb[0].mxu0
      %v1698 = vpop.f32.mrb[0].mxu0
      %1699 = vdwg.mxu0
      %v1700 = vpack.c.bf16 %v1695, %v1695
      %v1701 = vld [vmem:[%s14] sm:$0xf]
      %v1702 = vld [vmem:[%s14 + $0x4] sm:$0xf]
      %v1703 = vld [vmem:[%s14 + $0x8] sm:$0xf]
      %v1704 = vld [vmem:[%s14 + $0xc] sm:$0xf]
      %v1705 = vld [vmem:[%s14 + $0x10] sm:$0xf]
      %v1706 = vld [vmem:[%s14 + $0x14] sm:$0xf]
      %v1707 = vld [vmem:[%s14 + $0x18] sm:$0xf]
      %v1708 = vld [vmem:[%s14 + $0x1c] sm:$0xf]
      %v1717 = vunpack.c.l.b16 %v1701
      %v1718 = vunpack.c.l.b16 %v1702
      %v1719 = vunpack.c.l.b16 %v1703
      %v1720 = vunpack.c.l.b16 %v1704
      %v1721 = vunpack.c.l.b16 %v1705
      %v1722 = vunpack.c.l.b16 %v1706
      %v1723 = vunpack.c.l.b16 %v1707
      %v1724 = vunpack.c.l.b16 %v1708
      %v1725 = vpack.c.b16 %v1718, %v1717
      %v1726 = vpack.c.b16 %v1720, %v1719
      %v1727 = vpack.c.b16 %v1722, %v1721
      %v1728 = vpack.c.b16 %v1724, %v1723
      %vm1733 = vcmask 523264
      %v1735 = vsel %vm1733, %v1700, 0
      %1737 = vmatprep.subr.bf16.mxu0 0
      %1738 = vmatpush1.bf16.msra.mxu0 %v1725
      %1739 = vmatprep.subr.bf16.mxu0 0
      %1740 = vmatpush1.bf16.msra.mxu0 %v1726
      %1741 = vmatprep.subr.bf16.mxu0 0
      %1742 = vmatpush1.bf16.msra.mxu0 %v1727
      %1743 = vmatprep.subr.bf16.mxu0 0
      %1744 = vmatpush1.bf16.msra.mxu0 %v1728
      %1745 = vmatprep.subr.bf16.mxu0 0
      %1746 = vmatpush1.bf16.msra.mxu0 0
      %1747 = vmatprep.subr.bf16.mxu0 0
      %1748 = vmatpush1.bf16.msra.mxu0 0
      %1749 = vmatprep.subr.bf16.mxu0 0
      %1750 = vmatpush1.bf16.msra.mxu0 0
      %1751 = vmatprep.subr.bf16.mxu0 0
      %1752 = vmatpush1.bf16.msra.mxu0 0
      %1753 = vmatprep.subr.bf16.mxu0 0
      %1754 = vmatpush1.bf16.msra.mxu0 0
      %1755 = vmatprep.subr.bf16.mxu0 0
      %1756 = vmatpush1.bf16.msra.mxu0 0
      %1757 = vmatprep.subr.bf16.mxu0 0
      %1758 = vmatpush1.bf16.msra.mxu0 0
      %1759 = vmatprep.subr.bf16.mxu0 0
      %1760 = vmatpush1.bf16.msra.mxu0 0
      %1761 = vmatprep.subr.bf16.mxu0 0
      %1762 = vmatpush1.bf16.msra.mxu0 0
      %1763 = vmatprep.subr.bf16.mxu0 0
      %1764 = vmatpush1.bf16.msra.mxu0 0
      %1765 = vmatprep.subr.bf16.mxu0 0
      %1766 = vmatpush1.bf16.msra.mxu0 0
      %1767 = vmatprep.subr.bf16.mxu0 0
      %1768 = vmatpush1.bf16.msra.mxu0 0
      %1769 = vmatprep.mubr.bf16.mxu0 0
      %1770 = vmatmul.mubr.bf16.gmra.mrb[0].mxu0 %v1735
      %v1771 = vpop.f32.mrb[0].mxu0
      %v1772 = vadd.f32 0.0, %v1771
      %v1773 = vpop.f32.mrb[0].mxu0
      %v1774 = vpop.f32.mrb[0].mxu0
      %v1775 = vpop.f32.mrb[0].mxu0
      %1776 = vdwg.mxu0
      %v1777 = vand.u32 %v846, 3
      %v1778 = vshra.s32 %v846, 2
      %vm1779 = vcmp.eq.s32.totalorder %v1777, 0
      %vm1780 = vcmp.eq.s32.totalorder %v1777, 3
      %vm1781 = vcmp.eq.s32.totalorder %v1778, 0
      %vm1782 = vcmp.eq.s32.totalorder %v1778, 3
      %1784 = vrot.lane.b32.xlu0 %v1772, 113
      %v1785 = vpop.permute.xlu0 %1784
      %1787 = vrot.lane.b32.xlu0 %v1772, 1
      %v1788 = vpop.permute.xlu0 %1787
      %v1790 = vsel %vm1427, %v1785, %v1788
      %v1791 = vsel %vm1779, 1, 0
      %vm1792 = vcmp.eq.s32.totalorder %v1791, 1
      %v1793 = vsel %vm1792, %v1772, %v1790
      %1794 = vrot.lane.b32.xlu0 %v1772, 127
      %v1795 = vpop.permute.xlu0 %1794
      %1797 = vrot.lane.b32.xlu0 %v1772, 15
      %v1798 = vpop.permute.xlu0 %1797
      %vm1800 = vcmask 121856
      %v1801 = vsel %vm1800, %v1795, %v1798
      %v1802 = vsel %vm1780, 1, 0
      %vm1803 = vcmp.eq.s32.totalorder %v1802, 1
      %v1804 = vsel %vm1803, %v1772, %v1801
      %1806 = vrot.lane.b32.xlu0 %v1793, 116
      %v1807 = vpop.permute.xlu0 %1806
      %1809 = vrot.lane.b32.xlu0 %v1793, 4
      %v1810 = vpop.permute.xlu0 %1809
      %vm1812 = vcmask 31744
      %v1813 = vsel %vm1812, %v1807, %v1810
      %v1814 = vsel %vm1781, 1, 0
      %vm1815 = vcmp.eq.s32.totalorder %v1814, 1
      %v1816 = vsel %vm1815, %v1793, %v1813
      %1817 = vrot.lane.b32.xlu0 %v1772, 116
      %v1818 = vpop.permute.xlu0 %1817
      %1820 = vrot.lane.b32.xlu0 %v1772, 4
      %v1821 = vpop.permute.xlu0 %1820
      %v1823 = vsel %vm1812, %v1818, %v1821
      %v1824 = vsel %vm1815, %v1772, %v1823
      %1826 = vrot.lane.b32.xlu0 %v1804, 116
      %v1827 = vpop.permute.xlu0 %1826
      %1829 = vrot.lane.b32.xlu0 %v1804, 4
      %v1830 = vpop.permute.xlu0 %1829
      %v1832 = vsel %vm1812, %v1827, %v1830
      %v1833 = vsel %vm1815, %v1804, %v1832
      %1834 = vrot.lane.b32.xlu0 %v1793, 124
      %v1835 = vpop.permute.xlu0 %1834
      %1837 = vrot.lane.b32.xlu0 %v1793, 12
      %v1838 = vpop.permute.xlu0 %1837
      %vm1840 = vcmask 97280
      %v1841 = vsel %vm1840, %v1835, %v1838
      %v1842 = vsel %vm1782, 1, 0
      %vm1843 = vcmp.eq.s32.totalorder %v1842, 1
      %v1844 = vsel %vm1843, %v1793, %v1841
      %1845 = vrot.lane.b32.xlu0 %v1772, 124
      %v1846 = vpop.permute.xlu0 %1845
      %1848 = vrot.lane.b32.xlu0 %v1772, 12
      %v1849 = vpop.permute.xlu0 %1848
      %v1851 = vsel %vm1840, %v1846, %v1849
      %v1852 = vsel %vm1843, %v1772, %v1851
      %1853 = vrot.lane.b32.xlu0 %v1804, 124
      %v1854 = vpop.permute.xlu0 %1853
      %1856 = vrot.lane.b32.xlu0 %v1804, 12
      %v1857 = vpop.permute.xlu0 %1856
      %v1859 = vsel %vm1840, %v1854, %v1857
      %v1860 = vsel %vm1843, %v1804, %v1859
      %v1861 = vpack.c.bf16 %v1824, %v1816
      %v1862 = vpack.c.bf16 %v1793, %v1833
      %v1863 = vpack.c.bf16 %v1804, %v1772
      %v1864 = vpack.c.bf16 %v1852, %v1844
      %v1865 = vpack.c.bf16 %v1860, %v1860
      %v1866 = vld [vmem:[%s9] sm:$0xf]
      %v1867 = vld [vmem:[%s9 + $0x4] sm:$0xf]
      %v1868 = vld [vmem:[%s10] sm:$0xff]
      %v1869 = vld [vmem:[%s10 + $0x8] sm:$0xff]
      %1871 = vset.pattern.permute.xlu0 0
      %1872 = vperm.xlu0 %1871, %v1868
      %v1873 = vpop.permute.xlu0 %1872
      %1876 = vset.pattern.permute.xlu0 0
      %1877 = vperm.xlu0 %1876, %v1869
      %v1878 = vpop.permute.xlu0 %1877
      %v1882 = vunpack.c.l.b16 %v1866
      %v1883 = vunpack.c.l.b16 %v1867
      %v1884 = vpack.c.b16 %v1883, %v1882
      %v1886 = vsel %vm1653, %v1884, 0
      %v1889 = vsel %vm984, %v1865, 0
      %1891 = vmatprep.subr.bf16.mxu0 0
      %1892 = vmatpush1.bf16.msra.mxu0 %v1861
      %1893 = vmatprep.subr.bf16.mxu0 0
      %1894 = vmatpush1.bf16.msra.mxu0 %v1862
      %1895 = vmatprep.subr.bf16.mxu0 0
      %1896 = vmatpush1.bf16.msra.mxu0 %v1863
      %1897 = vmatprep.subr.bf16.mxu0 0
      %1898 = vmatpush1.bf16.msra.mxu0 %v1864
      %1899 = vmatprep.subr.bf16.mxu0 0
      %1900 = vmatpush1.bf16.msra.mxu0 %v1889
      %1901 = vmatprep.subr.bf16.mxu0 0
      %1902 = vmatpush1.bf16.msra.mxu0 0
      %1903 = vmatprep.subr.bf16.mxu0 0
      %1904 = vmatpush1.bf16.msra.mxu0 0
      %1905 = vmatprep.subr.bf16.mxu0 0
      %1906 = vmatpush1.bf16.msra.mxu0 0
      %1907 = vmatprep.subr.bf16.mxu0 0
      %1908 = vmatpush1.bf16.msra.mxu0 0
      %1909 = vmatprep.subr.bf16.mxu0 0
      %1910 = vmatpush1.bf16.msra.mxu0 0
      %1911 = vmatprep.subr.bf16.mxu0 0
      %1912 = vmatpush1.bf16.msra.mxu0 0
      %1913 = vmatprep.subr.bf16.mxu0 0
      %1914 = vmatpush1.bf16.msra.mxu0 0
      %1915 = vmatprep.subr.bf16.mxu0 0
      %1916 = vmatpush1.bf16.msra.mxu0 0
      %1917 = vmatprep.subr.bf16.mxu0 0
      %1918 = vmatpush1.bf16.msra.mxu0 0
      %1919 = vmatprep.subr.bf16.mxu0 0
      %1920 = vmatpush1.bf16.msra.mxu0 0
      %1921 = vmatprep.subr.bf16.mxu0 0
      %1922 = vmatpush1.bf16.msra.mxu0 0
      %1923 = vmatprep.mubr.bf16.mxu0 0
      %1924 = vmatmul.mubr.bf16.gmra.mrb[0].mxu0 %v1886
      %v1925 = vpop.f32.mrb[0].mxu0
      %v1926 = vadd.f32 %v1873, %v1925
      %v1927 = vpop.f32.mrb[0].mxu0
      %v1928 = vpop.f32.mrb[0].mxu0
      %v1929 = vadd.f32 %v1878, %v1928
      %v1930 = vpop.f32.mrb[0].mxu0
      %1931 = vdwg.mxu0
      %vm1932 = vcmp.gt.f32.partialorder %v1926, 0.0
      %vm1933 = vcmp.gt.f32.partialorder %v1929, 0.0
      %v1934 = vmul.f32 %v1926, 1.442695
      %v1935 = vpow.pop %v1934
      %v1936 = vmul.f32 %v1929, 1.442695
      %v1937 = vpow.pop %v1936
      %v1938 = vsub.f32 %v1935, 1.0
      %v1939 = vsub.f32 %v1937, 1.0
      %v1940 = vsel %vm1932, %v1926, %v1938
      %v1941 = vsel %vm1933, %v1929, %v1939
      %1944 = vrot.lane.b32.xlu0 %v1940, 113
      %v1945 = vpop.permute.xlu0 %1944
      %1946 = vrot.lane.b32.xlu0 %v1941, 113
      %v1947 = vpop.permute.xlu0 %1946
      %1950 = vrot.lane.b32.xlu0 %v1940, 1
      %v1951 = vpop.permute.xlu0 %1950
      %1952 = vrot.lane.b32.xlu0 %v1941, 1
      %v1953 = vpop.permute.xlu0 %1952
      %v1956 = vsel %vm1427, %v1945, %v1951
      %v1957 = vsel %vm1427, %v1947, %v1953
      %v1958 = vsel %vm1792, %v1940, %v1956
      %v1959 = vsel %vm1792, %v1941, %v1957
      %1960 = vrot.lane.b32.xlu0 %v1940, 127
      %v1961 = vpop.permute.xlu0 %1960
      %1962 = vrot.lane.b32.xlu0 %v1941, 127
      %v1963 = vpop.permute.xlu0 %1962
      %1966 = vrot.lane.b32.xlu0 %v1940, 15
      %v1967 = vpop.permute.xlu0 %1966
      %1968 = vrot.lane.b32.xlu0 %v1941, 15
      %v1969 = vpop.permute.xlu0 %1968
      %v1972 = vsel %vm1800, %v1961, %v1967
      %v1973 = vsel %vm1800, %v1963, %v1969
      %v1974 = vsel %vm1803, %v1940, %v1972
      %v1975 = vsel %vm1803, %v1941, %v1973
      %1978 = vrot.lane.b32.xlu0 %v1958, 116
      %v1979 = vpop.permute.xlu0 %1978
      %1980 = vrot.lane.b32.xlu0 %v1959, 116
      %v1981 = vpop.permute.xlu0 %1980
      %1984 = vrot.lane.b32.xlu0 %v1958, 4
      %v1985 = vpop.permute.xlu0 %1984
      %1986 = vrot.lane.b32.xlu0 %v1959, 4
      %v1987 = vpop.permute.xlu0 %1986
      %v1990 = vsel %vm1812, %v1979, %v1985
      %v1991 = vsel %vm1812, %v1981, %v1987
      %v1992 = vsel %vm1815, %v1958, %v1990
      %v1993 = vsel %vm1815, %v1959, %v1991
      %1994 = vrot.lane.b32.xlu0 %v1940, 116
      %v1995 = vpop.permute.xlu0 %1994
      %1996 = vrot.lane.b32.xlu0 %v1941, 116
      %v1997 = vpop.permute.xlu0 %1996
      %2000 = vrot.lane.b32.xlu0 %v1940, 4
      %v2001 = vpop.permute.xlu0 %2000
      %2002 = vrot.lane.b32.xlu0 %v1941, 4
      %v2003 = vpop.permute.xlu0 %2002
      %v2006 = vsel %vm1812, %v1995, %v2001
      %v2007 = vsel %vm1812, %v1997, %v2003
      %v2008 = vsel %vm1815, %v1940, %v2006
      %v2009 = vsel %vm1815, %v1941, %v2007
      %2012 = vrot.lane.b32.xlu0 %v1974, 116
      %v2013 = vpop.permute.xlu0 %2012
      %2014 = vrot.lane.b32.xlu0 %v1975, 116
      %v2015 = vpop.permute.xlu0 %2014
      %2018 = vrot.lane.b32.xlu0 %v1974, 4
      %v2019 = vpop.permute.xlu0 %2018
      %2020 = vrot.lane.b32.xlu0 %v1975, 4
      %v2021 = vpop.permute.xlu0 %2020
      %v2024 = vsel %vm1812, %v2013, %v2019
      %v2025 = vsel %vm1812, %v2015, %v2021
      %v2026 = vsel %vm1815, %v1974, %v2024
      %v2027 = vsel %vm1815, %v1975, %v2025
      %2028 = vrot.lane.b32.xlu0 %v1958, 124
      %v2029 = vpop.permute.xlu0 %2028
      %2030 = vrot.lane.b32.xlu0 %v1959, 124
      %v2031 = vpop.permute.xlu0 %2030
      %2034 = vrot.lane.b32.xlu0 %v1958, 12
      %v2035 = vpop.permute.xlu0 %2034
      %2036 = vrot.lane.b32.xlu0 %v1959, 12
      %v2037 = vpop.permute.xlu0 %2036
      %v2040 = vsel %vm1840, %v2029, %v2035
      %v2041 = vsel %vm1840, %v2031, %v2037
      %v2042 = vsel %vm1843, %v1958, %v2040
      %v2043 = vsel %vm1843, %v1959, %v2041
      %2044 = vrot.lane.b32.xlu0 %v1940, 124
      %v2045 = vpop.permute.xlu0 %2044
      %2046 = vrot.lane.b32.xlu0 %v1941, 124
      %v2047 = vpop.permute.xlu0 %2046
      %2050 = vrot.lane.b32.xlu0 %v1940, 12
      %v2051 = vpop.permute.xlu0 %2050
      %2052 = vrot.lane.b32.xlu0 %v1941, 12
      %v2053 = vpop.permute.xlu0 %2052
      %v2056 = vsel %vm1840, %v2045, %v2051
      %v2057 = vsel %vm1840, %v2047, %v2053
      %v2058 = vsel %vm1843, %v1940, %v2056
      %v2059 = vsel %vm1843, %v1941, %v2057
      %2060 = vrot.lane.b32.xlu0 %v1974, 124
      %v2061 = vpop.permute.xlu0 %2060
      %2062 = vrot.lane.b32.xlu0 %v1975, 124
      %v2063 = vpop.permute.xlu0 %2062
      %2066 = vrot.lane.b32.xlu0 %v1974, 12
      %v2067 = vpop.permute.xlu0 %2066
      %2068 = vrot.lane.b32.xlu0 %v1975, 12
      %v2069 = vpop.permute.xlu0 %2068
      %v2072 = vsel %vm1840, %v2061, %v2067
      %v2073 = vsel %vm1840, %v2063, %v2069
      %v2074 = vsel %vm1843, %v1974, %v2072
      %v2075 = vsel %vm1843, %v1975, %v2073
      %v2076 = vpack.c.bf16 %v1993, %v1992
      %v2077 = vpack.c.bf16 %v2009, %v2008
      %v2078 = vpack.c.bf16 %v2027, %v2026
      %v2079 = vpack.c.bf16 %v1959, %v1958
      %v2080 = vpack.c.bf16 %v1941, %v1940
      %v2081 = vpack.c.bf16 %v1975, %v1974
      %v2082 = vpack.c.bf16 %v2043, %v2042
      %v2083 = vpack.c.bf16 %v2059, %v2058
      %v2084 = vpack.c.bf16 %v2075, %v2074
      %v2085 = vld [vmem:[%s11] sm:$0xff]
      %v2086 = vld [vmem:[%s12] sm:$0xff]
      %2088 = vset.pattern.permute.xlu0 0
      %2089 = vperm.xlu0 %2088, %v2086
      %v2090 = vpop.permute.xlu0 %2089
      %v2093 = vunpack.c.l.b16 %v2085
      %v2094 = vunpack.c.h.b16 %v2085
      %v2095 = vpack.c.b16 %v2093, %v2093
      %v2096 = vpack.c.b16 %v2094, %v2094
      %vm2098 = vcmask 130048
      %v2100 = vsel %vm2098, %v2096, 0
      %2102 = vmatprep.subr.bf16.mxu0 0
      %2103 = vmatpush1.bf16.msra.mxu0 %v2076
      %2104 = vmatprep.subr.bf16.mxu0 0
      %2105 = vmatpush1.bf16.msra.mxu0 %v2077
      %2106 = vmatprep.subr.bf16.mxu0 0
      %2107 = vmatpush1.bf16.msra.mxu0 %v2078
      %2108 = vmatprep.subr.bf16.mxu0 0
      %2109 = vmatpush1.bf16.msra.mxu0 %v2079
      %2110 = vmatprep.subr.bf16.mxu0 0
      %2111 = vmatpush1.bf16.msra.mxu0 %v2080
      %2112 = vmatprep.subr.bf16.mxu0 0
      %2113 = vmatpush1.bf16.msra.mxu0 %v2081
      %2114 = vmatprep.subr.bf16.mxu0 0
      %2115 = vmatpush1.bf16.msra.mxu0 %v2082
      %2116 = vmatprep.subr.bf16.mxu0 0
      %2117 = vmatpush1.bf16.msra.mxu0 %v2083
      %2118 = vmatprep.subr.bf16.mxu0 0
      %2119 = vmatpush1.bf16.msra.mxu0 %v2084
      %2120 = vmatprep.subr.bf16.mxu0 0
      %2121 = vmatpush1.bf16.msra.mxu0 0
      %2122 = vmatprep.subr.bf16.mxu0 0
      %2123 = vmatpush1.bf16.msra.mxu0 0
      %2124 = vmatprep.subr.bf16.mxu0 0
      %2125 = vmatpush1.bf16.msra.mxu0 0
      %2126 = vmatprep.subr.bf16.mxu0 0
      %2127 = vmatpush1.bf16.msra.mxu0 0
      %2128 = vmatprep.subr.bf16.mxu0 0
      %2129 = vmatpush1.bf16.msra.mxu0 0
      %2130 = vmatprep.subr.bf16.mxu0 0
      %2131 = vmatpush1.bf16.msra.mxu0 0
      %2132 = vmatprep.subr.bf16.mxu0 0
      %2133 = vmatpush1.bf16.msra.mxu0 0
      %2134 = vmatprep.mubr.bf16.mxu0 %v2100
      %2135 = vmatmul.mubr.bf16.gmra.mrb[0].mxu0 %v2095
      %v2136 = vpop.f32.mrb[0].mxu0
      %v2137 = vadd.f32 %v2090, %v2136
      %v2138 = vpop.f32.mrb[0].mxu0
      %v2139 = vpop.f32.mrb[0].mxu0
      %v2140 = vpop.f32.mrb[0].mxu0
      %2141 = vdwg.mxu0
      %v2142 = vld [vmem:[%s15] sm:$0xf]
      %v2143 = vld [vmem:[%s15 + $0x4] sm:$0xf]
      %v2144 = vld [vmem:[%s15 + $0x8] sm:$0xf]
      %v2145 = vld [vmem:[%s15 + $0xc] sm:$0xf]
      %v2146 = vpack.c.bf16 %v2137, %v2137
      %v2151 = vunpack.c.l.b16 %v2142
      %v2152 = vunpack.c.l.b16 %v2143
      %v2153 = vunpack.c.l.b16 %v2144
      %v2154 = vunpack.c.l.b16 %v2145
      %v2155 = vpack.c.b16 %v2152, %v2151
      %v2156 = vpack.c.b16 %v2154, %v2153
      %v2158 = vsel %vm1450, %v2155, 0
      %v2161 = vsel %vm1450, %v2156, 0
      %v2164 = vsel %vm984, %v2146, 0
      %2166 = vmatprep.subr.bf16.mxu0 0
      %2167 = vmatpush1.bf16.msra.mxu0 %v2164
      %2168 = vmatprep.subr.bf16.mxu0 0
      %2169 = vmatpush1.bf16.msra.mxu0 0
      %2170 = vmatprep.subr.bf16.mxu0 0
      %2171 = vmatpush1.bf16.msra.mxu0 0
      %2172 = vmatprep.subr.bf16.mxu0 0
      %2173 = vmatpush1.bf16.msra.mxu0 0
      %2174 = vmatprep.subr.bf16.mxu0 0
      %2175 = vmatpush1.bf16.msra.mxu0 0
      %2176 = vmatprep.subr.bf16.mxu0 0
      %2177 = vmatpush1.bf16.msra.mxu0 0
      %2178 = vmatprep.subr.bf16.mxu0 0
      %2179 = vmatpush1.bf16.msra.mxu0 0
      %2180 = vmatprep.subr.bf16.mxu0 0
      %2181 = vmatpush1.bf16.msra.mxu0 0
      %2182 = vmatprep.subr.bf16.mxu0 0
      %2183 = vmatpush1.bf16.msra.mxu0 0
      %2184 = vmatprep.subr.bf16.mxu0 0
      %2185 = vmatpush1.bf16.msra.mxu0 0
      %2186 = vmatprep.subr.bf16.mxu0 0
      %2187 = vmatpush1.bf16.msra.mxu0 0
      %2188 = vmatprep.subr.bf16.mxu0 0
      %2189 = vmatpush1.bf16.msra.mxu0 0
      %2190 = vmatprep.subr.bf16.mxu0 0
      %2191 = vmatpush1.bf16.msra.mxu0 0
      %2192 = vmatprep.subr.bf16.mxu0 0
      %2193 = vmatpush1.bf16.msra.mxu0 0
      %2194 = vmatprep.subr.bf16.mxu0 0
      %2195 = vmatpush1.bf16.msra.mxu0 0
      %2196 = vmatprep.subr.bf16.mxu0 0
      %2197 = vmatpush1.bf16.msra.mxu0 0
      %2198 = vmatprep.mubr.bf16.mxu0 0
      %2199 = vmatmul.mubr.bf16.gmra.mrb[0].mxu0 %v2158
      %v2200 = vpop.f32.mrb[0].mxu0
      %v2201 = vadd.f32 0.0, %v2200
      %v2202 = vpop.f32.mrb[0].mxu0
      %v2203 = vpop.f32.mrb[0].mxu0
      %v2204 = vadd.f32 0.0, %v2203
      %v2205 = vpop.f32.mrb[0].mxu0
      %2206 = vmatprep.mubr.bf16.mxu0 0
      %2207 = vmatmul.mubr.bf16.gmra.mrb[0].mxu0 %v2161
      %v2208 = vpop.f32.mrb[0].mxu0
      %v2209 = vadd.f32 0.0, %v2208
      %v2210 = vpop.f32.mrb[0].mxu0
      %v2211 = vpop.f32.mrb[0].mxu0
      %v2212 = vadd.f32 0.0, %v2211
      %v2213 = vpop.f32.mrb[0].mxu0
      %2214 = vdwg.mxu0
      %v2215 = vpack.c.bf16 %v2204, %v2201
      %v2216 = vpack.c.bf16 %v2212, %v2209
      %v2217 = vld [vmem:[%s16] sm:$0xf]
      %v2218 = vld [vmem:[%s16 + $0x4] sm:$0xf]
      %s2219 = scalar_lea.vmem %s16, 8
      %v2220 = vld [vmem:[%s2219] sm:$0xf]
      %v2221 = vld [vmem:[%s2219 + $0x4] sm:$0xf]
      %v2223 = vrot.slane %v2215, 4
      %v2226 = vunpack.c.l.b16 %v2220
      %v2227 = vunpack.c.l.b16 %v2221
      %v2228 = vpack.c.b16 %v2227, %v2226
      %v2231 = vsel %vm2098, %v2223, 0
      %2233 = vmatprep.subr.bf16.mxu0 0
      %2234 = vmatpush1.bf16.msra.mxu0 %v2228
      %2235 = vmatprep.subr.bf16.mxu0 0
      %2236 = vmatpush1.bf16.msra.mxu0 0
      %2237 = vmatprep.subr.bf16.mxu0 0
      %2238 = vmatpush1.bf16.msra.mxu0 0
      %2239 = vmatprep.subr.bf16.mxu0 0
      %2240 = vmatpush1.bf16.msra.mxu0 0
      %2241 = vmatprep.subr.bf16.mxu0 0
      %2242 = vmatpush1.bf16.msra.mxu0 0
      %2243 = vmatprep.subr.bf16.mxu0 0
      %2244 = vmatpush1.bf16.msra.mxu0 0
      %2245 = vmatprep.subr.bf16.mxu0 0
      %2246 = vmatpush1.bf16.msra.mxu0 0
      %2247 = vmatprep.subr.bf16.mxu0 0
      %2248 = vmatpush1.bf16.msra.mxu0 0
      %2249 = vmatprep.subr.bf16.mxu0 0
      %2250 = vmatpush1.bf16.msra.mxu0 0
      %2251 = vmatprep.subr.bf16.mxu0 0
      %2252 = vmatpush1.bf16.msra.mxu0 0
      %2253 = vmatprep.subr.bf16.mxu0 0
      %2254 = vmatpush1.bf16.msra.mxu0 0
      %2255 = vmatprep.subr.bf16.mxu0 0
      %2256 = vmatpush1.bf16.msra.mxu0 0
      %2257 = vmatprep.subr.bf16.mxu0 0
      %2258 = vmatpush1.bf16.msra.mxu0 0
      %2259 = vmatprep.subr.bf16.mxu0 0
      %2260 = vmatpush1.bf16.msra.mxu0 0
      %2261 = vmatprep.subr.bf16.mxu0 0
      %2262 = vmatpush1.bf16.msra.mxu0 0
      %2263 = vmatprep.subr.bf16.mxu0 0
      %2264 = vmatpush1.bf16.msra.mxu0 0
      %2265 = vmatprep.mubr.bf16.mxu0 0
      %2266 = vmatmul.mubr.bf16.gmra.mrb[0].mxu0 %v2231
      %v2267 = vpop.f32.mrb[0].mxu0
      %v2268 = vadd.f32 0.0, %v2267
      %v2269 = vpop.f32.mrb[0].mxu0
      %v2270 = vpop.f32.mrb[0].mxu0
      %v2271 = vpop.f32.mrb[0].mxu0
      %2272 = vdwg.mxu0
      %v2275 = vunpack.c.l.b16 %v2217
      %v2276 = vunpack.c.l.b16 %v2218
      %v2277 = vpack.c.b16 %v2276, %v2275
      %v2280 = vsel %vm2098, %v2215, 0
      %2282 = vmatprep.subr.bf16.mxu0 0
      %2283 = vmatpush1.bf16.msra.mxu0 %v2277
      %2284 = vmatprep.subr.bf16.mxu0 0
      %2285 = vmatpush1.bf16.msra.mxu0 0
      %2286 = vmatprep.subr.bf16.mxu0 0
      %2287 = vmatpush1.bf16.msra.mxu0 0
      %2288 = vmatprep.subr.bf16.mxu0 0
      %2289 = vmatpush1.bf16.msra.mxu0 0
      %2290 = vmatprep.subr.bf16.mxu0 0
      %2291 = vmatpush1.bf16.msra.mxu0 0
      %2292 = vmatprep.subr.bf16.mxu0 0
      %2293 = vmatpush1.bf16.msra.mxu0 0
      %2294 = vmatprep.subr.bf16.mxu0 0
      %2295 = vmatpush1.bf16.msra.mxu0 0
      %2296 = vmatprep.subr.bf16.mxu0 0
      %2297 = vmatpush1.bf16.msra.mxu0 0
      %2298 = vmatprep.subr.bf16.mxu0 0
      %2299 = vmatpush1.bf16.msra.mxu0 0
      %2300 = vmatprep.subr.bf16.mxu0 0
      %2301 = vmatpush1.bf16.msra.mxu0 0
      %2302 = vmatprep.subr.bf16.mxu0 0
      %2303 = vmatpush1.bf16.msra.mxu0 0
      %2304 = vmatprep.subr.bf16.mxu0 0
      %2305 = vmatpush1.bf16.msra.mxu0 0
      %2306 = vmatprep.subr.bf16.mxu0 0
      %2307 = vmatpush1.bf16.msra.mxu0 0
      %2308 = vmatprep.subr.bf16.mxu0 0
      %2309 = vmatpush1.bf16.msra.mxu0 0
      %2310 = vmatprep.subr.bf16.mxu0 0
      %2311 = vmatpush1.bf16.msra.mxu0 0
      %2312 = vmatprep.subr.bf16.mxu0 0
      %2313 = vmatpush1.bf16.msra.mxu0 0
      %2314 = vmatprep.mubr.bf16.mxu0 0
      %2315 = vmatmul.mubr.bf16.gmra.mrb[0].mxu0 %v2280
      %v2316 = vpop.f32.mrb[0].mxu0
      %v2317 = vadd.f32 %v2268, %v2316
      %v2318 = vpop.f32.mrb[0].mxu0
      %v2319 = vpop.f32.mrb[0].mxu0
      %v2320 = vpop.f32.mrb[0].mxu0
      %2321 = vdwg.mxu0
      %s2322 = scalar_lea.vmem %s16, 16
      %v2323 = vld [vmem:[%s2322] sm:$0xf]
      %v2324 = vld [vmem:[%s2322 + $0x4] sm:$0xf]
      %v2327 = vunpack.c.l.b16 %v2323
      %v2328 = vunpack.c.l.b16 %v2324
      %v2329 = vpack.c.b16 %v2328, %v2327
      %v2332 = vsel %vm2098, %v2216, 0
      %2334 = vmatprep.subr.bf16.mxu0 0
      %2335 = vmatpush1.bf16.msra.mxu0 %v2329
      %2336 = vmatprep.subr.bf16.mxu0 0
      %2337 = vmatpush1.bf16.msra.mxu0 0
      %2338 = vmatprep.subr.bf16.mxu0 0
      %2339 = vmatpush1.bf16.msra.mxu0 0
      %2340 = vmatprep.subr.bf16.mxu0 0
      %2341 = vmatpush1.bf16.msra.mxu0 0
      %2342 = vmatprep.subr.bf16.mxu0 0
      %2343 = vmatpush1.bf16.msra.mxu0 0
      %2344 = vmatprep.subr.bf16.mxu0 0
      %2345 = vmatpush1.bf16.msra.mxu0 0
      %2346 = vmatprep.subr.bf16.mxu0 0
      %2347 = vmatpush1.bf16.msra.mxu0 0
      %2348 = vmatprep.subr.bf16.mxu0 0
      %2349 = vmatpush1.bf16.msra.mxu0 0
      %2350 = vmatprep.subr.bf16.mxu0 0
      %2351 = vmatpush1.bf16.msra.mxu0 0
      %2352 = vmatprep.subr.bf16.mxu0 0
      %2353 = vmatpush1.bf16.msra.mxu0 0
      %2354 = vmatprep.subr.bf16.mxu0 0
      %2355 = vmatpush1.bf16.msra.mxu0 0
      %2356 = vmatprep.subr.bf16.mxu0 0
      %2357 = vmatpush1.bf16.msra.mxu0 0
      %2358 = vmatprep.subr.bf16.mxu0 0
      %2359 = vmatpush1.bf16.msra.mxu0 0
      %2360 = vmatprep.subr.bf16.mxu0 0
      %2361 = vmatpush1.bf16.msra.mxu0 0
      %2362 = vmatprep.subr.bf16.mxu0 0
      %2363 = vmatpush1.bf16.msra.mxu0 0
      %2364 = vmatprep.subr.bf16.mxu0 0
      %2365 = vmatpush1.bf16.msra.mxu0 0
      %2366 = vmatprep.mubr.bf16.mxu0 0
      %2367 = vmatmul.mubr.bf16.gmra.mrb[0].mxu0 %v2332
      %v2368 = vpop.f32.mrb[0].mxu0
      %v2369 = vadd.f32 0.0, %v2368
      %v2370 = vpop.f32.mrb[0].mxu0
      %v2371 = vpop.f32.mrb[0].mxu0
      %v2372 = vpop.f32.mrb[0].mxu0
      %2373 = vdwg.mxu0
      %v2374 = vadd.f32 %v2317, %v2369
      %s2375 = scalar_lea.vmem %s16, 24
      %v2376 = vld [vmem:[%s2375] sm:$0xf]
      %v2377 = vld [vmem:[%s2375 + $0x4] sm:$0xf]
      %v2379 = vrot.slane %v2216, 4
      %v2382 = vunpack.c.l.b16 %v2376
      %v2383 = vunpack.c.l.b16 %v2377
      %v2384 = vpack.c.b16 %v2383, %v2382
      %v2387 = vsel %vm2098, %v2379, 0
      %2389 = vmatprep.subr.bf16.mxu0 0
      %2390 = vmatpush1.bf16.msra.mxu0 %v2384
      %2391 = vmatprep.subr.bf16.mxu0 0
      %2392 = vmatpush1.bf16.msra.mxu0 0
      %2393 = vmatprep.subr.bf16.mxu0 0
      %2394 = vmatpush1.bf16.msra.mxu0 0
      %2395 = vmatprep.subr.bf16.mxu0 0
      %2396 = vmatpush1.bf16.msra.mxu0 0
      %2397 = vmatprep.subr.bf16.mxu0 0
      %2398 = vmatpush1.bf16.msra.mxu0 0
      %2399 = vmatprep.subr.bf16.mxu0 0
      %2400 = vmatpush1.bf16.msra.mxu0 0
      %2401 = vmatprep.subr.bf16.mxu0 0
      %2402 = vmatpush1.bf16.msra.mxu0 0
      %2403 = vmatprep.subr.bf16.mxu0 0
      %2404 = vmatpush1.bf16.msra.mxu0 0
      %2405 = vmatprep.subr.bf16.mxu0 0
      %2406 = vmatpush1.bf16.msra.mxu0 0
      %2407 = vmatprep.subr.bf16.mxu0 0
      %2408 = vmatpush1.bf16.msra.mxu0 0
      %2409 = vmatprep.subr.bf16.mxu0 0
      %2410 = vmatpush1.bf16.msra.mxu0 0
      %2411 = vmatprep.subr.bf16.mxu0 0
      %2412 = vmatpush1.bf16.msra.mxu0 0
      %2413 = vmatprep.subr.bf16.mxu0 0
      %2414 = vmatpush1.bf16.msra.mxu0 0
      %2415 = vmatprep.subr.bf16.mxu0 0
      %2416 = vmatpush1.bf16.msra.mxu0 0
      %2417 = vmatprep.subr.bf16.mxu0 0
      %2418 = vmatpush1.bf16.msra.mxu0 0
      %2419 = vmatprep.subr.bf16.mxu0 0
      %2420 = vmatpush1.bf16.msra.mxu0 0
      %2421 = vmatprep.mubr.bf16.mxu0 0
      %2422 = vmatmul.mubr.bf16.gmra.mrb[0].mxu0 %v2387
      %v2423 = vpop.f32.mrb[0].mxu0
      %v2424 = vadd.f32 0.0, %v2423
      %v2425 = vpop.f32.mrb[0].mxu0
      %v2426 = vpop.f32.mrb[0].mxu0
      %v2427 = vpop.f32.mrb[0].mxu0
      %2428 = vdwg.mxu0
      %v2429 = vadd.f32 %v2374, %v2424
      %2432 = vrot.lane.b32.xlu0 %v2429, 65
      %v2433 = vpop.permute.xlu0 %2432
      %2434 = vrot.lane.b32.xlu0 %v1695, 65
      %v2435 = vpop.permute.xlu0 %2434
      %2438 = vrot.lane.b32.xlu0 %v2429, 1
      %v2439 = vpop.permute.xlu0 %2438
      %2440 = vrot.lane.b32.xlu0 %v1695, 1
      %v2441 = vpop.permute.xlu0 %2440
      %v2444 = vsel %vm1427, %v2433, %v2439
      %v2445 = vsel %vm1427, %v2435, %v2441
      %v2446 = vsel %vm1430, %v2429, %v2444
      %v2447 = vsel %vm1430, %v1695, %v2445
      %2448 = vrot.lane.b32.xlu0 %v2429, 127
      %v2449 = vpop.permute.xlu0 %2448
      %2450 = vrot.lane.b32.xlu0 %v1695, 127
      %v2451 = vpop.permute.xlu0 %2450
      %2454 = vrot.lane.b32.xlu0 %v2429, 63
      %v2455 = vpop.permute.xlu0 %2454
      %2456 = vrot.lane.b32.xlu0 %v1695, 63
      %v2457 = vpop.permute.xlu0 %2456
      %v2460 = vsel %vm1438, %v2449, %v2455
      %v2461 = vsel %vm1438, %v2451, %v2457
      %v2462 = vsel %vm1441, %v2429, %v2460
      %v2463 = vsel %vm1441, %v1695, %v2461
      %2466 = vrot.lane.b32.xlu0 %v2446, 72
      %v2467 = vpop.permute.xlu0 %2466
      %2468 = vrot.lane.b32.xlu0 %v2447, 72
      %v2469 = vpop.permute.xlu0 %2468
      %2472 = vrot.lane.b32.xlu0 %v2446, 8
      %v2473 = vpop.permute.xlu0 %2472
      %2474 = vrot.lane.b32.xlu0 %v2447, 8
      %v2475 = vpop.permute.xlu0 %2474
      %v2478 = vsel %vm1450, %v2467, %v2473
      %v2479 = vsel %vm1450, %v2469, %v2475
      %v2480 = vsel %vm1453, %v2446, %v2478
      %v2481 = vsel %vm1453, %v2447, %v2479
      %2482 = vrot.lane.b32.xlu0 %v2429, 72
      %v2483 = vpop.permute.xlu0 %2482
      %2484 = vrot.lane.b32.xlu0 %v1695, 72
      %v2485 = vpop.permute.xlu0 %2484
      %2488 = vrot.lane.b32.xlu0 %v2429, 8
      %v2489 = vpop.permute.xlu0 %2488
      %2490 = vrot.lane.b32.xlu0 %v1695, 8
      %v2491 = vpop.permute.xlu0 %2490
      %v2494 = vsel %vm1450, %v2483, %v2489
      %v2495 = vsel %vm1450, %v2485, %v2491
      %v2496 = vsel %vm1453, %v2429, %v2494
      %v2497 = vsel %vm1453, %v1695, %v2495
      %2500 = vrot.lane.b32.xlu0 %v2462, 72
      %v2501 = vpop.permute.xlu0 %2500
      %2502 = vrot.lane.b32.xlu0 %v2463, 72
      %v2503 = vpop.permute.xlu0 %2502
      %2506 = vrot.lane.b32.xlu0 %v2462, 8
      %v2507 = vpop.permute.xlu0 %2506
      %2508 = vrot.lane.b32.xlu0 %v2463, 8
      %v2509 = vpop.permute.xlu0 %2508
      %v2512 = vsel %vm1450, %v2501, %v2507
      %v2513 = vsel %vm1450, %v2503, %v2509
      %v2514 = vsel %vm1453, %v2462, %v2512
      %v2515 = vsel %vm1453, %v2463, %v2513
      %2516 = vrot.lane.b32.xlu0 %v2446, 120
      %v2517 = vpop.permute.xlu0 %2516
      %2518 = vrot.lane.b32.xlu0 %v2447, 120
      %v2519 = vpop.permute.xlu0 %2518
      %2522 = vrot.lane.b32.xlu0 %v2446, 56
      %v2523 = vpop.permute.xlu0 %2522
      %2524 = vrot.lane.b32.xlu0 %v2447, 56
      %v2525 = vpop.permute.xlu0 %2524
      %v2528 = vsel %vm1478, %v2517, %v2523
      %v2529 = vsel %vm1478, %v2519, %v2525
      %v2530 = vsel %vm1481, %v2446, %v2528
      %v2531 = vsel %vm1481, %v2447, %v2529
      %2532 = vrot.lane.b32.xlu0 %v2429, 120
      %v2533 = vpop.permute.xlu0 %2532
      %2534 = vrot.lane.b32.xlu0 %v1695, 120
      %v2535 = vpop.permute.xlu0 %2534
      %2538 = vrot.lane.b32.xlu0 %v2429, 56
      %v2539 = vpop.permute.xlu0 %2538
      %2540 = vrot.lane.b32.xlu0 %v1695, 56
      %v2541 = vpop.permute.xlu0 %2540
      %v2544 = vsel %vm1478, %v2533, %v2539
      %v2545 = vsel %vm1478, %v2535, %v2541
      %v2546 = vsel %vm1481, %v2429, %v2544
      %v2547 = vsel %vm1481, %v1695, %v2545
      %2548 = vrot.lane.b32.xlu0 %v2462, 120
      %v2549 = vpop.permute.xlu0 %2548
      %2550 = vrot.lane.b32.xlu0 %v2463, 120
      %v2551 = vpop.permute.xlu0 %2550
      %2554 = vrot.lane.b32.xlu0 %v2462, 56
      %v2555 = vpop.permute.xlu0 %2554
      %2556 = vrot.lane.b32.xlu0 %v2463, 56
      %v2557 = vpop.permute.xlu0 %2556
      %v2560 = vsel %vm1478, %v2549, %v2555
      %v2561 = vsel %vm1478, %v2551, %v2557
      %v2562 = vsel %vm1481, %v2462, %v2560
      %v2563 = vsel %vm1481, %v2463, %v2561
      %v2564 = vpack.c.bf16 %v2481, %v2480
      %v2565 = vpack.c.bf16 %v2497, %v2496
      %v2566 = vpack.c.bf16 %v2515, %v2514
      %v2567 = vpack.c.bf16 %v2447, %v2446
      %v2568 = vpack.c.bf16 %v1695, %v2429
      %v2569 = vpack.c.bf16 %v2463, %v2462
      %v2570 = vpack.c.bf16 %v2531, %v2530
      %v2571 = vpack.c.bf16 %v2547, %v2546
      %v2572 = vpack.c.bf16 %v2563, %v2562
      %v2573 = vld [vmem:[%s17] sm:$0xff]
      %v2574 = vld [vmem:[%s18] sm:$0xff]
      %2576 = vset.pattern.permute.xlu0 0
      %2577 = vperm.xlu0 %2576, %v2574
      %v2578 = vpop.permute.xlu0 %2577
      %v2581 = vunpack.c.l.b16 %v2573
      %v2582 = vunpack.c.h.b16 %v2573
      %v2583 = vpack.c.b16 %v2581, %v2581
      %v2584 = vpack.c.b16 %v2582, %v2582
      %v2587 = vsel %vm2098, %v2584, 0
      %2589 = vmatprep.subr.bf16.mxu0 0
      %2590 = vmatpush1.bf16.msra.mxu0 %v2564
      %2591 = vmatprep.subr.bf16.mxu0 0
      %2592 = vmatpush1.bf16.msra.mxu0 %v2565
      %2593 = vmatprep.subr.bf16.mxu0 0
      %2594 = vmatpush1.bf16.msra.mxu0 %v2566
      %2595 = vmatprep.subr.bf16.mxu0 0
      %2596 = vmatpush1.bf16.msra.mxu0 %v2567
      %2597 = vmatprep.subr.bf16.mxu0 0
      %2598 = vmatpush1.bf16.msra.mxu0 %v2568
      %2599 = vmatprep.subr.bf16.mxu0 0
      %2600 = vmatpush1.bf16.msra.mxu0 %v2569
      %2601 = vmatprep.subr.bf16.mxu0 0
      %2602 = vmatpush1.bf16.msra.mxu0 %v2570
      %2603 = vmatprep.subr.bf16.mxu0 0
      %2604 = vmatpush1.bf16.msra.mxu0 %v2571
      %2605 = vmatprep.subr.bf16.mxu0 0
      %2606 = vmatpush1.bf16.msra.mxu0 %v2572
      %2607 = vmatprep.subr.bf16.mxu0 0
      %2608 = vmatpush1.bf16.msra.mxu0 0
      %2609 = vmatprep.subr.bf16.mxu0 0
      %2610 = vmatpush1.bf16.msra.mxu0 0
      %2611 = vmatprep.subr.bf16.mxu0 0
      %2612 = vmatpush1.bf16.msra.mxu0 0
      %2613 = vmatprep.subr.bf16.mxu0 0
      %2614 = vmatpush1.bf16.msra.mxu0 0
      %2615 = vmatprep.subr.bf16.mxu0 0
      %2616 = vmatpush1.bf16.msra.mxu0 0
      %2617 = vmatprep.subr.bf16.mxu0 0
      %2618 = vmatpush1.bf16.msra.mxu0 0
      %2619 = vmatprep.subr.bf16.mxu0 0
      %2620 = vmatpush1.bf16.msra.mxu0 0
      %2621 = vmatprep.mubr.bf16.mxu0 %v2587
      %2622 = vmatmul.mubr.bf16.gmra.mrb[0].mxu0 %v2583
      %v2623 = vpop.f32.mrb[0].mxu0
      %v2624 = vadd.f32 %v2578, %v2623
      %v2625 = vpop.f32.mrb[0].mxu0
      %v2626 = vpop.f32.mrb[0].mxu0
      %v2627 = vpop.f32.mrb[0].mxu0
      %2628 = vdwg.mxu0
      %vm2629 = vcmp.gt.f32.partialorder %v2624, 0.0
      %v2630 = vmul.f32 %v2624, 1.442695
      %v2631 = vpow.pop %v2630
      %v2632 = vsub.f32 %v2631, 1.0
      %v2633 = vsel %vm2629, %v2624, %v2632
      %2635 = vrot.lane.b32.xlu0 %v2633, 65
      %v2636 = vpop.permute.xlu0 %2635
      %2638 = vrot.lane.b32.xlu0 %v2633, 1
      %v2639 = vpop.permute.xlu0 %2638
      %v2641 = vsel %vm1427, %v2636, %v2639
      %v2642 = vsel %vm1430, %v2633, %v2641
      %2643 = vrot.lane.b32.xlu0 %v2633, 127
      %v2644 = vpop.permute.xlu0 %2643
      %2646 = vrot.lane.b32.xlu0 %v2633, 63
      %v2647 = vpop.permute.xlu0 %2646
      %v2649 = vsel %vm1438, %v2644, %v2647
      %v2650 = vsel %vm1441, %v2633, %v2649
      %2652 = vrot.lane.b32.xlu0 %v2642, 72
      %v2653 = vpop.permute.xlu0 %2652
      %2655 = vrot.lane.b32.xlu0 %v2642, 8
      %v2656 = vpop.permute.xlu0 %2655
      %v2658 = vsel %vm1450, %v2653, %v2656
      %v2659 = vsel %vm1453, %v2642, %v2658
      %2660 = vrot.lane.b32.xlu0 %v2633, 72
      %v2661 = vpop.permute.xlu0 %2660
      %2663 = vrot.lane.b32.xlu0 %v2633, 8
      %v2664 = vpop.permute.xlu0 %2663
      %v2666 = vsel %vm1450, %v2661, %v2664
      %v2667 = vsel %vm1453, %v2633, %v2666
      %2669 = vrot.lane.b32.xlu0 %v2650, 72
      %v2670 = vpop.permute.xlu0 %2669
      %2672 = vrot.lane.b32.xlu0 %v2650, 8
      %v2673 = vpop.permute.xlu0 %2672
      %v2675 = vsel %vm1450, %v2670, %v2673
      %v2676 = vsel %vm1453, %v2650, %v2675
      %2677 = vrot.lane.b32.xlu0 %v2642, 120
      %v2678 = vpop.permute.xlu0 %2677
      %2680 = vrot.lane.b32.xlu0 %v2642, 56
      %v2681 = vpop.permute.xlu0 %2680
      %v2683 = vsel %vm1478, %v2678, %v2681
      %v2684 = vsel %vm1481, %v2642, %v2683
      %2685 = vrot.lane.b32.xlu0 %v2633, 120
      %v2686 = vpop.permute.xlu0 %2685
      %2688 = vrot.lane.b32.xlu0 %v2633, 56
      %v2689 = vpop.permute.xlu0 %2688
      %v2691 = vsel %vm1478, %v2686, %v2689
      %v2692 = vsel %vm1481, %v2633, %v2691
      %2693 = vrot.lane.b32.xlu0 %v2650, 120
      %v2694 = vpop.permute.xlu0 %2693
      %2696 = vrot.lane.b32.xlu0 %v2650, 56
      %v2697 = vpop.permute.xlu0 %2696
      %v2699 = vsel %vm1478, %v2694, %v2697
      %v2700 = vsel %vm1481, %v2650, %v2699
      %v2701 = vpack.c.bf16 %v2667, %v2659
      %v2702 = vpack.c.bf16 %v2642, %v2676
      %v2703 = vpack.c.bf16 %v2650, %v2633
      %v2704 = vpack.c.bf16 %v2692, %v2684
      %v2705 = vpack.c.bf16 %v2700, %v2700
      %v2706 = vld [vmem:[%s19] sm:$0x3]
      %v2707 = vld [vmem:[%s20] sm:$0xf]
      %2709 = vset.pattern.permute.xlu0 0
      %2710 = vperm.xlu0 %2709, %v2707
      %v2711 = vpop.permute.xlu0 %2710
      %v2714 = vsel %vm1653, %v2706, 0
      %v2717 = vsel %vm984, %v2705, 0
      %2719 = vmatprep.subr.bf16.mxu0 0
      %2720 = vmatpush1.bf16.msra.mxu0 %v2701
      %2721 = vmatprep.subr.bf16.mxu0 0
      %2722 = vmatpush1.bf16.msra.mxu0 %v2702
      %2723 = vmatprep.subr.bf16.mxu0 0
      %2724 = vmatpush1.bf16.msra.mxu0 %v2703
      %2725 = vmatprep.subr.bf16.mxu0 0
      %2726 = vmatpush1.bf16.msra.mxu0 %v2704
      %2727 = vmatprep.subr.bf16.mxu0 0
      %2728 = vmatpush1.bf16.msra.mxu0 %v2717
      %2729 = vmatprep.subr.bf16.mxu0 0
      %2730 = vmatpush1.bf16.msra.mxu0 0
      %2731 = vmatprep.subr.bf16.mxu0 0
      %2732 = vmatpush1.bf16.msra.mxu0 0
      %2733 = vmatprep.subr.bf16.mxu0 0
      %2734 = vmatpush1.bf16.msra.mxu0 0
      %2735 = vmatprep.subr.bf16.mxu0 0
      %2736 = vmatpush1.bf16.msra.mxu0 0
      %2737 = vmatprep.subr.bf16.mxu0 0
      %2738 = vmatpush1.bf16.msra.mxu0 0
      %2739 = vmatprep.subr.bf16.mxu0 0
      %2740 = vmatpush1.bf16.msra.mxu0 0
      %2741 = vmatprep.subr.bf16.mxu0 0
      %2742 = vmatpush1.bf16.msra.mxu0 0
      %2743 = vmatprep.subr.bf16.mxu0 0
      %2744 = vmatpush1.bf16.msra.mxu0 0
      %2745 = vmatprep.subr.bf16.mxu0 0
      %2746 = vmatpush1.bf16.msra.mxu0 0
      %2747 = vmatprep.subr.bf16.mxu0 0
      %2748 = vmatpush1.bf16.msra.mxu0 0
      %2749 = vmatprep.subr.bf16.mxu0 0
      %2750 = vmatpush1.bf16.msra.mxu0 0
      %2751 = vmatprep.mubr.bf16.mxu0 0
      %2752 = vmatmul.mubr.bf16.gmra.mrb[0].mxu0 %v2714
      %v2753 = vpop.f32.mrb[0].mxu0
      %v2754 = vadd.f32 %v2711, %v2753
      %v2755 = vpop.f32.mrb[0].mxu0
      %v2756 = vpop.f32.mrb[0].mxu0
      %v2757 = vpop.f32.mrb[0].mxu0
      %2758 = vdwg.mxu0
      %v2759 = vld [vmem:[%s21] sm:$0xf]
      %v2760 = vld [vmem:[%s21 + $0x4] sm:$0xf]
      %v2761 = vpack.c.bf16 %v2754, %v2754
      %v2764 = vunpack.c.l.b16 %v2759
      %v2765 = vunpack.c.l.b16 %v2760
      %v2766 = vpack.c.b16 %v2765, %v2764
      %v2768 = vsel %vm1812, %v2766, 0
      %v2771 = vsel %vm978, %v2761, 0
      %2773 = vmatprep.subr.bf16.mxu0 0
      %2774 = vmatpush1.bf16.msra.mxu0 %v2771
      %2775 = vmatprep.subr.bf16.mxu0 0
      %2776 = vmatpush1.bf16.msra.mxu0 0
      %2777 = vmatprep.subr.bf16.mxu0 0
      %2778 = vmatpush1.bf16.msra.mxu0 0
      %2779 = vmatprep.subr.bf16.mxu0 0
      %2780 = vmatpush1.bf16.msra.mxu0 0
      %2781 = vmatprep.subr.bf16.mxu0 0
      %2782 = vmatpush1.bf16.msra.mxu0 0
      %2783 = vmatprep.subr.bf16.mxu0 0
      %2784 = vmatpush1.bf16.msra.mxu0 0
      %2785 = vmatprep.subr.bf16.mxu0 0
      %2786 = vmatpush1.bf16.msra.mxu0 0
      %2787 = vmatprep.subr.bf16.mxu0 0
      %2788 = vmatpush1.bf16.msra.mxu0 0
      %2789 = vmatprep.subr.bf16.mxu0 0
      %2790 = vmatpush1.bf16.msra.mxu0 0
      %2791 = vmatprep.subr.bf16.mxu0 0
      %2792 = vmatpush1.bf16.msra.mxu0 0
      %2793 = vmatprep.subr.bf16.mxu0 0
      %2794 = vmatpush1.bf16.msra.mxu0 0
      %2795 = vmatprep.subr.bf16.mxu0 0
      %2796 = vmatpush1.bf16.msra.mxu0 0
      %2797 = vmatprep.subr.bf16.mxu0 0
      %2798 = vmatpush1.bf16.msra.mxu0 0
      %2799 = vmatprep.subr.bf16.mxu0 0
      %2800 = vmatpush1.bf16.msra.mxu0 0
      %2801 = vmatprep.subr.bf16.mxu0 0
      %2802 = vmatpush1.bf16.msra.mxu0 0
      %2803 = vmatprep.subr.bf16.mxu0 0
      %2804 = vmatpush1.bf16.msra.mxu0 0
      %2805 = vmatprep.mubr.bf16.mxu0 0
      %2806 = vmatmul.mubr.bf16.gmra.mrb[0].mxu0 %v2768
      %v2807 = vpop.f32.mrb[0].mxu0
      %v2808 = vadd.f32 0.0, %v2807
      %v2809 = vpop.f32.mrb[0].mxu0
      %v2810 = vpop.f32.mrb[0].mxu0
      %v2811 = vadd.f32 0.0, %v2810
      %v2812 = vpop.f32.mrb[0].mxu0
      %2813 = vdwg.mxu0
      %v2814 = vpack.c.bf16 %v2811, %v2808
      %v2815 = vld [vmem:[%s22] sm:$0xff]
      %v2816 = vld [vmem:[%s22 + $0x8] sm:$0xff]
      %v2817 = vld [vmem:[%s22 + $0x10] sm:$0xff]
      %v2818 = vld [vmem:[%s22 + $0x18] sm:$0xff]
      %v2819 = vld [vmem:[%s22 + $0x20] sm:$0xff]
      %v2820 = vld [vmem:[%s22 + $0x28] sm:$0xff]
      %v2821 = vld [vmem:[%s22 + $0x30] sm:$0xff]
      %v2822 = vld [vmem:[%s22 + $0x38] sm:$0xff]
      %s2823 = scalar_lea.vmem %s22, 64
      %v2824 = vld [vmem:[%s2823] sm:$0xff]
      %v2825 = vld [vmem:[%s2823 + $0x8] sm:$0xff]
      %v2826 = vld [vmem:[%s2823 + $0x10] sm:$0xff]
      %v2827 = vld [vmem:[%s2823 + $0x18] sm:$0xff]
      %v2828 = vld [vmem:[%s2823 + $0x20] sm:$0xff]
      %v2829 = vld [vmem:[%s2823 + $0x28] sm:$0xff]
      %v2830 = vld [vmem:[%s2823 + $0x30] sm:$0xff]
      %v2831 = vld [vmem:[%s2823 + $0x38] sm:$0xff]
      %v2833 = vrot.slane %v2814, 2
      %v2842 = vunpack.c.l.b16 %v2824
      %v2843 = vunpack.c.h.b16 %v2824
      %v2844 = vunpack.c.l.b16 %v2825
      %v2845 = vunpack.c.h.b16 %v2825
      %v2846 = vunpack.c.l.b16 %v2826
      %v2847 = vunpack.c.h.b16 %v2826
      %v2848 = vunpack.c.l.b16 %v2827
      %v2849 = vunpack.c.h.b16 %v2827
      %v2850 = vunpack.c.l.b16 %v2828
      %v2851 = vunpack.c.h.b16 %v2828
      %v2852 = vunpack.c.l.b16 %v2829
      %v2853 = vunpack.c.h.b16 %v2829
      %v2854 = vunpack.c.l.b16 %v2830
      %v2855 = vunpack.c.h.b16 %v2830
      %v2856 = vunpack.c.l.b16 %v2831
      %v2857 = vunpack.c.h.b16 %v2831
      %v2858 = vpack.c.b16 %v2844, %v2842
      %v2859 = vpack.c.b16 %v2845, %v2843
      %v2860 = vpack.c.b16 %v2848, %v2846
      %v2861 = vpack.c.b16 %v2849, %v2847
      %v2862 = vpack.c.b16 %v2852, %v2850
      %v2863 = vpack.c.b16 %v2853, %v2851
      %v2864 = vpack.c.b16 %v2856, %v2854
      %v2865 = vpack.c.b16 %v2857, %v2855
      %v2875 = vsel %vm1733, %v2833, 0
      %2877 = vmatprep.subr.bf16.mxu0 %v2859
      %2878 = vmatpush1.bf16.msra.mxu0 %v2858
      %2879 = vmatprep.subr.bf16.mxu0 %v2861
      %2880 = vmatpush1.bf16.msra.mxu0 %v2860
      %2881 = vmatprep.subr.bf16.mxu0 %v2863
      %2882 = vmatpush1.bf16.msra.mxu0 %v2862
      %2883 = vmatprep.subr.bf16.mxu0 %v2865
      %2884 = vmatpush1.bf16.msra.mxu0 %v2864
      %2885 = vmatprep.subr.bf16.mxu0 0
      %2886 = vmatpush1.bf16.msra.mxu0 0
      %2887 = vmatprep.subr.bf16.mxu0 0
      %2888 = vmatpush1.bf16.msra.mxu0 0
      %2889 = vmatprep.subr.bf16.mxu0 0
      %2890 = vmatpush1.bf16.msra.mxu0 0
      %2891 = vmatprep.subr.bf16.mxu0 0
      %2892 = vmatpush1.bf16.msra.mxu0 0
      %2893 = vmatprep.subr.bf16.mxu0 0
      %2894 = vmatpush1.bf16.msra.mxu0 0
      %2895 = vmatprep.subr.bf16.mxu0 0
      %2896 = vmatpush1.bf16.msra.mxu0 0
      %2897 = vmatprep.subr.bf16.mxu0 0
      %2898 = vmatpush1.bf16.msra.mxu0 0
      %2899 = vmatprep.subr.bf16.mxu0 0
      %2900 = vmatpush1.bf16.msra.mxu0 0
      %2901 = vmatprep.subr.bf16.mxu0 0
      %2902 = vmatpush1.bf16.msra.mxu0 0
      %2903 = vmatprep.subr.bf16.mxu0 0
      %2904 = vmatpush1.bf16.msra.mxu0 0
      %2905 = vmatprep.subr.bf16.mxu0 0
      %2906 = vmatpush1.bf16.msra.mxu0 0
      %2907 = vmatprep.subr.bf16.mxu0 0
      %2908 = vmatpush1.bf16.msra.mxu0 0
      %2909 = vmatprep.mubr.bf16.mxu0 0
      %2910 = vmatmul.mubr.bf16.gmra.mrb[0].mxu0 %v2875
      %v2911 = vpop.f32.mrb[0].mxu0
      %v2912 = vadd.f32 0.0, %v2911
      %v2913 = vpop.f32.mrb[0].mxu0
      %v2914 = vadd.f32 0.0, %v2913
      %v2915 = vpop.f32.mrb[0].mxu0
      %v2916 = vpop.f32.mrb[0].mxu0
      %2917 = vdwg.mxu0
      %v2926 = vunpack.c.l.b16 %v2815
      %v2927 = vunpack.c.h.b16 %v2815
      %v2928 = vunpack.c.l.b16 %v2816
      %v2929 = vunpack.c.h.b16 %v2816
      %v2930 = vunpack.c.l.b16 %v2817
      %v2931 = vunpack.c.h.b16 %v2817
      %v2932 = vunpack.c.l.b16 %v2818
      %v2933 = vunpack.c.h.b16 %v2818
      %v2934 = vunpack.c.l.b16 %v2819
      %v2935 = vunpack.c.h.b16 %v2819
      %v2936 = vunpack.c.l.b16 %v2820
      %v2937 = vunpack.c.h.b16 %v2820
      %v2938 = vunpack.c.l.b16 %v2821
      %v2939 = vunpack.c.h.b16 %v2821
      %v2940 = vunpack.c.l.b16 %v2822
      %v2941 = vunpack.c.h.b16 %v2822
      %v2942 = vpack.c.b16 %v2928, %v2926
      %v2943 = vpack.c.b16 %v2929, %v2927
      %v2944 = vpack.c.b16 %v2932, %v2930
      %v2945 = vpack.c.b16 %v2933, %v2931
      %v2946 = vpack.c.b16 %v2936, %v2934
      %v2947 = vpack.c.b16 %v2937, %v2935
      %v2948 = vpack.c.b16 %v2940, %v2938
      %v2949 = vpack.c.b16 %v2941, %v2939
      %v2959 = vsel %vm1733, %v2814, 0
      %2961 = vmatprep.subr.bf16.mxu0 %v2943
      %2962 = vmatpush1.bf16.msra.mxu0 %v2942
      %2963 = vmatprep.subr.bf16.mxu0 %v2945
      %2964 = vmatpush1.bf16.msra.mxu0 %v2944
      %2965 = vmatprep.subr.bf16.mxu0 %v2947
      %2966 = vmatpush1.bf16.msra.mxu0 %v2946
      %2967 = vmatprep.subr.bf16.mxu0 %v2949
      %2968 = vmatpush1.bf16.msra.mxu0 %v2948
      %2969 = vmatprep.subr.bf16.mxu0 0
      %2970 = vmatpush1.bf16.msra.mxu0 0
      %2971 = vmatprep.subr.bf16.mxu0 0
      %2972 = vmatpush1.bf16.msra.mxu0 0
      %2973 = vmatprep.subr.bf16.mxu0 0
      %2974 = vmatpush1.bf16.msra.mxu0 0
      %2975 = vmatprep.subr.bf16.mxu0 0
      %2976 = vmatpush1.bf16.msra.mxu0 0
      %2977 = vmatprep.subr.bf16.mxu0 0
      %2978 = vmatpush1.bf16.msra.mxu0 0
      %2979 = vmatprep.subr.bf16.mxu0 0
      %2980 = vmatpush1.bf16.msra.mxu0 0
      %2981 = vmatprep.subr.bf16.mxu0 0
      %2982 = vmatpush1.bf16.msra.mxu0 0
      %2983 = vmatprep.subr.bf16.mxu0 0
      %2984 = vmatpush1.bf16.msra.mxu0 0
      %2985 = vmatprep.subr.bf16.mxu0 0
      %2986 = vmatpush1.bf16.msra.mxu0 0
      %2987 = vmatprep.subr.bf16.mxu0 0
      %2988 = vmatpush1.bf16.msra.mxu0 0
      %2989 = vmatprep.subr.bf16.mxu0 0
      %2990 = vmatpush1.bf16.msra.mxu0 0
      %2991 = vmatprep.subr.bf16.mxu0 0
      %2992 = vmatpush1.bf16.msra.mxu0 0
      %2993 = vmatprep.mubr.bf16.mxu0 0
      %2994 = vmatmul.mubr.bf16.gmra.mrb[0].mxu0 %v2959
      %v2995 = vpop.f32.mrb[0].mxu0
      %v2996 = vadd.f32 %v2912, %v2995
      %v2997 = vpop.f32.mrb[0].mxu0
      %v2998 = vadd.f32 %v2914, %v2997
      %v2999 = vpop.f32.mrb[0].mxu0
      %v3000 = vpop.f32.mrb[0].mxu0
      %3001 = vdwg.mxu0
      %s3002 = scalar_lea.vmem %s22, 128
      %v3003 = vld [vmem:[%s3002] sm:$0xff]
      %v3004 = vld [vmem:[%s3002 + $0x8] sm:$0xff]
      %v3005 = vld [vmem:[%s3002 + $0x10] sm:$0xff]
      %v3006 = vld [vmem:[%s3002 + $0x18] sm:$0xff]
      %v3007 = vld [vmem:[%s3002 + $0x20] sm:$0xff]
      %v3008 = vld [vmem:[%s3002 + $0x28] sm:$0xff]
      %v3009 = vld [vmem:[%s3002 + $0x30] sm:$0xff]
      %v3010 = vld [vmem:[%s3002 + $0x38] sm:$0xff]
      %v3011 = vrot.slane %v2814, 4
      %v3020 = vunpack.c.l.b16 %v3003
      %v3021 = vunpack.c.h.b16 %v3003
      %v3022 = vunpack.c.l.b16 %v3004
      %v3023 = vunpack.c.h.b16 %v3004
      %v3024 = vunpack.c.l.b16 %v3005
      %v3025 = vunpack.c.h.b16 %v3005
      %v3026 = vunpack.c.l.b16 %v3006
      %v3027 = vunpack.c.h.b16 %v3006
      %v3028 = vunpack.c.l.b16 %v3007
      %v3029 = vunpack.c.h.b16 %v3007
      %v3030 = vunpack.c.l.b16 %v3008
      %v3031 = vunpack.c.h.b16 %v3008
      %v3032 = vunpack.c.l.b16 %v3009
      %v3033 = vunpack.c.h.b16 %v3009
      %v3034 = vunpack.c.l.b16 %v3010
      %v3035 = vunpack.c.h.b16 %v3010
      %v3036 = vpack.c.b16 %v3022, %v3020
      %v3037 = vpack.c.b16 %v3023, %v3021
      %v3038 = vpack.c.b16 %v3026, %v3024
      %v3039 = vpack.c.b16 %v3027, %v3025
      %v3040 = vpack.c.b16 %v3030, %v3028
      %v3041 = vpack.c.b16 %v3031, %v3029
      %v3042 = vpack.c.b16 %v3034, %v3032
      %v3043 = vpack.c.b16 %v3035, %v3033
      %v3053 = vsel %vm1733, %v3011, 0
      %3055 = vmatprep.subr.bf16.mxu0 %v3037
      %3056 = vmatpush1.bf16.msra.mxu0 %v3036
      %3057 = vmatprep.subr.bf16.mxu0 %v3039
      %3058 = vmatpush1.bf16.msra.mxu0 %v3038
      %3059 = vmatprep.subr.bf16.mxu0 %v3041
      %3060 = vmatpush1.bf16.msra.mxu0 %v3040
      %3061 = vmatprep.subr.bf16.mxu0 %v3043
      %3062 = vmatpush1.bf16.msra.mxu0 %v3042
      %3063 = vmatprep.subr.bf16.mxu0 0
      %3064 = vmatpush1.bf16.msra.mxu0 0
      %3065 = vmatprep.subr.bf16.mxu0 0
      %3066 = vmatpush1.bf16.msra.mxu0 0
      %3067 = vmatprep.subr.bf16.mxu0 0
      %3068 = vmatpush1.bf16.msra.mxu0 0
      %3069 = vmatprep.subr.bf16.mxu0 0
      %3070 = vmatpush1.bf16.msra.mxu0 0
      %3071 = vmatprep.subr.bf16.mxu0 0
      %3072 = vmatpush1.bf16.msra.mxu0 0
      %3073 = vmatprep.subr.bf16.mxu0 0
      %3074 = vmatpush1.bf16.msra.mxu0 0
      %3075 = vmatprep.subr.bf16.mxu0 0
      %3076 = vmatpush1.bf16.msra.mxu0 0
      %3077 = vmatprep.subr.bf16.mxu0 0
      %3078 = vmatpush1.bf16.msra.mxu0 0
      %3079 = vmatprep.subr.bf16.mxu0 0
      %3080 = vmatpush1.bf16.msra.mxu0 0
      %3081 = vmatprep.subr.bf16.mxu0 0
      %3082 = vmatpush1.bf16.msra.mxu0 0
      %3083 = vmatprep.subr.bf16.mxu0 0
      %3084 = vmatpush1.bf16.msra.mxu0 0
      %3085 = vmatprep.subr.bf16.mxu0 0
      %3086 = vmatpush1.bf16.msra.mxu0 0
      %3087 = vmatprep.mubr.bf16.mxu0 0
      %3088 = vmatmul.mubr.bf16.gmra.mrb[0].mxu0 %v3053
      %v3089 = vpop.f32.mrb[0].mxu0
      %v3090 = vadd.f32 0.0, %v3089
      %v3091 = vpop.f32.mrb[0].mxu0
      %v3092 = vadd.f32 0.0, %v3091
      %v3093 = vpop.f32.mrb[0].mxu0
      %v3094 = vpop.f32.mrb[0].mxu0
      %3095 = vdwg.mxu0
      %v3096 = vadd.f32 %v2996, %v3090
      %v3097 = vadd.f32 %v2998, %v3092
      %s3098 = scalar_lea.vmem %s22, 192
      %v3099 = vld [vmem:[%s3098] sm:$0xff]
      %v3100 = vld [vmem:[%s3098 + $0x8] sm:$0xff]
      %v3101 = vld [vmem:[%s3098 + $0x10] sm:$0xff]
      %v3102 = vld [vmem:[%s3098 + $0x18] sm:$0xff]
      %v3103 = vld [vmem:[%s3098 + $0x20] sm:$0xff]
      %v3104 = vld [vmem:[%s3098 + $0x28] sm:$0xff]
      %v3105 = vld [vmem:[%s3098 + $0x30] sm:$0xff]
      %v3106 = vld [vmem:[%s3098 + $0x38] sm:$0xff]
      %v3107 = vrot.slane %v2814, 6
      %v3116 = vunpack.c.l.b16 %v3099
      %v3117 = vunpack.c.h.b16 %v3099
      %v3118 = vunpack.c.l.b16 %v3100
      %v3119 = vunpack.c.h.b16 %v3100
      %v3120 = vunpack.c.l.b16 %v3101
      %v3121 = vunpack.c.h.b16 %v3101
      %v3122 = vunpack.c.l.b16 %v3102
      %v3123 = vunpack.c.h.b16 %v3102
      %v3124 = vunpack.c.l.b16 %v3103
      %v3125 = vunpack.c.h.b16 %v3103
      %v3126 = vunpack.c.l.b16 %v3104
      %v3127 = vunpack.c.h.b16 %v3104
      %v3128 = vunpack.c.l.b16 %v3105
      %v3129 = vunpack.c.h.b16 %v3105
      %v3130 = vunpack.c.l.b16 %v3106
      %v3131 = vunpack.c.h.b16 %v3106
      %v3132 = vpack.c.b16 %v3118, %v3116
      %v3133 = vpack.c.b16 %v3119, %v3117
      %v3134 = vpack.c.b16 %v3122, %v3120
      %v3135 = vpack.c.b16 %v3123, %v3121
      %v3136 = vpack.c.b16 %v3126, %v3124
      %v3137 = vpack.c.b16 %v3127, %v3125
      %v3138 = vpack.c.b16 %v3130, %v3128
      %v3139 = vpack.c.b16 %v3131, %v3129
      %v3149 = vsel %vm1733, %v3107, 0
      %3151 = vmatprep.subr.bf16.mxu0 %v3133
      %3152 = vmatpush1.bf16.msra.mxu0 %v3132
      %3153 = vmatprep.subr.bf16.mxu0 %v3135
      %3154 = vmatpush1.bf16.msra.mxu0 %v3134
      %3155 = vmatprep.subr.bf16.mxu0 %v3137
      %3156 = vmatpush1.bf16.msra.mxu0 %v3136
      %3157 = vmatprep.subr.bf16.mxu0 %v3139
      %3158 = vmatpush1.bf16.msra.mxu0 %v3138
      %3159 = vmatprep.subr.bf16.mxu0 0
      %3160 = vmatpush1.bf16.msra.mxu0 0
      %3161 = vmatprep.subr.bf16.mxu0 0
      %3162 = vmatpush1.bf16.msra.mxu0 0
      %3163 = vmatprep.subr.bf16.mxu0 0
      %3164 = vmatpush1.bf16.msra.mxu0 0
      %3165 = vmatprep.subr.bf16.mxu0 0
      %3166 = vmatpush1.bf16.msra.mxu0 0
      %3167 = vmatprep.subr.bf16.mxu0 0
      %3168 = vmatpush1.bf16.msra.mxu0 0
      %3169 = vmatprep.subr.bf16.mxu0 0
      %3170 = vmatpush1.bf16.msra.mxu0 0
      %3171 = vmatprep.subr.bf16.mxu0 0
      %3172 = vmatpush1.bf16.msra.mxu0 0
      %3173 = vmatprep.subr.bf16.mxu0 0
      %3174 = vmatpush1.bf16.msra.mxu0 0
      %3175 = vmatprep.subr.bf16.mxu0 0
      %3176 = vmatpush1.bf16.msra.mxu0 0
      %3177 = vmatprep.subr.bf16.mxu0 0
      %3178 = vmatpush1.bf16.msra.mxu0 0
      %3179 = vmatprep.subr.bf16.mxu0 0
      %3180 = vmatpush1.bf16.msra.mxu0 0
      %3181 = vmatprep.subr.bf16.mxu0 0
      %3182 = vmatpush1.bf16.msra.mxu0 0
      %3183 = vmatprep.mubr.bf16.mxu0 0
      %3184 = vmatmul.mubr.bf16.gmra.mrb[0].mxu0 %v3149
      %v3185 = vpop.f32.mrb[0].mxu0
      %v3186 = vadd.f32 0.0, %v3185
      %v3187 = vpop.f32.mrb[0].mxu0
      %v3188 = vadd.f32 0.0, %v3187
      %v3189 = vpop.f32.mrb[0].mxu0
      %v3190 = vpop.f32.mrb[0].mxu0
      %3191 = vdwg.mxu0
      %v3192 = vadd.f32 %v3096, %v3186
      %v3193 = vadd.f32 %v3097, %v3188
      %v3196 = vrot.slane %v1238, 4
      %v3197 = vrot.slane %v1240, 4
      %v3200 = vsel %vm984, %v3192, %v3196
      %v3201 = vsel %vm984, %v3193, %v3197
      %3202 = vrot.lane.b32.xlu0 %v3200, 1
      %v3203 = vpop.permute.xlu0 %3202
      %3204 = vrot.lane.b32.xlu0 %v3201, 1
      %v3205 = vpop.permute.xlu0 %3204
      %v3206 = vsel %vm875, %v3203, %v3205
      %v3207 = vsel %vm875, %v3205, %v3203
      %v3208 = vsel %vm1076, %v3200, %v3207
      %v3209 = vsel %vm1077, %v3201, %v3206
      %3210 = vrot.lane.b32.xlu0 %v3200, 127
      %v3211 = vpop.permute.xlu0 %3210
      %3212 = vrot.lane.b32.xlu0 %v3201, 127
      %v3213 = vpop.permute.xlu0 %3212
      %v3214 = vsel %vm884, %v3211, %v3213
      %v3215 = vsel %vm884, %v3213, %v3211
      %v3216 = vsel %vm1088, %v3200, %v3214
      %v3217 = vsel %vm1089, %v3201, %v3215
      %3218 = vrot.lane.b32.xlu0 %v3208, 16
      %v3219 = vpop.permute.xlu0 %3218
      %3220 = vrot.lane.b32.xlu0 %v3209, 16
      %v3221 = vpop.permute.xlu0 %3220
      %v3222 = vsel %vm893, %v3219, %v3221
      %v3223 = vsel %vm893, %v3221, %v3219
      %v3224 = vsel %vm1100, %v3208, %v3223
      %v3225 = vsel %vm1101, %v3209, %v3222
      %3226 = vrot.lane.b32.xlu0 %v3200, 16
      %v3227 = vpop.permute.xlu0 %3226
      %3228 = vrot.lane.b32.xlu0 %v3201, 16
      %v3229 = vpop.permute.xlu0 %3228
      %v3230 = vsel %vm893, %v3227, %v3229
      %v3231 = vsel %vm893, %v3229, %v3227
      %v3232 = vsel %vm1100, %v3200, %v3231
      %v3233 = vsel %vm1101, %v3201, %v3230
      %3234 = vrot.lane.b32.xlu0 %v3216, 16
      %v3235 = vpop.permute.xlu0 %3234
      %3236 = vrot.lane.b32.xlu0 %v3217, 16
      %v3237 = vpop.permute.xlu0 %3236
      %v3238 = vsel %vm893, %v3235, %v3237
      %v3239 = vsel %vm893, %v3237, %v3235
      %v3240 = vsel %vm1100, %v3216, %v3239
      %v3241 = vsel %vm1101, %v3217, %v3238
      %3242 = vrot.lane.b32.xlu0 %v3208, 112
      %v3243 = vpop.permute.xlu0 %3242
      %3244 = vrot.lane.b32.xlu0 %v3209, 112
      %v3245 = vpop.permute.xlu0 %3244
      %v3246 = vsel %vm918, %v3243, %v3245
      %v3247 = vsel %vm918, %v3245, %v3243
      %v3248 = vsel %vm1128, %v3208, %v3246
      %v3249 = vsel %vm1129, %v3209, %v3247
      %3250 = vrot.lane.b32.xlu0 %v3200, 112
      %v3251 = vpop.permute.xlu0 %3250
      %3252 = vrot.lane.b32.xlu0 %v3201, 112
      %v3253 = vpop.permute.xlu0 %3252
      %v3254 = vsel %vm918, %v3251, %v3253
      %v3255 = vsel %vm918, %v3253, %v3251
      %v3256 = vsel %vm1128, %v3200, %v3254
      %v3257 = vsel %vm1129, %v3201, %v3255
      %3258 = vrot.lane.b32.xlu0 %v3216, 112
      %v3259 = vpop.permute.xlu0 %3258
      %3260 = vrot.lane.b32.xlu0 %v3217, 112
      %v3261 = vpop.permute.xlu0 %3260
      %v3262 = vsel %vm918, %v3259, %v3261
      %v3263 = vsel %vm918, %v3261, %v3259
      %v3264 = vsel %vm1128, %v3216, %v3262
      %v3265 = vsel %vm1129, %v3217, %v3263
      %v3266 = vpack.c.bf16 %v3232, %v3224
      %v3267 = vpack.c.bf16 %v3233, %v3225
      %v3268 = vpack.c.bf16 %v3208, %v3240
      %v3269 = vpack.c.bf16 %v3209, %v3241
      %v3270 = vpack.c.bf16 %v3216, %v3200
      %v3271 = vpack.c.bf16 %v3217, %v3201
      %v3272 = vpack.c.bf16 %v3256, %v3248
      %v3273 = vpack.c.bf16 %v3257, %v3249
      %v3274 = vpack.c.bf16 %v3264, %v3264
      %v3275 = vpack.c.bf16 %v3265, %v3265
      %v3276 = vld [vmem:[%s23] sm:$0x3]
      %v3277 = vld [vmem:[%s24] sm:$0xf]
      %3279 = vset.pattern.permute.xlu0 0
      %3280 = vperm.xlu0 %3279, %v3277
      %v3281 = vpop.permute.xlu0 %3280
      %v3284 = vsel %vm1653, %v3276, 0
      %v3287 = vsel %vm984, %v3274, 0
      %v3290 = vsel %vm984, %v3275, 0
      %3292 = vmatprep.subr.bf16.mxu0 %v3267
      %3293 = vmatpush1.bf16.msra.mxu0 %v3266
      %3294 = vmatprep.subr.bf16.mxu0 %v3269
      %3295 = vmatpush1.bf16.msra.mxu0 %v3268
      %3296 = vmatprep.subr.bf16.mxu0 %v3271
      %3297 = vmatpush1.bf16.msra.mxu0 %v3270
      %3298 = vmatprep.subr.bf16.mxu0 %v3273
      %3299 = vmatpush1.bf16.msra.mxu0 %v3272
      %3300 = vmatprep.subr.bf16.mxu0 %v3290
      %3301 = vmatpush1.bf16.msra.mxu0 %v3287
      %3302 = vmatprep.subr.bf16.mxu0 0
      %3303 = vmatpush1.bf16.msra.mxu0 0
      %3304 = vmatprep.subr.bf16.mxu0 0
      %3305 = vmatpush1.bf16.msra.mxu0 0
      %3306 = vmatprep.subr.bf16.mxu0 0
      %3307 = vmatpush1.bf16.msra.mxu0 0
      %3308 = vmatprep.subr.bf16.mxu0 0
      %3309 = vmatpush1.bf16.msra.mxu0 0
      %3310 = vmatprep.subr.bf16.mxu0 0
      %3311 = vmatpush1.bf16.msra.mxu0 0
      %3312 = vmatprep.subr.bf16.mxu0 0
      %3313 = vmatpush1.bf16.msra.mxu0 0
      %3314 = vmatprep.subr.bf16.mxu0 0
      %3315 = vmatpush1.bf16.msra.mxu0 0
      %3316 = vmatprep.subr.bf16.mxu0 0
      %3317 = vmatpush1.bf16.msra.mxu0 0
      %3318 = vmatprep.subr.bf16.mxu0 0
      %3319 = vmatpush1.bf16.msra.mxu0 0
      %3320 = vmatprep.subr.bf16.mxu0 0
      %3321 = vmatpush1.bf16.msra.mxu0 0
      %3322 = vmatprep.subr.bf16.mxu0 0
      %3323 = vmatpush1.bf16.msra.mxu0 0
      %3324 = vmatprep.mubr.bf16.mxu0 0
      %3325 = vmatmul.mubr.bf16.gmra.mrb[0].mxu0 %v3284
      %v3326 = vpop.f32.mrb[0].mxu0
      %v3327 = vadd.f32 %v3281, %v3326
      %v3328 = vpop.f32.mrb[0].mxu0
      %v3329 = vadd.f32 %v3281, %v3328
      %v3330 = vpop.f32.mrb[0].mxu0
      %v3331 = vpop.f32.mrb[0].mxu0
      %3332 = vdwg.mxu0
      %vm3333 = vcmp.gt.f32.partialorder %v3327, 0.0
      %vm3334 = vcmp.gt.f32.partialorder %v3329, 0.0
      %v3335 = vmul.f32 %v3327, 1.442695
      %v3336 = vpow.pop %v3335
      %v3337 = vmul.f32 %v3329, 1.442695
      %v3338 = vpow.pop %v3337
      %v3339 = vsub.f32 %v3336, 1.0
      %v3340 = vsub.f32 %v3338, 1.0
      %v3341 = vsel %vm3333, %v3327, %v3339
      %v3342 = vsel %vm3334, %v3329, %v3340
      %3343 = vrot.lane.b32.xlu0 %v3341, 1
      %v3344 = vpop.permute.xlu0 %3343
      %3345 = vrot.lane.b32.xlu0 %v3342, 1
      %v3346 = vpop.permute.xlu0 %3345
      %v3347 = vsel %vm875, %v3344, %v3346
      %v3348 = vsel %vm875, %v3346, %v3344
      %v3349 = vsel %vm1076, %v3341, %v3348
      %v3350 = vsel %vm1077, %v3342, %v3347
      %3351 = vrot.lane.b32.xlu0 %v3341, 127
      %v3352 = vpop.permute.xlu0 %3351
      %3353 = vrot.lane.b32.xlu0 %v3342, 127
      %v3354 = vpop.permute.xlu0 %3353
      %v3355 = vsel %vm884, %v3352, %v3354
      %v3356 = vsel %vm884, %v3354, %v3352
      %v3357 = vsel %vm1088, %v3341, %v3355
      %v3358 = vsel %vm1089, %v3342, %v3356
      %3359 = vrot.lane.b32.xlu0 %v3349, 16
      %v3360 = vpop.permute.xlu0 %3359
      %3361 = vrot.lane.b32.xlu0 %v3350, 16
      %v3362 = vpop.permute.xlu0 %3361
      %v3363 = vsel %vm893, %v3360, %v3362
      %v3364 = vsel %vm893, %v3362, %v3360
      %v3365 = vsel %vm1100, %v3349, %v3364
      %v3366 = vsel %vm1101, %v3350, %v3363
      %3367 = vrot.lane.b32.xlu0 %v3341, 16
      %v3368 = vpop.permute.xlu0 %3367
      %3369 = vrot.lane.b32.xlu0 %v3342, 16
      %v3370 = vpop.permute.xlu0 %3369
      %v3371 = vsel %vm893, %v3368, %v3370
      %v3372 = vsel %vm893, %v3370, %v3368
      %v3373 = vsel %vm1100, %v3341, %v3372
      %v3374 = vsel %vm1101, %v3342, %v3371
      %3375 = vrot.lane.b32.xlu0 %v3357, 16
      %v3376 = vpop.permute.xlu0 %3375
      %3377 = vrot.lane.b32.xlu0 %v3358, 16
      %v3378 = vpop.permute.xlu0 %3377
      %v3379 = vsel %vm893, %v3376, %v3378
      %v3380 = vsel %vm893, %v3378, %v3376
      %v3381 = vsel %vm1100, %v3357, %v3380
      %v3382 = vsel %vm1101, %v3358, %v3379
      %3383 = vrot.lane.b32.xlu0 %v3349, 112
      %v3384 = vpop.permute.xlu0 %3383
      %3385 = vrot.lane.b32.xlu0 %v3350, 112
      %v3386 = vpop.permute.xlu0 %3385
      %v3387 = vsel %vm918, %v3384, %v3386
      %v3388 = vsel %vm918, %v3386, %v3384
      %v3389 = vsel %vm1128, %v3349, %v3387
      %v3390 = vsel %vm1129, %v3350, %v3388
      %3391 = vrot.lane.b32.xlu0 %v3341, 112
      %v3392 = vpop.permute.xlu0 %3391
      %3393 = vrot.lane.b32.xlu0 %v3342, 112
      %v3394 = vpop.permute.xlu0 %3393
      %v3395 = vsel %vm918, %v3392, %v3394
      %v3396 = vsel %vm918, %v3394, %v3392
      %v3397 = vsel %vm1128, %v3341, %v3395
      %v3398 = vsel %vm1129, %v3342, %v3396
      %3399 = vrot.lane.b32.xlu0 %v3357, 112
      %v3400 = vpop.permute.xlu0 %3399
      %3401 = vrot.lane.b32.xlu0 %v3358, 112
      %v3402 = vpop.permute.xlu0 %3401
      %v3403 = vsel %vm918, %v3400, %v3402
      %v3404 = vsel %vm918, %v3402, %v3400
      %v3405 = vsel %vm1128, %v3357, %v3403
      %v3406 = vsel %vm1129, %v3358, %v3404
      %v3409 = vrot.slane %v3373, 4
      %v3410 = vrot.slane %v3374, 4
      %v3415 = vrot.slane %v3349, 4
      %v3416 = vrot.slane %v3350, 4
      %v3421 = vrot.slane %v3357, 4
      %v3422 = vrot.slane %v3358, 4
      %v3427 = vrot.slane %v3397, 4
      %v3428 = vrot.slane %v3398, 4
      %v3431 = vsel %vm984, %v3365, %v3409
      %v3432 = vsel %vm984, %v3366, %v3410
      %v3433 = vsel %vm984, %v3381, %v3415
      %v3434 = vsel %vm984, %v3382, %v3416
      %v3435 = vsel %vm984, %v3341, %v3421
      %v3436 = vsel %vm984, %v3342, %v3422
      %v3437 = vsel %vm984, %v3389, %v3427
      %v3438 = vsel %vm984, %v3390, %v3428
      %v3439 = vpack.c.bf16 %v3433, %v3431
      %v3440 = vpack.c.bf16 %v3434, %v3432
      %v3441 = vpack.c.bf16 %v3437, %v3435
      %v3442 = vpack.c.bf16 %v3438, %v3436
      %v3443 = vpack.c.bf16 %v3405, %v3405
      %v3444 = vpack.c.bf16 %v3406, %v3406
      %v3445 = vld [vmem:[%s25] sm:$0x1]
      %v3446 = vld [vmem:[%s26] sm:$0x3]
      %3448 = vset.pattern.permute.xlu0 0
      %3449 = vperm.xlu0 %3448, %v3446
      %v3450 = vpop.permute.xlu0 %3449
      %v3453 = vsel %vm1193, %v3445, 0
      %v3456 = vsel %vm978, %v3443, 0
      %v3459 = vsel %vm978, %v3444, 0
      %3461 = vmatprep.subr.bf16.mxu0 %v3440
      %3462 = vmatpush1.bf16.msra.mxu0 %v3439
      %3463 = vmatprep.subr.bf16.mxu0 %v3442
      %3464 = vmatpush1.bf16.msra.mxu0 %v3441
      %3465 = vmatprep.subr.bf16.mxu0 %v3459
      %3466 = vmatpush1.bf16.msra.mxu0 %v3456
      %3467 = vmatprep.subr.bf16.mxu0 0
      %3468 = vmatpush1.bf16.msra.mxu0 0
      %3469 = vmatprep.subr.bf16.mxu0 0
      %3470 = vmatpush1.bf16.msra.mxu0 0
      %3471 = vmatprep.subr.bf16.mxu0 0
      %3472 = vmatpush1.bf16.msra.mxu0 0
      %3473 = vmatprep.subr.bf16.mxu0 0
      %3474 = vmatpush1.bf16.msra.mxu0 0
      %3475 = vmatprep.subr.bf16.mxu0 0
      %3476 = vmatpush1.bf16.msra.mxu0 0
      %3477 = vmatprep.subr.bf16.mxu0 0
      %3478 = vmatpush1.bf16.msra.mxu0 0
      %3479 = vmatprep.subr.bf16.mxu0 0
      %3480 = vmatpush1.bf16.msra.mxu0 0
      %3481 = vmatprep.subr.bf16.mxu0 0
      %3482 = vmatpush1.bf16.msra.mxu0 0
      %3483 = vmatprep.subr.bf16.mxu0 0
      %3484 = vmatpush1.bf16.msra.mxu0 0
      %3485 = vmatprep.subr.bf16.mxu0 0
      %3486 = vmatpush1.bf16.msra.mxu0 0
      %3487 = vmatprep.subr.bf16.mxu0 0
      %3488 = vmatpush1.bf16.msra.mxu0 0
      %3489 = vmatprep.subr.bf16.mxu0 0
      %3490 = vmatpush1.bf16.msra.mxu0 0
      %3491 = vmatprep.subr.bf16.mxu0 0
      %3492 = vmatpush1.bf16.msra.mxu0 0
      %3493 = vmatprep.mubr.bf16.mxu0 0
      %3494 = vmatmul.mubr.bf16.gmra.mrb[0].mxu0 %v3453
      %v3495 = vpop.f32.mrb[0].mxu0
      %v3496 = vadd.f32 %v3450, %v3495
      %v3497 = vpop.f32.mrb[0].mxu0
      %v3498 = vadd.f32 %v3450, %v3497
      %v3499 = vpop.f32.mrb[0].mxu0
      %v3500 = vpop.f32.mrb[0].mxu0
      %3501 = vdwg.mxu0
      %v3502 = vld [vmem:[%s27] sm:$0x1]
      %v3503 = vpack.c.bf16 %v3496, %v3496
      %v3504 = vpack.c.bf16 %v3498, %v3498
      %vm3505 = vcmask 15360
      %v3507 = vsel %vm3505, %v3502, 0
      %v3510 = vsel %vm975, %v3503, 0
      %v3513 = vsel %vm975, %v3504, 0
      %3515 = vmatprep.subr.bf16.mxu0 %v3513
      %3516 = vmatpush1.bf16.msra.mxu0 %v3510
      %3517 = vmatprep.subr.bf16.mxu0 0
      %3518 = vmatpush1.bf16.msra.mxu0 0
      %3519 = vmatprep.subr.bf16.mxu0 0
      %3520 = vmatpush1.bf16.msra.mxu0 0
      %3521 = vmatprep.subr.bf16.mxu0 0
      %3522 = vmatpush1.bf16.msra.mxu0 0
      %3523 = vmatprep.subr.bf16.mxu0 0
      %3524 = vmatpush1.bf16.msra.mxu0 0
      %3525 = vmatprep.subr.bf16.mxu0 0
      %3526 = vmatpush1.bf16.msra.mxu0 0
      %3527 = vmatprep.subr.bf16.mxu0 0
      %3528 = vmatpush1.bf16.msra.mxu0 0
      %3529 = vmatprep.subr.bf16.mxu0 0
      %3530 = vmatpush1.bf16.msra.mxu0 0
      %3531 = vmatprep.subr.bf16.mxu0 0
      %3532 = vmatpush1.bf16.msra.mxu0 0
      %3533 = vmatprep.subr.bf16.mxu0 0
      %3534 = vmatpush1.bf16.msra.mxu0 0
      %3535 = vmatprep.subr.bf16.mxu0 0
      %3536 = vmatpush1.bf16.msra.mxu0 0
      %3537 = vmatprep.subr.bf16.mxu0 0
      %3538 = vmatpush1.bf16.msra.mxu0 0
      %3539 = vmatprep.subr.bf16.mxu0 0
      %3540 = vmatpush1.bf16.msra.mxu0 0
      %3541 = vmatprep.subr.bf16.mxu0 0
      %3542 = vmatpush1.bf16.msra.mxu0 0
      %3543 = vmatprep.subr.bf16.mxu0 0
      %3544 = vmatpush1.bf16.msra.mxu0 0
      %3545 = vmatprep.subr.bf16.mxu0 0
      %3546 = vmatpush1.bf16.msra.mxu0 0
      %3547 = vmatprep.mubr.bf16.mxu0 0
      %3548 = vmatmul.mubr.bf16.gmra.mrb[0].mxu0 %v3507
      %v3549 = vpop.f32.mrb[0].mxu0
      %v3550 = vadd.f32 0.0, %v3549
      %v3551 = vpop.f32.mrb[0].mxu0
      %v3552 = vadd.f32 0.0, %v3551
      %v3553 = vpop.f32.mrb[0].mxu0
      %v3554 = vpop.f32.mrb[0].mxu0
      %3555 = vdwg.mxu0
      %v3558 = vcombine.low %v3550, %v3552
      %v3560 = vunpack.c.l.s4 1983009808
      %v3561 = vunpack.c.0.s8 %v3560
      %v3562 = vlaneseq
      %v3563 = vshrl.u32 %v3562, 7
      %v3564 = vsub.s32 %v3561, %v3563
      %v3565 = vrot.slane %v3558, %v3564
      %3567 = vst [vmem:[%s842] sm:$0xf] %v3565
      %p3568 = scmp.lt.s32.totalorder %s39, 1
      %s3569 = scalar_select %p3568, %s39, 1
      %s3570 = smul.addr %s3569, 2
      %s3571 = smul.addr %s3570, 2
      %s3572 = scalar_lea.vmem %s28, %s3571
      // Predicated region
      $region133: #{unet_forward.1} parent=131 // pred_check
        %p3573 = pneg %p650
      $region134: #{unet_forward.1} parent=131 // pred_check_branch
        %3575 = sbr.rel (%p3573) target = $region136
      $region135: #{unet_forward.1} parent=131 // pred_region
        _
      $region136: #{unet_forward.1} parent=131 // pred_fallthru
        _
    $region132: #{unet_forward.1} parent=5 // pred_fallthru
      _
    %p3576 = scmp.le.s32.totalorder 2, %s34
    // Predicated region
    $region137: #{unet_forward.1} parent=5 // pred_check
      %p3577 = pneg %p3576
    $region138: #{unet_forward.1} parent=5 // pred_check_branch
      %3579 = sbr.rel (%p3577) target = $region140
    $region139: #{unet_forward.1} parent=5 // pred_region
      %s3580 = ssub.s32 %s34, 2
      // Predicated region
      $region141: #{unet_forward.1} parent=139 // pred_check
        %p3581 = pneg %p656
      $region142: #{unet_forward.1} parent=139 // pred_check_branch
        %3583 = sbr.rel (%p3581) target = $region144
      $region143: #{unet_forward.1} parent=139 // pred_region
        %p3584 = scmp.lt.s32.totalorder %s40, 1
        %s3585 = scalar_select %p3584, %s40, 1
        %s3586 = smul.addr %s3585, 2
        %s3587 = smul.addr %s3586, 2
        %s3588 = scalar_lea.vmem %s28, %s3587
      $region144: #{unet_forward.1} parent=139 // pred_fallthru
        _
    $region140: #{unet_forward.1} parent=5 // pred_fallthru
      _
  $region6: #{unet_forward.1} parent=0 // loop_footer
    %s38 = sadd.s32 1, %s34
  $region7: #{unet_forward.1} parent=0 // loop_footer_branch
    %33 = sbr.rel target = $region3
  $region8: #{unet_forward.1} parent=0 // loop_exit
    _

</llo_original>
